<compile_context>
chip_gen: v7x
topology: tpu7x:2x2x1
jax: 0.10.0
libtpu: 0.0.40
codegen_flags: <defaults>
</compile_context>

<pallas_src>
import jax
import jax.numpy as jnp
from jax.experimental import pallas as pl
from jax.experimental.pallas import tpu as pltpu

LANES = 128  # TPU lane width; all N dims are padded to this.


# ----------------------------------------------------------------------------
# Pallas kernels
# ----------------------------------------------------------------------------
def _conv_pool_kernel(p00_ref, p01_ref, p10_ref, p11_ref, w_ref, b_ref, o_ref):
    """Fused conv (im2col matmul) + bias + ReLU + 2x2 max-pool for one image.

    p??_ref : (Mp, Kpad)  bf16  im2col patches, one matrix per pool-window corner
    w_ref   : (Kpad, 128) bf16  conv weights (K- and N-zero-padded)
    b_ref   : (1, 128)    f32   bias (N-zero-padded)
    o_ref   : (Mp, 128)   bf16  pooled activations (rows = pooled (h, w))
    """
    w = w_ref[...]
    z = jnp.maximum(
        jnp.maximum(
            jnp.dot(p00_ref[...], w, preferred_element_type=jnp.float32),
            jnp.dot(p01_ref[...], w, preferred_element_type=jnp.float32)),
        jnp.maximum(
            jnp.dot(p10_ref[...], w, preferred_element_type=jnp.float32),
            jnp.dot(p11_ref[...], w, preferred_element_type=jnp.float32)))
    # bias-add and ReLU commute with the max over the 4 corners.
    z = jnp.maximum(z + b_ref[...], 0.0)
    o_ref[...] = z.astype(o_ref.dtype)


def _fc_chain_kernel(x_ref, w1_ref, b1_ref, w2_ref, b2_ref, w3_ref, b3_ref, o_ref):
    """Fused fc1 -> ReLU -> fc2 -> ReLU -> fc3; intermediates never leave VMEM."""
    h1 = jnp.dot(x_ref[...], w1_ref[...], preferred_element_type=jnp.float32)
    h1 = jnp.maximum(h1 + b1_ref[...], 0.0).astype(jnp.bfloat16)
    h2 = jnp.dot(h1, w2_ref[...], preferred_element_type=jnp.float32)
    h2 = jnp.maximum(h2 + b2_ref[...], 0.0).astype(jnp.bfloat16)
    out = jnp.dot(h2, w3_ref[...], preferred_element_type=jnp.float32) + b3_ref[...]
    o_ref[...] = out


# ----------------------------------------------------------------------------
# pallas_call wrappers
# ----------------------------------------------------------------------------
def conv_pool(p00, p01, p10, p11, wmat, bias):
    """Fused conv+ReLU+pool.  p??: (B, Mp, Kpad) bf16 -> (B, Mp, 128) bf16."""
    B, Mp, Kp = p00.shape
    Kp2, Np = wmat.shape
    assert Kp == Kp2
    patch_spec = pl.BlockSpec((None, Mp, Kp), lambda b: (b, 0, 0))
    return pl.pallas_call(
        _conv_pool_kernel,
        out_shape=jax.ShapeDtypeStruct((B, Mp, Np), jnp.bfloat16),
        grid=(B,),
        in_specs=[patch_spec, patch_spec, patch_spec, patch_spec,
                  pl.BlockSpec((Kp, Np), lambda b: (0, 0)),
                  pl.BlockSpec((1, Np), lambda b: (0, 0))],
        out_specs=pl.BlockSpec((None, Mp, Np), lambda b: (b, 0, 0)),
        compiler_params=pltpu.CompilerParams(
            dimension_semantics=("parallel",)),   # use both TensorCores on v7x
    )(p00, p01, p10, p11, wmat, bias)


def fc_chain(x, w1, b1, w2, b2, w3, b3):
    """Fused fc1->fc2->fc3.  x: (B, K) bf16 -> logits (B, 128) f32."""
    B, K = x.shape
    H1, H2, N = w1.shape[1], w2.shape[1], w3.shape[1]

    def full(shape):
        return pl.BlockSpec(shape, lambda i: (0,) * len(shape))

    return pl.pallas_call(
        _fc_chain_kernel,
        out_shape=jax.ShapeDtypeStruct((B, N), jnp.float32),
        grid=(1,),
        in_specs=[full((B, K)), full((K, H1)), full((1, H1)),
                  full((H1, H2)), full((1, H2)),
                  full((H2, N)), full((1, N))],
        out_specs=full((B, N)),
    )(x, w1, b1, w2, b2, w3, b3)


# ----------------------------------------------------------------------------
# Wrapper-side glue: corner-grouped im2col (pushes pooling into row ordering)
# ----------------------------------------------------------------------------
def _corner_im2col(x, k, k_pad):
    """x: (B, H, W, C) NHWC -> 4 patch matrices (B, PH*PW, k_pad) bf16.

    Corner (dy, dx) of each 2x2 pool window gets its own patch matrix whose
    row (ph*PW + pw) is the conv patch at output position (2*ph+dy, 2*pw+dx).
    Patch column order is (kh, kw, c); columns are zero-padded to k_pad.
    """
    B, H, W, C = x.shape
    OH, OW = H - k + 1, W - k + 1
    PH, PW = OH // 2, OW // 2
    slabs = [x[:, kh:kh + OH, kw:kw + OW, :] for kh in range(k) for kw in range(k)]
    patches = jnp.stack(slabs, axis=3)                 # (B, OH, OW, k*k, C)
    corners = []
    for dy in range(2):
        for dx in range(2):
            pc = patches[:, dy::2, dx::2, :, :]        # (B, PH, PW, k*k, C)
            pc = pc.reshape(B, PH * PW, k * k * C)
            pc = jnp.pad(pc, ((0, 0), (0, 0), (0, k_pad - k * k * C)))
            corners.append(pc.astype(jnp.bfloat16))
    return corners, (PH, PW)


# ----------------------------------------------------------------------------
# Parameter preparation (done once): transpose / permute / pad to 128 lanes
# ----------------------------------------------------------------------------
def prepare_params(params):
    """Fold all transposes, permutations and lane padding into the weights.

    conv weights -> (Kpad, 128) matmul form with column order (kh, kw, c);
    fc weights   -> (Kpad, 128), with fc1's K rows permuted to the NHWC
    (p = h*5+w, c padded to 128) flatten order produced by the conv2 kernel.
    Zero padding is exact: padded lanes stay 0 through bias/ReLU and meet
    zero weight rows downstream.
    """
    def conv_wmat(w, k_pad):
        out_c, in_c, kh, kw = w.shape
        m = jnp.transpose(w, (2, 3, 1, 0)).reshape(kh * kw * in_c, out_c)
        m = jnp.pad(m, ((0, k_pad - m.shape[0]), (0, LANES - out_c)))
        return m.astype(jnp.bfloat16)

    def pad_bias(b):
        return jnp.pad(b, (0, LANES - b.shape[0])).reshape(1, LANES).astype(jnp.float32)

    def fc_wmat(w):                      # torch (N, K) -> (128, 128)
        n, kk = w.shape
        return jnp.pad(w.T, ((0, LANES - kk), (0, LANES - n))).astype(jnp.bfloat16)

    # fc1: torch flattens pool2 as (c, h, w) over (16, 5, 5); our flatten is
    # (p = h*5+w, c padded to 128) -> permute + pad the K rows accordingly.
    fc1 = params["fc1_w"].reshape(120, 16, 25)           # [n, c, p]
    fc1 = jnp.transpose(fc1, (2, 1, 0))                  # [p, c, n]
    fc1 = jnp.pad(fc1, ((0, 0), (0, LANES - 16), (0, LANES - 120)))
    fc1 = fc1.reshape(25 * LANES, LANES).astype(jnp.bfloat16)

    return {
        "conv1_w": conv_wmat(params["conv1_w"], 128),    # K: 75  -> 128
        "conv1_b": pad_bias(params["conv1_b"]),
        "conv2_w": conv_wmat(params["conv2_w"], 256),    # K: 150 -> 256
        "conv2_b": pad_bias(params["conv2_b"]),
        "fc1_w": fc1,
        "fc1_b": pad_bias(params["fc1_b"]),
        "fc2_w": fc_wmat(params["fc2_w"]),
        "fc2_b": pad_bias(params["fc2_b"]),
        "fc3_w": fc_wmat(params["fc3_w"]),
        "fc3_b": pad_bias(params["fc3_b"]),
    }


# ----------------------------------------------------------------------------
# LeNet forward
# ----------------------------------------------------------------------------
def _lenet_forward(x_nchw, p, *, num_classes=2):
    B = x_nchw.shape[0]
    x = jnp.transpose(x_nchw, (0, 2, 3, 1)).astype(jnp.float32)       # NHWC (B,32,32,3)

    # conv1 + ReLU + 2x2 pool -> (B, 14*14, 128) bf16
    c, (ph1, pw1) = _corner_im2col(x, 5, 128)
    pooled1 = conv_pool(*c, p["conv1_w"], p["conv1_b"])
    pooled1 = pooled1.reshape(B, ph1, pw1, LANES)[..., :6]            # (B,14,14,6)

    # conv2 + ReLU + 2x2 pool -> (B, 5*5, 128) bf16
    c, _ = _corner_im2col(pooled1, 5, 256)
    pooled2 = conv_pool(*c, p["conv2_w"], p["conv2_b"])               # (B,25,128)

    # fused fc1 -> fc2 -> fc3 (flatten stays in (p, c) order; fc1_w is permuted)
    flat = pooled2.reshape(B, 25 * LANES)                             # (B, 3200)
    logits = fc_chain(flat, p["fc1_w"], p["fc1_b"], p["fc2_w"], p["fc2_b"],
                      p["fc3_w"], p["fc3_b"])                         # (B, 128) f32
    return logits[:, :num_classes]


lenet_forward = jax.jit(_lenet_forward, static_argnames=("num_classes",))


def init_params(key, classes=2):
    """Deterministic init mirroring LeNet.initialize_weights():
    conv: xavier_normal weights, zero bias; linear: N(0, 0.1) weights, zero bias."""
    k1, k2, k3, k4, k5 = jax.random.split(key, 5)

    def xavier_normal(k, shape):  # shape = (out_c, in_c, kh, kw)
        fan_in = shape[1] * shape[2] * shape[3]
        fan_out = shape[0] * shape[2] * shape[3]
        std = (2.0 / (fan_in + fan_out)) ** 0.5
        return std * jax.random.normal(k, shape, jnp.float32)

    return {
        "conv1_w": xavier_normal(k1, (6, 3, 5, 5)),
        "conv1_b": jnp.zeros((6,), jnp.float32),
        "conv2_w": xavier_normal(k2, (16, 6, 5, 5)),
        "conv2_b": jnp.zeros((16,), jnp.float32),
        "fc1_w": 0.1 * jax.random.normal(k3, (120, 16 * 5 * 5), jnp.float32),
        "fc1_b": jnp.zeros((120,), jnp.float32),
        "fc2_w": 0.1 * jax.random.normal(k4, (84, 120), jnp.float32),
        "fc2_b": jnp.zeros((84,), jnp.float32),
        "fc3_w": 0.1 * jax.random.normal(k5, (classes, 84), jnp.float32),
        "fc3_b": jnp.zeros((classes,), jnp.float32),
    }


if __name__ == "__main__":
    key = jax.random.PRNGKey(0)
    k_x, k_p = jax.random.split(key)
    # LeNet's fc1 (16*5*5 inputs) implies 32x32 spatial input, 3 channels.
    x = jax.random.normal(k_x, (2, 3, 32, 32), jnp.float32)
    params = init_params(k_p, classes=2)
    prep = prepare_params(params)          # one-time weight transpose/permute/pad

    logits = lenet_forward(x, prep, num_classes=2)
    jax.block_until_ready(logits)
    assert logits.shape == (2, 2)
    assert bool(jnp.all(jnp.isfinite(logits)))
    print("KERNEL_OK")
</pallas_src>

<mosaic_0001>
module attributes {stable_mosaic.version = 11 : i64} {
  func.func @_conv_pool_kernel(%arg0: i32, %arg1: memref<1x196x128xbf16, #tpu.memory_space<vmem>>, %arg2: memref<1x196x128xbf16, #tpu.memory_space<vmem>>, %arg3: memref<1x196x128xbf16, #tpu.memory_space<vmem>>, %arg4: memref<1x196x128xbf16, #tpu.memory_space<vmem>>, %arg5: memref<128x128xbf16, #tpu.memory_space<vmem>>, %arg6: memref<1x128xf32, #tpu.memory_space<vmem>>, %arg7: memref<1x196x128xbf16, #tpu.memory_space<vmem>>) attributes {dimension_semantics = [#tpu.dimension_semantics<parallel>], iteration_bounds = array<i64: 2>, scalar_prefetch = 0 : i64, scratch_operands = 0 : i64, tpu.core_type = #tpu.core_type<tc>, window_params = [{transform_indices = @transform_0, window_bounds = array<i64: 1, 196, 128>}, {transform_indices = @transform_1, window_bounds = array<i64: 1, 196, 128>}, {transform_indices = @transform_2, window_bounds = array<i64: 1, 196, 128>}, {transform_indices = @transform_3, window_bounds = array<i64: 1, 196, 128>}, {pipeline_mode = #tpu.pipeline_mode<synchronous>, transform_indices = @transform_4, window_bounds = array<i64: 128, 128>}, {pipeline_mode = #tpu.pipeline_mode<synchronous>, transform_indices = @transform_5, window_bounds = array<i64: 1, 128>}, {transform_indices = @transform_6, window_bounds = array<i64: 1, 196, 128>}]} {
    %c0 = arith.constant 0 : index
    %c0_0 = arith.constant 0 : index
    %0 = vector.load %arg5[%c0, %c0_0] : memref<128x128xbf16, #tpu.memory_space<vmem>>, vector<128x128xbf16>
    %c0_1 = arith.constant 0 : index
    %c0_2 = arith.constant 0 : index
    %c0_3 = arith.constant 0 : index
    %1 = vector.load %arg1[%c0_1, %c0_2, %c0_3] : memref<1x196x128xbf16, #tpu.memory_space<vmem>>, vector<1x196x128xbf16>
    %2 = vector.shape_cast %1 : vector<1x196x128xbf16> to vector<196x128xbf16>
    %cst = arith.constant dense<0.000000e+00> : vector<196x128xf32>
    %3 = tpu.matmul %2, %0, %cst {dimension_numbers = #tpu.dot_dimension_numbers<[1], [0], [0], [1], [0, 0, 1, 1], [], []>} : vector<196x128xbf16>, vector<128x128xbf16>, vector<196x128xf32> -> vector<196x128xf32>
    %c0_4 = arith.constant 0 : index
    %c0_5 = arith.constant 0 : index
    %c0_6 = arith.constant 0 : index
    %4 = vector.load %arg2[%c0_4, %c0_5, %c0_6] : memref<1x196x128xbf16, #tpu.memory_space<vmem>>, vector<1x196x128xbf16>
    %5 = vector.shape_cast %4 : vector<1x196x128xbf16> to vector<196x128xbf16>
    %cst_7 = arith.constant dense<0.000000e+00> : vector<196x128xf32>
    %6 = tpu.matmul %5, %0, %cst_7 {dimension_numbers = #tpu.dot_dimension_numbers<[1], [0], [0], [1], [0, 0, 1, 1], [], []>} : vector<196x128xbf16>, vector<128x128xbf16>, vector<196x128xf32> -> vector<196x128xf32>
    %7 = arith.maximumf %3, %6 : vector<196x128xf32>
    %c0_8 = arith.constant 0 : index
    %c0_9 = arith.constant 0 : index
    %c0_10 = arith.constant 0 : index
    %8 = vector.load %arg3[%c0_8, %c0_9, %c0_10] : memref<1x196x128xbf16, #tpu.memory_space<vmem>>, vector<1x196x128xbf16>
    %9 = vector.shape_cast %8 : vector<1x196x128xbf16> to vector<196x128xbf16>
    %cst_11 = arith.constant dense<0.000000e+00> : vector<196x128xf32>
    %10 = tpu.matmul %9, %0, %cst_11 {dimension_numbers = #tpu.dot_dimension_numbers<[1], [0], [0], [1], [0, 0, 1, 1], [], []>} : vector<196x128xbf16>, vector<128x128xbf16>, vector<196x128xf32> -> vector<196x128xf32>
    %c0_12 = arith.constant 0 : index
    %c0_13 = arith.constant 0 : index
    %c0_14 = arith.constant 0 : index
    %11 = vector.load %arg4[%c0_12, %c0_13, %c0_14] : memref<1x196x128xbf16, #tpu.memory_space<vmem>>, vector<1x196x128xbf16>
    %12 = vector.shape_cast %11 : vector<1x196x128xbf16> to vector<196x128xbf16>
    %cst_15 = arith.constant dense<0.000000e+00> : vector<196x128xf32>
    %13 = tpu.matmul %12, %0, %cst_15 {dimension_numbers = #tpu.dot_dimension_numbers<[1], [0], [0], [1], [0, 0, 1, 1], [], []>} : vector<196x128xbf16>, vector<128x128xbf16>, vector<196x128xf32> -> vector<196x128xf32>
    %14 = arith.maximumf %10, %13 : vector<196x128xf32>
    %15 = arith.maximumf %7, %14 : vector<196x128xf32>
    %c0_16 = arith.constant 0 : index
    %c0_17 = arith.constant 0 : index
    %16 = vector.load %arg6[%c0_16, %c0_17] : memref<1x128xf32, #tpu.memory_space<vmem>>, vector<1x128xf32>
    %17 = vector.broadcast %16 : vector<1x128xf32> to vector<196x128xf32>
    %18 = arith.addf %15, %17 : vector<196x128xf32>
    %cst_18 = arith.constant 0.000000e+00 : f32
    %19 = vector.broadcast %cst_18 : f32 to vector<196x128xf32>
    %20 = arith.maximumf %18, %19 : vector<196x128xf32>
    %21 = arith.truncf %20 : vector<196x128xf32> to vector<196x128xbf16>
    %c0_19 = arith.constant 0 : index
    %c0_20 = arith.constant 0 : index
    %c0_21 = arith.constant 0 : index
    %22 = vector.load %arg7[%c0_19, %c0_20, %c0_21] : memref<1x196x128xbf16, #tpu.memory_space<vmem>>, vector<1x196x128xbf16>
    %23 = vector.shape_cast %22 : vector<1x196x128xbf16> to vector<196x128xbf16>
    %24 = vector.shape_cast %21 : vector<196x128xbf16> to vector<1x196x128xbf16>
    tpu.vector_store %arg7[%c0_19, %c0_20, %c0_21], %24 {strides = array<i32>} : memref<1x196x128xbf16, #tpu.memory_space<vmem>>, vector<1x196x128xbf16>,
    return
  }
  func.func @transform_0(%arg0: i32) -> (i32, i32, i32) {
    %c0_i32 = arith.constant 0 : i32
    %c0_i32_0 = arith.constant 0 : i32
    %c0_i32_1 = arith.constant 0 : i32
    return %arg0, %c0_i32, %c0_i32_0 : i32, i32, i32
  }
  func.func @transform_1(%arg0: i32) -> (i32, i32, i32) {
    %c0_i32 = arith.constant 0 : i32
    %c0_i32_0 = arith.constant 0 : i32
    %c0_i32_1 = arith.constant 0 : i32
    return %arg0, %c0_i32, %c0_i32_0 : i32, i32, i32
  }
  func.func @transform_2(%arg0: i32) -> (i32, i32, i32) {
    %c0_i32 = arith.constant 0 : i32
    %c0_i32_0 = arith.constant 0 : i32
    %c0_i32_1 = arith.constant 0 : i32
    return %arg0, %c0_i32, %c0_i32_0 : i32, i32, i32
  }
  func.func @transform_3(%arg0: i32) -> (i32, i32, i32) {
    %c0_i32 = arith.constant 0 : i32
    %c0_i32_0 = arith.constant 0 : i32
    %c0_i32_1 = arith.constant 0 : i32
    return %arg0, %c0_i32, %c0_i32_0 : i32, i32, i32
  }
  func.func @transform_4(%arg0: i32) -> (i32, i32) {
    %c0_i32 = arith.constant 0 : i32
    %c0_i32_0 = arith.constant 0 : i32
    %c0_i32_1 = arith.constant 0 : i32
    return %c0_i32, %c0_i32_0 : i32, i32
  }
  func.func @transform_5(%arg0: i32) -> (i32, i32) {
    %c0_i32 = arith.constant 0 : i32
    %c0_i32_0 = arith.constant 0 : i32
    %c0_i32_1 = arith.constant 0 : i32
    return %c0_i32, %c0_i32_0 : i32, i32
  }
  func.func @transform_6(%arg0: i32) -> (i32, i32, i32) {
    %c0_i32 = arith.constant 0 : i32
    %c0_i32_0 = arith.constant 0 : i32
    %c0_i32_1 = arith.constant 0 : i32
    return %arg0, %c0_i32, %c0_i32_0 : i32, i32, i32
  }
}

module attributes {stable_mosaic.version = 11 : i64} {
  func.func @_conv_pool_kernel(%arg0: i32, %arg1: memref<1x25x256xbf16, #tpu.memory_space<vmem>>, %arg2: memref<1x25x256xbf16, #tpu.memory_space<vmem>>, %arg3: memref<1x25x256xbf16, #tpu.memory_space<vmem>>, %arg4: memref<1x25x256xbf16, #tpu.memory_space<vmem>>, %arg5: memref<256x128xbf16, #tpu.memory_space<vmem>>, %arg6: memref<1x128xf32, #tpu.memory_space<vmem>>, %arg7: memref<1x25x128xbf16, #tpu.memory_space<vmem>>) attributes {dimension_semantics = [#tpu.dimension_semantics<parallel>], iteration_bounds = array<i64: 2>, scalar_prefetch = 0 : i64, scratch_operands = 0 : i64, tpu.core_type = #tpu.core_type<tc>, window_params = [{transform_indices = @transform_0, window_bounds = array<i64: 1, 25, 256>}, {transform_indices = @transform_1, window_bounds = array<i64: 1, 25, 256>}, {transform_indices = @transform_2, window_bounds = array<i64: 1, 25, 256>}, {transform_indices = @transform_3, window_bounds = array<i64: 1, 25, 256>}, {pipeline_mode = #tpu.pipeline_mode<synchronous>, transform_indices = @transform_4, window_bounds = array<i64: 256, 128>}, {pipeline_mode = #tpu.pipeline_mode<synchronous>, transform_indices = @transform_5, window_bounds = array<i64: 1, 128>}, {transform_indices = @transform_6, window_bounds = array<i64: 1, 25, 128>}]} {
    %c0 = arith.constant 0 : index
    %c0_0 = arith.constant 0 : index
    %0 = vector.load %arg5[%c0, %c0_0] : memref<256x128xbf16, #tpu.memory_space<vmem>>, vector<256x128xbf16>
    %c0_1 = arith.constant 0 : index
    %c0_2 = arith.constant 0 : index
    %c0_3 = arith.constant 0 : index
    %1 = vector.load %arg1[%c0_1, %c0_2, %c0_3] : memref<1x25x256xbf16, #tpu.memory_space<vmem>>, vector<1x25x256xbf16>
    %2 = vector.shape_cast %1 : vector<1x25x256xbf16> to vector<25x256xbf16>
    %cst = arith.constant dense<0.000000e+00> : vector<25x128xf32>
    %3 = tpu.matmul %2, %0, %cst {dimension_numbers = #tpu.dot_dimension_numbers<[1], [0], [0], [1], [0, 0, 1, 1], [], []>} : vector<25x256xbf16>, vector<256x128xbf16>, vector<25x128xf32> -> vector<25x128xf32>
    %c0_4 = arith.constant 0 : index
    %c0_5 = arith.constant 0 : index
    %c0_6 = arith.constant 0 : index
    %4 = vector.load %arg2[%c0_4, %c0_5, %c0_6] : memref<1x25x256xbf16, #tpu.memory_space<vmem>>, vector<1x25x256xbf16>
    %5 = vector.shape_cast %4 : vector<1x25x256xbf16> to vector<25x256xbf16>
    %cst_7 = arith.constant dense<0.000000e+00> : vector<25x128xf32>
    %6 = tpu.matmul %5, %0, %cst_7 {dimension_numbers = #tpu.dot_dimension_numbers<[1], [0], [0], [1], [0, 0, 1, 1], [], []>} : vector<25x256xbf16>, vector<256x128xbf16>, vector<25x128xf32> -> vector<25x128xf32>
    %7 = arith.maximumf %3, %6 : vector<25x128xf32>
    %c0_8 = arith.constant 0 : index
    %c0_9 = arith.constant 0 : index
    %c0_10 = arith.constant 0 : index
    %8 = vector.load %arg3[%c0_8, %c0_9, %c0_10] : memref<1x25x256xbf16, #tpu.memory_space<vmem>>, vector<1x25x256xbf16>
    %9 = vector.shape_cast %8 : vector<1x25x256xbf16> to vector<25x256xbf16>
    %cst_11 = arith.constant dense<0.000000e+00> : vector<25x128xf32>
    %10 = tpu.matmul %9, %0, %cst_11 {dimension_numbers = #tpu.dot_dimension_numbers<[1], [0], [0], [1], [0, 0, 1, 1], [], []>} : vector<25x256xbf16>, vector<256x128xbf16>, vector<25x128xf32> -> vector<25x128xf32>
    %c0_12 = arith.constant 0 : index
    %c0_13 = arith.constant 0 : index
    %c0_14 = arith.constant 0 : index
    %11 = vector.load %arg4[%c0_12, %c0_13, %c0_14] : memref<1x25x256xbf16, #tpu.memory_space<vmem>>, vector<1x25x256xbf16>
    %12 = vector.shape_cast %11 : vector<1x25x256xbf16> to vector<25x256xbf16>
    %cst_15 = arith.constant dense<0.000000e+00> : vector<25x128xf32>
    %13 = tpu.matmul %12, %0, %cst_15 {dimension_numbers = #tpu.dot_dimension_numbers<[1], [0], [0], [1], [0, 0, 1, 1], [], []>} : vector<25x256xbf16>, vector<256x128xbf16>, vector<25x128xf32> -> vector<25x128xf32>
    %14 = arith.maximumf %10, %13 : vector<25x128xf32>
    %15 = arith.maximumf %7, %14 : vector<25x128xf32>
    %c0_16 = arith.constant 0 : index
    %c0_17 = arith.constant 0 : index
    %16 = vector.load %arg6[%c0_16, %c0_17] : memref<1x128xf32, #tpu.memory_space<vmem>>, vector<1x128xf32>
    %17 = vector.broadcast %16 : vector<1x128xf32> to vector<25x128xf32>
    %18 = arith.addf %15, %17 : vector<25x128xf32>
    %cst_18 = arith.constant 0.000000e+00 : f32
    %19 = vector.broadcast %cst_18 : f32 to vector<25x128xf32>
    %20 = arith.maximumf %18, %19 : vector<25x128xf32>
    %21 = arith.truncf %20 : vector<25x128xf32> to vector<25x128xbf16>
    %c0_19 = arith.constant 0 : index
    %c0_20 = arith.constant 0 : index
    %c0_21 = arith.constant 0 : index
    %22 = vector.load %arg7[%c0_19, %c0_20, %c0_21] : memref<1x25x128xbf16, #tpu.memory_space<vmem>>, vector<1x25x128xbf16>
    %23 = vector.shape_cast %22 : vector<1x25x128xbf16> to vector<25x128xbf16>
    %24 = vector.shape_cast %21 : vector<25x128xbf16> to vector<1x25x128xbf16>
    tpu.vector_store %arg7[%c0_19, %c0_20, %c0_21], %24 {strides = array<i32>} : memref<1x25x128xbf16, #tpu.memory_space<vmem>>, vector<1x25x128xbf16>,
    return
  }
  func.func @transform_0(%arg0: i32) -> (i32, i32, i32) {
    %c0_i32 = arith.constant 0 : i32
    %c0_i32_0 = arith.constant 0 : i32
    %c0_i32_1 = arith.constant 0 : i32
    return %arg0, %c0_i32, %c0_i32_0 : i32, i32, i32
  }
  func.func @transform_1(%arg0: i32) -> (i32, i32, i32) {
    %c0_i32 = arith.constant 0 : i32
    %c0_i32_0 = arith.constant 0 : i32
    %c0_i32_1 = arith.constant 0 : i32
    return %arg0, %c0_i32, %c0_i32_0 : i32, i32, i32
  }
  func.func @transform_2(%arg0: i32) -> (i32, i32, i32) {
    %c0_i32 = arith.constant 0 : i32
    %c0_i32_0 = arith.constant 0 : i32
    %c0_i32_1 = arith.constant 0 : i32
    return %arg0, %c0_i32, %c0_i32_0 : i32, i32, i32
  }
  func.func @transform_3(%arg0: i32) -> (i32, i32, i32) {
    %c0_i32 = arith.constant 0 : i32
    %c0_i32_0 = arith.constant 0 : i32
    %c0_i32_1 = arith.constant 0 : i32
    return %arg0, %c0_i32, %c0_i32_0 : i32, i32, i32
  }
  func.func @transform_4(%arg0: i32) -> (i32, i32) {
    %c0_i32 = arith.constant 0 : i32
    %c0_i32_0 = arith.constant 0 : i32
    %c0_i32_1 = arith.constant 0 : i32
    return %c0_i32, %c0_i32_0 : i32, i32
  }
  func.func @transform_5(%arg0: i32) -> (i32, i32) {
    %c0_i32 = arith.constant 0 : i32
    %c0_i32_0 = arith.constant 0 : i32
    %c0_i32_1 = arith.constant 0 : i32
    return %c0_i32, %c0_i32_0 : i32, i32
  }
  func.func @transform_6(%arg0: i32) -> (i32, i32, i32) {
    %c0_i32 = arith.constant 0 : i32
    %c0_i32_0 = arith.constant 0 : i32
    %c0_i32_1 = arith.constant 0 : i32
    return %arg0, %c0_i32, %c0_i32_0 : i32, i32, i32
  }
}

module attributes {stable_mosaic.version = 11 : i64} {
  func.func @_fc_chain_kernel(%arg0: i32, %arg1: memref<2x3200xbf16, #tpu.memory_space<vmem>>, %arg2: memref<3200x128xbf16, #tpu.memory_space<vmem>>, %arg3: memref<1x128xf32, #tpu.memory_space<vmem>>, %arg4: memref<128x128xbf16, #tpu.memory_space<vmem>>, %arg5: memref<1x128xf32, #tpu.memory_space<vmem>>, %arg6: memref<128x128xbf16, #tpu.memory_space<vmem>>, %arg7: memref<1x128xf32, #tpu.memory_space<vmem>>, %arg8: memref<2x128xf32, #tpu.memory_space<vmem>>) attributes {dimension_semantics = [#tpu.dimension_semantics<arbitrary>], iteration_bounds = array<i64: 1>, scalar_prefetch = 0 : i64, scratch_operands = 0 : i64, tpu.core_type = #tpu.core_type<tc>, window_params = [{pipeline_mode = #tpu.pipeline_mode<synchronous>, transform_indices = @transform_0, window_bounds = array<i64: 2, 3200>}, {pipeline_mode = #tpu.pipeline_mode<synchronous>, transform_indices = @transform_1, window_bounds = array<i64: 3200, 128>}, {pipeline_mode = #tpu.pipeline_mode<synchronous>, transform_indices = @transform_2, window_bounds = array<i64: 1, 128>}, {pipeline_mode = #tpu.pipeline_mode<synchronous>, transform_indices = @transform_3, window_bounds = array<i64: 128, 128>}, {pipeline_mode = #tpu.pipeline_mode<synchronous>, transform_indices = @transform_4, window_bounds = array<i64: 1, 128>}, {pipeline_mode = #tpu.pipeline_mode<synchronous>, transform_indices = @transform_5, window_bounds = array<i64: 128, 128>}, {pipeline_mode = #tpu.pipeline_mode<synchronous>, transform_indices = @transform_6, window_bounds = array<i64: 1, 128>}, {pipeline_mode = #tpu.pipeline_mode<synchronous>, transform_indices = @transform_7, window_bounds = array<i64: 2, 128>}]} {
    %c0 = arith.constant 0 : index
    %c0_0 = arith.constant 0 : index
    %0 = vector.load %arg1[%c0, %c0_0] : memref<2x3200xbf16, #tpu.memory_space<vmem>>, vector<2x3200xbf16>
    %c0_1 = arith.constant 0 : index
    %c0_2 = arith.constant 0 : index
    %1 = vector.load %arg2[%c0_1, %c0_2] : memref<3200x128xbf16, #tpu.memory_space<vmem>>, vector<3200x128xbf16>
    %cst = arith.constant dense<0.000000e+00> : vector<2x128xf32>
    %2 = tpu.matmul %0, %1, %cst {dimension_numbers = #tpu.dot_dimension_numbers<[1], [0], [0], [1], [0, 0, 1, 1], [], []>} : vector<2x3200xbf16>, vector<3200x128xbf16>, vector<2x128xf32> -> vector<2x128xf32>
    %c0_3 = arith.constant 0 : index
    %c0_4 = arith.constant 0 : index
    %3 = vector.load %arg3[%c0_3, %c0_4] : memref<1x128xf32, #tpu.memory_space<vmem>>, vector<1x128xf32>
    %4 = vector.broadcast %3 : vector<1x128xf32> to vector<2x128xf32>
    %5 = arith.addf %2, %4 : vector<2x128xf32>
    %cst_5 = arith.constant 0.000000e+00 : f32
    %6 = vector.broadcast %cst_5 : f32 to vector<2x128xf32>
    %7 = arith.maximumf %5, %6 : vector<2x128xf32>
    %8 = arith.truncf %7 : vector<2x128xf32> to vector<2x128xbf16>
    %c0_6 = arith.constant 0 : index
    %c0_7 = arith.constant 0 : index
    %9 = vector.load %arg4[%c0_6, %c0_7] : memref<128x128xbf16, #tpu.memory_space<vmem>>, vector<128x128xbf16>
    %cst_8 = arith.constant dense<0.000000e+00> : vector<2x128xf32>
    %10 = tpu.matmul %8, %9, %cst_8 {dimension_numbers = #tpu.dot_dimension_numbers<[1], [0], [0], [1], [0, 0, 1, 1], [], []>} : vector<2x128xbf16>, vector<128x128xbf16>, vector<2x128xf32> -> vector<2x128xf32>
    %c0_9 = arith.constant 0 : index
    %c0_10 = arith.constant 0 : index
    %11 = vector.load %arg5[%c0_9, %c0_10] : memref<1x128xf32, #tpu.memory_space<vmem>>, vector<1x128xf32>
    %12 = vector.broadcast %11 : vector<1x128xf32> to vector<2x128xf32>
    %13 = arith.addf %10, %12 : vector<2x128xf32>
    %cst_11 = arith.constant 0.000000e+00 : f32
    %14 = vector.broadcast %cst_11 : f32 to vector<2x128xf32>
    %15 = arith.maximumf %13, %14 : vector<2x128xf32>
    %16 = arith.truncf %15 : vector<2x128xf32> to vector<2x128xbf16>
    %c0_12 = arith.constant 0 : index
    %c0_13 = arith.constant 0 : index
    %17 = vector.load %arg6[%c0_12, %c0_13] : memref<128x128xbf16, #tpu.memory_space<vmem>>, vector<128x128xbf16>
    %cst_14 = arith.constant dense<0.000000e+00> : vector<2x128xf32>
    %18 = tpu.matmul %16, %17, %cst_14 {dimension_numbers = #tpu.dot_dimension_numbers<[1], [0], [0], [1], [0, 0, 1, 1], [], []>} : vector<2x128xbf16>, vector<128x128xbf16>, vector<2x128xf32> -> vector<2x128xf32>
    %c0_15 = arith.constant 0 : index
    %c0_16 = arith.constant 0 : index
    %19 = vector.load %arg7[%c0_15, %c0_16] : memref<1x128xf32, #tpu.memory_space<vmem>>, vector<1x128xf32>
    %20 = vector.broadcast %19 : vector<1x128xf32> to vector<2x128xf32>
    %21 = arith.addf %18, %20 : vector<2x128xf32>
    %c0_17 = arith.constant 0 : index
    %c0_18 = arith.constant 0 : index
    %22 = vector.load %arg8[%c0_17, %c0_18] : memref<2x128xf32, #tpu.memory_space<vmem>>, vector<2x128xf32>
    tpu.vector_store %arg8[%c0_17, %c0_18], %21 {strides = array<i32>} : memref<2x128xf32, #tpu.memory_space<vmem>>, vector<2x128xf32>,
    return
  }
  func.func @transform_0(%arg0: i32) -> (i32, i32) {
    %c0_i32 = arith.constant 0 : i32
    %c0_i32_0 = arith.constant 0 : i32
    %c0_i32_1 = arith.constant 0 : i32
    return %c0_i32, %c0_i32_0 : i32, i32
  }
  func.func @transform_1(%arg0: i32) -> (i32, i32) {
    %c0_i32 = arith.constant 0 : i32
    %c0_i32_0 = arith.constant 0 : i32
    %c0_i32_1 = arith.constant 0 : i32
    return %c0_i32, %c0_i32_0 : i32, i32
  }
  func.func @transform_2(%arg0: i32) -> (i32, i32) {
    %c0_i32 = arith.constant 0 : i32
    %c0_i32_0 = arith.constant 0 : i32
    %c0_i32_1 = arith.constant 0 : i32
    return %c0_i32, %c0_i32_0 : i32, i32
  }
  func.func @transform_3(%arg0: i32) -> (i32, i32) {
    %c0_i32 = arith.constant 0 : i32
    %c0_i32_0 = arith.constant 0 : i32
    %c0_i32_1 = arith.constant 0 : i32
    return %c0_i32, %c0_i32_0 : i32, i32
  }
  func.func @transform_4(%arg0: i32) -> (i32, i32) {
    %c0_i32 = arith.constant 0 : i32
    %c0_i32_0 = arith.constant 0 : i32
    %c0_i32_1 = arith.constant 0 : i32
    return %c0_i32, %c0_i32_0 : i32, i32
  }
  func.func @transform_5(%arg0: i32) -> (i32, i32) {
    %c0_i32 = arith.constant 0 : i32
    %c0_i32_0 = arith.constant 0 : i32
    %c0_i32_1 = arith.constant 0 : i32
    return %c0_i32, %c0_i32_0 : i32, i32
  }
  func.func @transform_6(%arg0: i32) -> (i32, i32) {
    %c0_i32 = arith.constant 0 : i32
    %c0_i32_0 = arith.constant 0 : i32
    %c0_i32_1 = arith.constant 0 : i32
    return %c0_i32, %c0_i32_0 : i32, i32
  }
  func.func @transform_7(%arg0: i32) -> (i32, i32) {
    %c0_i32 = arith.constant 0 : i32
    %c0_i32_0 = arith.constant 0 : i32
    %c0_i32_1 = arith.constant 0 : i32
    return %c0_i32, %c0_i32_0 : i32, i32
  }
}

</mosaic_0001>

<llo_original>
// kernel: _lenet_forward.3
$region0: #{_lenet_forward.3}
  #allocation0 [shape = 'u32[]', space=smem, size = 0x4, offset = 0x4, fixed_abs, tag = 'smem constant byte address 0x4 - core index']
  #allocation1 [shape = 'u32[144,128]{1,0:T(1,128)}', space=vmem, size = 0x12000, scoped, tag = 'internal scratch']
  %s0 = inlined_call_operand.vmem [shape: bf16[2,196,128], index: 0, kind: input, shape index: {}]
  %s1 = inlined_call_operand.vmem [shape: bf16[2,196,128], index: 1, kind: input, shape index: {}]
  %s2 = inlined_call_operand.vmem [shape: bf16[2,196,128], index: 2, kind: input, shape index: {}]
  %s3 = inlined_call_operand.vmem [shape: bf16[2,196,128], index: 3, kind: input, shape index: {}]
  %s4 = inlined_call_operand.vmem [shape: bf16[128,128], index: 4, kind: input, shape index: {}]
  %s5 = inlined_call_operand.vmem [shape: f32[1,128], index: 5, kind: input, shape index: {}]
  %s6 = inlined_call_operand.vmem [shape: bf16[2,196,128], index: 6, kind: output, shape index: {}]
  %s7 = sld [smem:[#allocation0]]
  $region57: #{_lenet_forward.3} parent=0
    _
  %s9 = ssub.s32 1, %s7
  %s10 = scalar_select 0, %s9, %s7
  loop: start=0, step=1, limit=4
  $region2: #{_lenet_forward.3} parent=0 // loop_pre_header
    _
  $region3: #{_lenet_forward.3} parent=0 // loop_header
    %s12 = sphi 0, %s16
    %p13 = scmp.ge.s32.totalorder %s12, 4
    %s22 = sphi 0, %s24
    %s25 = sphi 0, %s22
    %s26 = sphi 0, %s25
    %s42 = sphi 0, %s26
    %s48 = sphi 0, %s50
    %s51 = sphi 0, %s48
    %s52 = sphi 0, %s51
    %s68 = sphi 0, %s52
    %s74 = sphi 0, %s76
    %s77 = sphi 0, %s74
    %s78 = sphi 0, %s77
    %s94 = sphi 0, %s78
    %s100 = sphi 0, %s102
    %s103 = sphi 0, %s100
    %s104 = sphi 0, %s103
    %s120 = sphi 0, %s104
    %s124 = sphi 0, %s124
    %s126 = sphi 0, %s124
    %s127 = sphi 0, %s126
    %s141 = sphi 0, %s127
    %s145 = sphi 0, %s145
    %s147 = sphi 0, %s145
    %s148 = sphi 0, %s147
    %s162 = sphi 0, %s148
    %s168 = sphi 0, %s170
    %s171 = sphi 0, %s168
    %s172 = sphi 0, %s171
    %s188 = sphi 0, %s172
  $region4: #{_lenet_forward.3} parent=0 // loop_header_branch
    %15 = sbr.rel (%p13) target = $region8
  $region5: #{_lenet_forward.3} parent=0 // loop_body
    %s17 = ssub.s32 %s12, 1
    %s18 = ssub.s32 %s12, 2
    %s19 = sadd.s32 %s12, 1
    %s20 = ssub.s32 %s12, %s19
    %p21 = scmp.eq.s32.totalorder %s20, 0
    %s23 = sadd.s32 %s22, 1
    %s24 = scalar_select %p21, %s22, %s23
    %p27 = pneg %p21
    %p28 = scmp.eq.s32.totalorder %s12, 1
    %p29 = por %p27, %p28
    %p30 = scmp.ne.s32.totalorder %s22, %s25
    %p31 = scmp.eq.s32.totalorder %s12, 0
    %p32 = por %p30, %p31
    %p33 = scmp.ne.s32.totalorder %s22, %s25
    %p34 = scmp.eq.s32.totalorder %s17, 1
    %p35 = por %p33, %p34
    %p36 = scmp.ne.s32.totalorder %s25, %s26
    %p37 = scmp.eq.s32.totalorder %s17, 0
    %p38 = por %p36, %p37
    %p39 = scmp.ne.s32.totalorder %s25, %s26
    %p40 = scmp.eq.s32.totalorder %s18, 1
    %p41 = por %p39, %p40
    %p43 = scmp.ne.s32.totalorder %s26, %s42
    %p44 = scmp.eq.s32.totalorder %s18, 0
    %p45 = por %p43, %p44
    %s46 = ssub.s32 %s12, %s19
    %p47 = scmp.eq.s32.totalorder %s46, 0
    %s49 = sadd.s32 %s48, 1
    %s50 = scalar_select %p47, %s48, %s49
    %p53 = pneg %p47
    %p54 = scmp.eq.s32.totalorder %s12, 1
    %p55 = por %p53, %p54
    %p56 = scmp.ne.s32.totalorder %s48, %s51
    %p57 = scmp.eq.s32.totalorder %s12, 0
    %p58 = por %p56, %p57
    %p59 = scmp.ne.s32.totalorder %s48, %s51
    %p60 = scmp.eq.s32.totalorder %s17, 1
    %p61 = por %p59, %p60
    %p62 = scmp.ne.s32.totalorder %s51, %s52
    %p63 = scmp.eq.s32.totalorder %s17, 0
    %p64 = por %p62, %p63
    %p65 = scmp.ne.s32.totalorder %s51, %s52
    %p66 = scmp.eq.s32.totalorder %s18, 1
    %p67 = por %p65, %p66
    %p69 = scmp.ne.s32.totalorder %s52, %s68
    %p70 = scmp.eq.s32.totalorder %s18, 0
    %p71 = por %p69, %p70
    %s72 = ssub.s32 %s12, %s19
    %p73 = scmp.eq.s32.totalorder %s72, 0
    %s75 = sadd.s32 %s74, 1
    %s76 = scalar_select %p73, %s74, %s75
    %p79 = pneg %p73
    %p80 = scmp.eq.s32.totalorder %s12, 1
    %p81 = por %p79, %p80
    %p82 = scmp.ne.s32.totalorder %s74, %s77
    %p83 = scmp.eq.s32.totalorder %s12, 0
    %p84 = por %p82, %p83
    %p85 = scmp.ne.s32.totalorder %s74, %s77
    %p86 = scmp.eq.s32.totalorder %s17, 1
    %p87 = por %p85, %p86
    %p88 = scmp.ne.s32.totalorder %s77, %s78
    %p89 = scmp.eq.s32.totalorder %s17, 0
    %p90 = por %p88, %p89
    %p91 = scmp.ne.s32.totalorder %s77, %s78
    %p92 = scmp.eq.s32.totalorder %s18, 1
    %p93 = por %p91, %p92
    %p95 = scmp.ne.s32.totalorder %s78, %s94
    %p96 = scmp.eq.s32.totalorder %s18, 0
    %p97 = por %p95, %p96
    %s98 = ssub.s32 %s12, %s19
    %p99 = scmp.eq.s32.totalorder %s98, 0
    %s101 = sadd.s32 %s100, 1
    %s102 = scalar_select %p99, %s100, %s101
    %p105 = pneg %p99
    %p106 = scmp.eq.s32.totalorder %s12, 1
    %p107 = por %p105, %p106
    %p108 = scmp.ne.s32.totalorder %s100, %s103
    %p109 = scmp.eq.s32.totalorder %s12, 0
    %p110 = por %p108, %p109
    %p111 = scmp.ne.s32.totalorder %s100, %s103
    %p112 = scmp.eq.s32.totalorder %s17, 1
    %p113 = por %p111, %p112
    %p114 = scmp.ne.s32.totalorder %s103, %s104
    %p115 = scmp.eq.s32.totalorder %s17, 0
    %p116 = por %p114, %p115
    %p117 = scmp.ne.s32.totalorder %s103, %s104
    %p118 = scmp.eq.s32.totalorder %s18, 1
    %p119 = por %p117, %p118
    %p121 = scmp.ne.s32.totalorder %s104, %s120
    %p122 = scmp.eq.s32.totalorder %s18, 0
    %p123 = por %p121, %p122
    %s125 = sadd.s32 %s124, 1
    %p128 = scmp.eq.s32.totalorder %s12, 1
    %p129 = scmp.ne.s32.totalorder %s124, %s126
    %p130 = scmp.eq.s32.totalorder %s12, 0
    %p131 = por %p129, %p130
    %p132 = scmp.ne.s32.totalorder %s124, %s126
    %p133 = scmp.eq.s32.totalorder %s17, 1
    %p134 = por %p132, %p133
    %p135 = scmp.ne.s32.totalorder %s126, %s127
    %p136 = scmp.eq.s32.totalorder %s17, 0
    %p137 = por %p135, %p136
    %p138 = scmp.ne.s32.totalorder %s126, %s127
    %p139 = scmp.eq.s32.totalorder %s18, 1
    %p140 = por %p138, %p139
    %p142 = scmp.ne.s32.totalorder %s127, %s141
    %p143 = scmp.eq.s32.totalorder %s18, 0
    %p144 = por %p142, %p143
    %s146 = sadd.s32 %s145, 1
    %p149 = scmp.eq.s32.totalorder %s12, 1
    %p150 = scmp.ne.s32.totalorder %s145, %s147
    %p151 = scmp.eq.s32.totalorder %s12, 0
    %p152 = por %p150, %p151
    %p153 = scmp.ne.s32.totalorder %s145, %s147
    %p154 = scmp.eq.s32.totalorder %s17, 1
    %p155 = por %p153, %p154
    %p156 = scmp.ne.s32.totalorder %s147, %s148
    %p157 = scmp.eq.s32.totalorder %s17, 0
    %p158 = por %p156, %p157
    %p159 = scmp.ne.s32.totalorder %s147, %s148
    %p160 = scmp.eq.s32.totalorder %s18, 1
    %p161 = por %p159, %p160
    %p163 = scmp.ne.s32.totalorder %s148, %s162
    %p164 = scmp.eq.s32.totalorder %s18, 0
    %p165 = por %p163, %p164
    %s166 = ssub.s32 %s12, %s19
    %p167 = scmp.eq.s32.totalorder %s166, 0
    %s169 = sadd.s32 %s168, 1
    %s170 = scalar_select %p167, %s168, %s169
    %p173 = pneg %p167
    %p174 = scmp.eq.s32.totalorder %s12, 1
    %p175 = por %p173, %p174
    %p176 = scmp.ne.s32.totalorder %s168, %s171
    %p177 = scmp.eq.s32.totalorder %s12, 0
    %p178 = por %p176, %p177
    %p179 = scmp.ne.s32.totalorder %s168, %s171
    %p180 = scmp.eq.s32.totalorder %s17, 1
    %p181 = por %p179, %p180
    %p182 = scmp.ne.s32.totalorder %s171, %s172
    %p183 = scmp.eq.s32.totalorder %s17, 0
    %p184 = por %p182, %p183
    %p185 = scmp.ne.s32.totalorder %s171, %s172
    %p186 = scmp.eq.s32.totalorder %s18, 1
    %p187 = por %p185, %p186
    %p189 = scmp.ne.s32.totalorder %s172, %s188
    %p190 = scmp.eq.s32.totalorder %s18, 0
    %p191 = por %p189, %p190
    %p192 = scmp.le.s32.totalorder 1, %s12
    %p193 = scmp.lt.s32.totalorder %s12, 3
    %p194 = pnand %p192, %p193
    %p195 = pneg %p194
    // Predicated region
    $region9: #{_lenet_forward.3} parent=5 // pred_check
      _
    $region10: #{_lenet_forward.3} parent=5 // pred_check_branch
      %197 = sbr.rel (%p194) target = $region12
    $region11: #{_lenet_forward.3} parent=5 // pred_region
      %s198 = ssub.s32 %s12, 1
      // Predicated region
      $region13: #{_lenet_forward.3} parent=11 // pred_check
        %p199 = pneg %p137
      $region14: #{_lenet_forward.3} parent=11 // pred_check_branch
        %201 = sbr.rel (%p199) target = $region16
      $region15: #{_lenet_forward.3} parent=11 // pred_region
        _
      $region16: #{_lenet_forward.3} parent=11 // pred_fallthru
        _
      // Predicated region
      $region17: #{_lenet_forward.3} parent=11 // pred_check
        %p202 = pneg %p158
      $region18: #{_lenet_forward.3} parent=11 // pred_check_branch
        %204 = sbr.rel (%p202) target = $region20
      $region19: #{_lenet_forward.3} parent=11 // pred_region
        _
      $region20: #{_lenet_forward.3} parent=11 // pred_fallthru
        _
    $region12: #{_lenet_forward.3} parent=5 // pred_fallthru
      _
    %p205 = scmp.lt.s32.totalorder %s12, 2
    // Predicated region
    $region21: #{_lenet_forward.3} parent=5 // pred_check
      %p206 = pneg %p205
    $region22: #{_lenet_forward.3} parent=5 // pred_check_branch
      %208 = sbr.rel (%p206) target = $region24
    $region23: #{_lenet_forward.3} parent=5 // pred_region
      // Predicated region
      $region25: #{_lenet_forward.3} parent=23 // pred_check
        %p209 = pneg %p32
      $region26: #{_lenet_forward.3} parent=23 // pred_check_branch
        %211 = sbr.rel (%p209) target = $region28
      $region27: #{_lenet_forward.3} parent=23 // pred_region
        %p212 = scmp.lt.s32.totalorder %s12, 1
        %s213 = scalar_select %p212, %s12, 1
        %s214 = smul.addr %s213, 25
        %s215 = smul.addr %s214, 4
        %s216 = scalar_lea.vmem %s0, %s215
      $region28: #{_lenet_forward.3} parent=23 // pred_fallthru
        _
      // Predicated region
      $region29: #{_lenet_forward.3} parent=23 // pred_check
        %p217 = pneg %p58
      $region30: #{_lenet_forward.3} parent=23 // pred_check_branch
        %219 = sbr.rel (%p217) target = $region32
      $region31: #{_lenet_forward.3} parent=23 // pred_region
        %p220 = scmp.lt.s32.totalorder %s12, 1
        %s221 = scalar_select %p220, %s12, 1
        %s222 = smul.addr %s221, 25
        %s223 = smul.addr %s222, 4
        %s224 = scalar_lea.vmem %s1, %s223
      $region32: #{_lenet_forward.3} parent=23 // pred_fallthru
        _
      // Predicated region
      $region33: #{_lenet_forward.3} parent=23 // pred_check
        %p225 = pneg %p84
      $region34: #{_lenet_forward.3} parent=23 // pred_check_branch
        %227 = sbr.rel (%p225) target = $region36
      $region35: #{_lenet_forward.3} parent=23 // pred_region
        %p228 = scmp.lt.s32.totalorder %s12, 1
        %s229 = scalar_select %p228, %s12, 1
        %s230 = smul.addr %s229, 25
        %s231 = smul.addr %s230, 4
        %s232 = scalar_lea.vmem %s2, %s231
      $region36: #{_lenet_forward.3} parent=23 // pred_fallthru
        _
      // Predicated region
      $region37: #{_lenet_forward.3} parent=23 // pred_check
        %p233 = pneg %p110
      $region38: #{_lenet_forward.3} parent=23 // pred_check_branch
        %235 = sbr.rel (%p233) target = $region40
      $region39: #{_lenet_forward.3} parent=23 // pred_region
        %p236 = scmp.lt.s32.totalorder %s12, 1
        %s237 = scalar_select %p236, %s12, 1
        %s238 = smul.addr %s237, 25
        %s239 = smul.addr %s238, 4
        %s240 = scalar_lea.vmem %s3, %s239
      $region40: #{_lenet_forward.3} parent=23 // pred_fallthru
        _
    $region24: #{_lenet_forward.3} parent=5 // pred_fallthru
      _
    %p241 = scmp.le.s32.totalorder 1, %s12
    %p242 = scmp.lt.s32.totalorder %s12, 3
    %p243 = pnand %p241, %p242
    %p244 = pneg %p243
    // Predicated region
    $region41: #{_lenet_forward.3} parent=5 // pred_check
      _
    $region42: #{_lenet_forward.3} parent=5 // pred_check_branch
      %246 = sbr.rel (%p243) target = $region44
    $region43: #{_lenet_forward.3} parent=5 // pred_region
      %s247 = ssub.s32 %s12, 1
      %p248 = scmp.lt.s32.totalorder %s17, 1
      %s249 = scalar_select %p248, %s17, 1
      %s250 = smul.addr %s249, 25
      %s251 = smul.addr %s250, 4
      %s252 = scalar_lea.vmem %s0, %s251
      %p253 = pneg %p38
      %p254 = pneg %p35
      %p255 = scmp.lt.s32.totalorder %s17, 1
      %s256 = scalar_select %p255, %s17, 1
      %s257 = smul.addr %s256, 25
      %s258 = smul.addr %s257, 4
      %s259 = scalar_lea.vmem %s1, %s258
      %p260 = pneg %p64
      %p261 = pneg %p61
      %p262 = scmp.lt.s32.totalorder %s17, 1
      %s263 = scalar_select %p262, %s17, 1
      %s264 = smul.addr %s263, 25
      %s265 = smul.addr %s264, 4
      %s266 = scalar_lea.vmem %s2, %s265
      %p267 = pneg %p90
      %p268 = pneg %p87
      %p269 = scmp.lt.s32.totalorder %s17, 1
      %s270 = scalar_select %p269, %s17, 1
      %s271 = smul.addr %s270, 25
      %s272 = smul.addr %s271, 4
      %s273 = scalar_lea.vmem %s3, %s272
      %p274 = pneg %p116
      %p275 = pneg %p113
      %p276 = pneg %p137
      %p277 = pneg %p134
      %p278 = pneg %p158
      %p279 = pneg %p155
      %p280 = pneg %p184
      %p281 = pneg %p181
      %p282 = scmp.lt.s32.totalorder %s17, 1
      %s283 = scalar_select %p282, %s17, 1
      %s284 = smul.addr %s283, 25
      %s285 = smul.addr %s284, 4
      %s286 = scalar_lea.vmem %s6, %s285
      %p287 = scmp.lt.s32.totalorder %s17, 1
      %s288 = scalar_select %p287, %s17, 1
      %s289 = smul.addr %s288, 25
      %s290 = smul.addr %s289, 4
      %s291 = scalar_lea.vmem %s0, %s290
      %p292 = scmp.lt.s32.totalorder %s17, 1
      %s293 = scalar_select %p292, %s17, 1
      %s294 = smul.addr %s293, 25
      %s295 = smul.addr %s294, 4
      %s296 = scalar_lea.vmem %s1, %s295
      %p297 = scmp.lt.s32.totalorder %s17, 1
      %s298 = scalar_select %p297, %s17, 1
      %s299 = smul.addr %s298, 25
      %s300 = smul.addr %s299, 4
      %s301 = scalar_lea.vmem %s2, %s300
      %p302 = scmp.lt.s32.totalorder %s17, 1
      %s303 = scalar_select %p302, %s17, 1
      %s304 = smul.addr %s303, 25
      %s305 = smul.addr %s304, 4
      %s306 = scalar_lea.vmem %s3, %s305
      %p307 = scmp.lt.s32.totalorder %s17, 1
      %s308 = scalar_select %p307, %s17, 1
      %s309 = smul.addr %s308, 25
      %s310 = smul.addr %s309, 4
      %s311 = scalar_lea.vmem %s6, %s310
      %v313 = vld [vmem:[%s4] sm:$0xf]
      %v314 = vld [vmem:[%s4 + $0x4] sm:$0xf]
      %v315 = vld [vmem:[%s4 + $0x8] sm:$0xf]
      %v316 = vld [vmem:[%s4 + $0xc] sm:$0xf]
      %v317 = vld [vmem:[%s4 + $0x10] sm:$0xf]
      %v318 = vld [vmem:[%s4 + $0x14] sm:$0xf]
      %v319 = vld [vmem:[%s4 + $0x18] sm:$0xf]
      %v320 = vld [vmem:[%s4 + $0x1c] sm:$0xf]
      %v321 = vld [vmem:[%s4 + $0x20] sm:$0xf]
      %v322 = vld [vmem:[%s4 + $0x24] sm:$0xf]
      %v323 = vld [vmem:[%s4 + $0x28] sm:$0xf]
      %v324 = vld [vmem:[%s4 + $0x2c] sm:$0xf]
      %v325 = vld [vmem:[%s4 + $0x30] sm:$0xf]
      %v326 = vld [vmem:[%s4 + $0x34] sm:$0xf]
      %v327 = vld [vmem:[%s4 + $0x38] sm:$0xf]
      %v328 = vld [vmem:[%s4 + $0x3c] sm:$0xf]
      %v329 = vld [vmem:[%s291] sm:$0xf]
      %v330 = vld [vmem:[%s291 + $0x4] sm:$0xf]
      %v331 = vld [vmem:[%s291 + $0x8] sm:$0xf]
      %v332 = vld [vmem:[%s291 + $0xc] sm:$0xf]
      %v333 = vld [vmem:[%s291 + $0x10] sm:$0xf]
      %v334 = vld [vmem:[%s291 + $0x14] sm:$0xf]
      %v335 = vld [vmem:[%s291 + $0x18] sm:$0xf]
      %v336 = vld [vmem:[%s291 + $0x1c] sm:$0xf]
      %v337 = vld [vmem:[%s291 + $0x20] sm:$0xf]
      %v338 = vld [vmem:[%s291 + $0x24] sm:$0xf]
      %v339 = vld [vmem:[%s291 + $0x28] sm:$0xf]
      %v340 = vld [vmem:[%s291 + $0x2c] sm:$0xf]
      %v341 = vld [vmem:[%s291 + $0x30] sm:$0xf]
      %v342 = vld [vmem:[%s291 + $0x34] sm:$0xf]
      %v343 = vld [vmem:[%s291 + $0x38] sm:$0xf]
      %v344 = vld [vmem:[%s291 + $0x3c] sm:$0xf]
      %v345 = vld [vmem:[%s291 + $0x40] sm:$0xf]
      %v346 = vld [vmem:[%s291 + $0x44] sm:$0xf]
      %v347 = vld [vmem:[%s291 + $0x48] sm:$0xf]
      %v348 = vld [vmem:[%s291 + $0x4c] sm:$0xf]
      %v349 = vld [vmem:[%s291 + $0x50] sm:$0xf]
      %v350 = vld [vmem:[%s291 + $0x54] sm:$0xf]
      %v351 = vld [vmem:[%s291 + $0x58] sm:$0xf]
      %v352 = vld [vmem:[%s291 + $0x5c] sm:$0xf]
      %v353 = vld [vmem:[%s291 + $0x60] sm:$0x3]
      %v379 = vunpack.c.l.b16 %v329
      %v380 = vunpack.c.l.b16 %v330
      %v381 = vunpack.c.l.b16 %v331
      %v382 = vunpack.c.l.b16 %v332
      %v383 = vunpack.c.l.b16 %v333
      %v384 = vunpack.c.l.b16 %v334
      %v385 = vunpack.c.l.b16 %v335
      %v386 = vunpack.c.l.b16 %v336
      %v387 = vunpack.c.l.b16 %v337
      %v388 = vunpack.c.l.b16 %v338
      %v389 = vunpack.c.l.b16 %v339
      %v390 = vunpack.c.l.b16 %v340
      %v391 = vunpack.c.l.b16 %v341
      %v392 = vunpack.c.l.b16 %v342
      %v393 = vunpack.c.l.b16 %v343
      %v394 = vunpack.c.l.b16 %v344
      %v395 = vunpack.c.l.b16 %v345
      %v396 = vunpack.c.l.b16 %v346
      %v397 = vunpack.c.l.b16 %v347
      %v398 = vunpack.c.l.b16 %v348
      %v399 = vunpack.c.l.b16 %v349
      %v400 = vunpack.c.l.b16 %v350
      %v401 = vunpack.c.l.b16 %v351
      %v402 = vunpack.c.l.b16 %v352
      %v403 = vunpack.c.l.b16 %v353
      %v404 = vpack.c.b16 %v380, %v379
      %v405 = vpack.c.b16 %v382, %v381
      %v406 = vpack.c.b16 %v384, %v383
      %v407 = vpack.c.b16 %v386, %v385
      %v408 = vpack.c.b16 %v388, %v387
      %v409 = vpack.c.b16 %v390, %v389
      %v410 = vpack.c.b16 %v392, %v391
      %v411 = vpack.c.b16 %v394, %v393
      %v412 = vpack.c.b16 %v396, %v395
      %v413 = vpack.c.b16 %v398, %v397
      %v414 = vpack.c.b16 %v400, %v399
      %v415 = vpack.c.b16 %v402, %v401
      %v416 = vpack.c.b16 %v403, %v403
      %v446 = vunpack.c.l.b16 %v313
      %v447 = vunpack.c.l.b16 %v314
      %v448 = vunpack.c.l.b16 %v315
      %v449 = vunpack.c.l.b16 %v316
      %v450 = vunpack.c.l.b16 %v317
      %v451 = vunpack.c.l.b16 %v318
      %v452 = vunpack.c.l.b16 %v319
      %v453 = vunpack.c.l.b16 %v320
      %v454 = vunpack.c.l.b16 %v321
      %v455 = vunpack.c.l.b16 %v322
      %v456 = vunpack.c.l.b16 %v323
      %v457 = vunpack.c.l.b16 %v324
      %v458 = vunpack.c.l.b16 %v325
      %v459 = vunpack.c.l.b16 %v326
      %v460 = vunpack.c.l.b16 %v327
      %v461 = vunpack.c.l.b16 %v328
      %v462 = vpack.c.b16 %v447, %v446
      %v463 = vpack.c.b16 %v449, %v448
      %v464 = vpack.c.b16 %v451, %v450
      %v465 = vpack.c.b16 %v453, %v452
      %v466 = vpack.c.b16 %v455, %v454
      %v467 = vpack.c.b16 %v457, %v456
      %v468 = vpack.c.b16 %v459, %v458
      %v469 = vpack.c.b16 %v461, %v460
      %478 = vmatprep.subr.bf16.mxu0 0
      %479 = vmatpush1.bf16.msra.mxu0 %v462
      %480 = vmatprep.subr.bf16.mxu0 0
      %481 = vmatpush1.bf16.msra.mxu0 %v463
      %482 = vmatprep.subr.bf16.mxu0 0
      %483 = vmatpush1.bf16.msra.mxu0 %v464
      %484 = vmatprep.subr.bf16.mxu0 0
      %485 = vmatpush1.bf16.msra.mxu0 %v465
      %486 = vmatprep.subr.bf16.mxu0 0
      %487 = vmatpush1.bf16.msra.mxu0 %v466
      %488 = vmatprep.subr.bf16.mxu0 0
      %489 = vmatpush1.bf16.msra.mxu0 %v467
      %490 = vmatprep.subr.bf16.mxu0 0
      %491 = vmatpush1.bf16.msra.mxu0 %v468
      %492 = vmatprep.subr.bf16.mxu0 0
      %493 = vmatpush1.bf16.msra.mxu0 %v469
      %494 = vmatprep.subr.bf16.mxu0 0
      %495 = vmatpush1.bf16.msra.mxu0 0
      %496 = vmatprep.subr.bf16.mxu0 0
      %497 = vmatpush1.bf16.msra.mxu0 0
      %498 = vmatprep.subr.bf16.mxu0 0
      %499 = vmatpush1.bf16.msra.mxu0 0
      %500 = vmatprep.subr.bf16.mxu0 0
      %501 = vmatpush1.bf16.msra.mxu0 0
      %502 = vmatprep.subr.bf16.mxu0 0
      %503 = vmatpush1.bf16.msra.mxu0 0
      %504 = vmatprep.subr.bf16.mxu0 0
      %505 = vmatpush1.bf16.msra.mxu0 0
      %506 = vmatprep.subr.bf16.mxu0 0
      %507 = vmatpush1.bf16.msra.mxu0 0
      %508 = vmatprep.subr.bf16.mxu0 0
      %509 = vmatpush1.bf16.msra.mxu0 0
      %510 = vmatprep.mubr.bf16.mxu0 0
      %511 = vmatmul.mubr.bf16.gmra.mrb[0].mxu0 %v404
      %v512 = vpop.f32.mrb[0].mxu0
      %v513 = vadd.f32 0.0, %v512
      %v514 = vpop.f32.mrb[0].mxu0
      %v515 = vpop.f32.mrb[0].mxu0
      %v516 = vadd.f32 0.0, %v515
      %v517 = vpop.f32.mrb[0].mxu0
      %518 = vmatprep.mubr.bf16.mxu0 0
      %519 = vmatmul.mubr.bf16.gmra.mrb[0].mxu0 %v405
      %v520 = vpop.f32.mrb[0].mxu0
      %v521 = vadd.f32 0.0, %v520
      %v522 = vpop.f32.mrb[0].mxu0
      %v523 = vpop.f32.mrb[0].mxu0
      %v524 = vadd.f32 0.0, %v523
      %v525 = vpop.f32.mrb[0].mxu0
      %526 = vmatprep.mubr.bf16.mxu0 0
      %527 = vmatmul.mubr.bf16.gmra.mrb[0].mxu0 %v406
      %v528 = vpop.f32.mrb[0].mxu0
      %v529 = vadd.f32 0.0, %v528
      %v530 = vpop.f32.mrb[0].mxu0
      %v531 = vpop.f32.mrb[0].mxu0
      %v532 = vadd.f32 0.0, %v531
      %v533 = vpop.f32.mrb[0].mxu0
      %534 = vmatprep.mubr.bf16.mxu0 0
      %535 = vmatmul.mubr.bf16.gmra.mrb[0].mxu0 %v407
      %v536 = vpop.f32.mrb[0].mxu0
      %v537 = vadd.f32 0.0, %v536
      %v538 = vpop.f32.mrb[0].mxu0
      %v539 = vpop.f32.mrb[0].mxu0
      %v540 = vadd.f32 0.0, %v539
      %v541 = vpop.f32.mrb[0].mxu0
      %542 = vmatprep.mubr.bf16.mxu0 0
      %543 = vmatmul.mubr.bf16.gmra.mrb[0].mxu0 %v408
      %v544 = vpop.f32.mrb[0].mxu0
      %v545 = vadd.f32 0.0, %v544
      %v546 = vpop.f32.mrb[0].mxu0
      %v547 = vpop.f32.mrb[0].mxu0
      %v548 = vadd.f32 0.0, %v547
      %v549 = vpop.f32.mrb[0].mxu0
      %550 = vmatprep.mubr.bf16.mxu0 0
      %551 = vmatmul.mubr.bf16.gmra.mrb[0].mxu0 %v409
      %v552 = vpop.f32.mrb[0].mxu0
      %v553 = vadd.f32 0.0, %v552
      %v554 = vpop.f32.mrb[0].mxu0
      %v555 = vpop.f32.mrb[0].mxu0
      %v556 = vadd.f32 0.0, %v555
      %v557 = vpop.f32.mrb[0].mxu0
      %558 = vmatprep.mubr.bf16.mxu0 0
      %559 = vmatmul.mubr.bf16.gmra.mrb[0].mxu0 %v410
      %v560 = vpop.f32.mrb[0].mxu0
      %v561 = vadd.f32 0.0, %v560
      %v562 = vpop.f32.mrb[0].mxu0
      %v563 = vpop.f32.mrb[0].mxu0
      %v564 = vadd.f32 0.0, %v563
      %v565 = vpop.f32.mrb[0].mxu0
      %566 = vmatprep.mubr.bf16.mxu0 0
      %567 = vmatmul.mubr.bf16.gmra.mrb[0].mxu0 %v411
      %v568 = vpop.f32.mrb[0].mxu0
      %v569 = vadd.f32 0.0, %v568
      %v570 = vpop.f32.mrb[0].mxu0
      %v571 = vpop.f32.mrb[0].mxu0
      %v572 = vadd.f32 0.0, %v571
      %v573 = vpop.f32.mrb[0].mxu0
      %574 = vmatprep.mubr.bf16.mxu0 0
      %575 = vmatmul.mubr.bf16.gmra.mrb[0].mxu0 %v412
      %v576 = vpop.f32.mrb[0].mxu0
      %v577 = vadd.f32 0.0, %v576
      %v578 = vpop.f32.mrb[0].mxu0
      %v579 = vpop.f32.mrb[0].mxu0
      %v580 = vadd.f32 0.0, %v579
      %v581 = vpop.f32.mrb[0].mxu0
      %582 = vmatprep.mubr.bf16.mxu0 0
      %583 = vmatmul.mubr.bf16.gmra.mrb[0].mxu0 %v413
      %v584 = vpop.f32.mrb[0].mxu0
      %v585 = vadd.f32 0.0, %v584
      %v586 = vpop.f32.mrb[0].mxu0
      %v587 = vpop.f32.mrb[0].mxu0
      %v588 = vadd.f32 0.0, %v587
      %v589 = vpop.f32.mrb[0].mxu0
      %590 = vmatprep.mubr.bf16.mxu0 0
      %591 = vmatmul.mubr.bf16.gmra.mrb[0].mxu0 %v414
      %v592 = vpop.f32.mrb[0].mxu0
      %v593 = vadd.f32 0.0, %v592
      %v594 = vpop.f32.mrb[0].mxu0
      %v595 = vpop.f32.mrb[0].mxu0
      %v596 = vadd.f32 0.0, %v595
      %v597 = vpop.f32.mrb[0].mxu0
      %598 = vmatprep.mubr.bf16.mxu0 0
      %599 = vmatmul.mubr.bf16.gmra.mrb[0].mxu0 %v415
      %v600 = vpop.f32.mrb[0].mxu0
      %v601 = vadd.f32 0.0, %v600
      %v602 = vpop.f32.mrb[0].mxu0
      %v603 = vpop.f32.mrb[0].mxu0
      %v604 = vadd.f32 0.0, %v603
      %v605 = vpop.f32.mrb[0].mxu0
      %606 = vmatprep.mubr.bf16.mxu0 0
      %607 = vmatmul.mubr.bf16.gmra.mrb[0].mxu0 %v416
      %v608 = vpop.f32.mrb[0].mxu0
      %v609 = vadd.f32 0.0, %v608
      %v610 = vpop.f32.mrb[0].mxu0
      %v611 = vpop.f32.mrb[0].mxu0
      %v612 = vpop.f32.mrb[0].mxu0
      %613 = vdwg.mxu0
      %v614 = vld [vmem:[%s296] sm:$0xf]
      %v615 = vld [vmem:[%s296 + $0x4] sm:$0xf]
      %v616 = vld [vmem:[%s296 + $0x8] sm:$0xf]
      %v617 = vld [vmem:[%s296 + $0xc] sm:$0xf]
      %v618 = vld [vmem:[%s296 + $0x10] sm:$0xf]
      %v619 = vld [vmem:[%s296 + $0x14] sm:$0xf]
      %v620 = vld [vmem:[%s296 + $0x18] sm:$0xf]
      %v621 = vld [vmem:[%s296 + $0x1c] sm:$0xf]
      %v622 = vld [vmem:[%s296 + $0x20] sm:$0xf]
      %v623 = vld [vmem:[%s296 + $0x24] sm:$0xf]
      %v624 = vld [vmem:[%s296 + $0x28] sm:$0xf]
      %v625 = vld [vmem:[%s296 + $0x2c] sm:$0xf]
      %v626 = vld [vmem:[%s296 + $0x30] sm:$0xf]
      %v627 = vld [vmem:[%s296 + $0x34] sm:$0xf]
      %v628 = vld [vmem:[%s296 + $0x38] sm:$0xf]
      %v629 = vld [vmem:[%s296 + $0x3c] sm:$0xf]
      %v630 = vld [vmem:[%s296 + $0x40] sm:$0xf]
      %v631 = vld [vmem:[%s296 + $0x44] sm:$0xf]
      %v632 = vld [vmem:[%s296 + $0x48] sm:$0xf]
      %v633 = vld [vmem:[%s296 + $0x4c] sm:$0xf]
      %v634 = vld [vmem:[%s296 + $0x50] sm:$0xf]
      %v635 = vld [vmem:[%s296 + $0x54] sm:$0xf]
      %v636 = vld [vmem:[%s296 + $0x58] sm:$0xf]
      %v637 = vld [vmem:[%s296 + $0x5c] sm:$0xf]
      %v638 = vld [vmem:[%s296 + $0x60] sm:$0x3]
      %v664 = vunpack.c.l.b16 %v614
      %v665 = vunpack.c.l.b16 %v615
      %v666 = vunpack.c.l.b16 %v616
      %v667 = vunpack.c.l.b16 %v617
      %v668 = vunpack.c.l.b16 %v618
      %v669 = vunpack.c.l.b16 %v619
      %v670 = vunpack.c.l.b16 %v620
      %v671 = vunpack.c.l.b16 %v621
      %v672 = vunpack.c.l.b16 %v622
      %v673 = vunpack.c.l.b16 %v623
      %v674 = vunpack.c.l.b16 %v624
      %v675 = vunpack.c.l.b16 %v625
      %v676 = vunpack.c.l.b16 %v626
      %v677 = vunpack.c.l.b16 %v627
      %v678 = vunpack.c.l.b16 %v628
      %v679 = vunpack.c.l.b16 %v629
      %v680 = vunpack.c.l.b16 %v630
      %v681 = vunpack.c.l.b16 %v631
      %v682 = vunpack.c.l.b16 %v632
      %v683 = vunpack.c.l.b16 %v633
      %v684 = vunpack.c.l.b16 %v634
      %v685 = vunpack.c.l.b16 %v635
      %v686 = vunpack.c.l.b16 %v636
      %v687 = vunpack.c.l.b16 %v637
      %v688 = vunpack.c.l.b16 %v638
      %v689 = vpack.c.b16 %v665, %v664
      %v690 = vpack.c.b16 %v667, %v666
      %v691 = vpack.c.b16 %v669, %v668
      %v692 = vpack.c.b16 %v671, %v670
      %v693 = vpack.c.b16 %v673, %v672
      %v694 = vpack.c.b16 %v675, %v674
      %v695 = vpack.c.b16 %v677, %v676
      %v696 = vpack.c.b16 %v679, %v678
      %v697 = vpack.c.b16 %v681, %v680
      %v698 = vpack.c.b16 %v683, %v682
      %v699 = vpack.c.b16 %v685, %v684
      %v700 = vpack.c.b16 %v687, %v686
      %v701 = vpack.c.b16 %v688, %v688
      %715 = vmatprep.subr.bf16.mxu0 0
      %716 = vmatpush1.bf16.msra.mxu0 %v462
      %717 = vmatprep.subr.bf16.mxu0 0
      %718 = vmatpush1.bf16.msra.mxu0 %v463
      %719 = vmatprep.subr.bf16.mxu0 0
      %720 = vmatpush1.bf16.msra.mxu0 %v464
      %721 = vmatprep.subr.bf16.mxu0 0
      %722 = vmatpush1.bf16.msra.mxu0 %v465
      %723 = vmatprep.subr.bf16.mxu0 0
      %724 = vmatpush1.bf16.msra.mxu0 %v466
      %725 = vmatprep.subr.bf16.mxu0 0
      %726 = vmatpush1.bf16.msra.mxu0 %v467
      %727 = vmatprep.subr.bf16.mxu0 0
      %728 = vmatpush1.bf16.msra.mxu0 %v468
      %729 = vmatprep.subr.bf16.mxu0 0
      %730 = vmatpush1.bf16.msra.mxu0 %v469
      %731 = vmatprep.subr.bf16.mxu0 0
      %732 = vmatpush1.bf16.msra.mxu0 0
      %733 = vmatprep.subr.bf16.mxu0 0
      %734 = vmatpush1.bf16.msra.mxu0 0
      %735 = vmatprep.subr.bf16.mxu0 0
      %736 = vmatpush1.bf16.msra.mxu0 0
      %737 = vmatprep.subr.bf16.mxu0 0
      %738 = vmatpush1.bf16.msra.mxu0 0
      %739 = vmatprep.subr.bf16.mxu0 0
      %740 = vmatpush1.bf16.msra.mxu0 0
      %741 = vmatprep.subr.bf16.mxu0 0
      %742 = vmatpush1.bf16.msra.mxu0 0
      %743 = vmatprep.subr.bf16.mxu0 0
      %744 = vmatpush1.bf16.msra.mxu0 0
      %745 = vmatprep.subr.bf16.mxu0 0
      %746 = vmatpush1.bf16.msra.mxu0 0
      %747 = vmatprep.mubr.bf16.mxu0 0
      %748 = vmatmul.mubr.bf16.gmra.mrb[0].mxu0 %v689
      %v749 = vpop.f32.mrb[0].mxu0
      %v750 = vadd.f32 0.0, %v749
      %v751 = vpop.f32.mrb[0].mxu0
      %v752 = vpop.f32.mrb[0].mxu0
      %v753 = vadd.f32 0.0, %v752
      %v754 = vpop.f32.mrb[0].mxu0
      %755 = vmatprep.mubr.bf16.mxu0 0
      %756 = vmatmul.mubr.bf16.gmra.mrb[0].mxu0 %v690
      %v757 = vpop.f32.mrb[0].mxu0
      %v758 = vadd.f32 0.0, %v757
      %v759 = vpop.f32.mrb[0].mxu0
      %v760 = vpop.f32.mrb[0].mxu0
      %v761 = vadd.f32 0.0, %v760
      %v762 = vpop.f32.mrb[0].mxu0
      %763 = vmatprep.mubr.bf16.mxu0 0
      %764 = vmatmul.mubr.bf16.gmra.mrb[0].mxu0 %v691
      %v765 = vpop.f32.mrb[0].mxu0
      %v766 = vadd.f32 0.0, %v765
      %v767 = vpop.f32.mrb[0].mxu0
      %v768 = vpop.f32.mrb[0].mxu0
      %v769 = vadd.f32 0.0, %v768
      %v770 = vpop.f32.mrb[0].mxu0
      %771 = vmatprep.mubr.bf16.mxu0 0
      %772 = vmatmul.mubr.bf16.gmra.mrb[0].mxu0 %v692
      %v773 = vpop.f32.mrb[0].mxu0
      %v774 = vadd.f32 0.0, %v773
      %v775 = vpop.f32.mrb[0].mxu0
      %v776 = vpop.f32.mrb[0].mxu0
      %v777 = vadd.f32 0.0, %v776
      %v778 = vpop.f32.mrb[0].mxu0
      %779 = vmatprep.mubr.bf16.mxu0 0
      %780 = vmatmul.mubr.bf16.gmra.mrb[0].mxu0 %v693
      %v781 = vpop.f32.mrb[0].mxu0
      %v782 = vadd.f32 0.0, %v781
      %v783 = vpop.f32.mrb[0].mxu0
      %v784 = vpop.f32.mrb[0].mxu0
      %v785 = vadd.f32 0.0, %v784
      %v786 = vpop.f32.mrb[0].mxu0
      %787 = vmatprep.mubr.bf16.mxu0 0
      %788 = vmatmul.mubr.bf16.gmra.mrb[0].mxu0 %v694
      %v789 = vpop.f32.mrb[0].mxu0
      %v790 = vadd.f32 0.0, %v789
      %v791 = vpop.f32.mrb[0].mxu0
      %v792 = vpop.f32.mrb[0].mxu0
      %v793 = vadd.f32 0.0, %v792
      %v794 = vpop.f32.mrb[0].mxu0
      %795 = vmatprep.mubr.bf16.mxu0 0
      %796 = vmatmul.mubr.bf16.gmra.mrb[0].mxu0 %v695
      %v797 = vpop.f32.mrb[0].mxu0
      %v798 = vadd.f32 0.0, %v797
      %v799 = vpop.f32.mrb[0].mxu0
      %v800 = vpop.f32.mrb[0].mxu0
      %v801 = vadd.f32 0.0, %v800
      %v802 = vpop.f32.mrb[0].mxu0
      %803 = vmatprep.mubr.bf16.mxu0 0
      %804 = vmatmul.mubr.bf16.gmra.mrb[0].mxu0 %v696
      %v805 = vpop.f32.mrb[0].mxu0
      %v806 = vadd.f32 0.0, %v805
      %v807 = vpop.f32.mrb[0].mxu0
      %v808 = vpop.f32.mrb[0].mxu0
      %v809 = vadd.f32 0.0, %v808
      %v810 = vpop.f32.mrb[0].mxu0
      %811 = vmatprep.mubr.bf16.mxu0 0
      %812 = vmatmul.mubr.bf16.gmra.mrb[0].mxu0 %v697
      %v813 = vpop.f32.mrb[0].mxu0
      %v814 = vadd.f32 0.0, %v813
      %v815 = vpop.f32.mrb[0].mxu0
      %v816 = vpop.f32.mrb[0].mxu0
      %v817 = vadd.f32 0.0, %v816
      %v818 = vpop.f32.mrb[0].mxu0
      %819 = vmatprep.mubr.bf16.mxu0 0
      %820 = vmatmul.mubr.bf16.gmra.mrb[0].mxu0 %v698
      %v821 = vpop.f32.mrb[0].mxu0
      %v822 = vadd.f32 0.0, %v821
      %v823 = vpop.f32.mrb[0].mxu0
      %v824 = vpop.f32.mrb[0].mxu0
      %v825 = vadd.f32 0.0, %v824
      %v826 = vpop.f32.mrb[0].mxu0
      %827 = vmatprep.mubr.bf16.mxu0 0
      %828 = vmatmul.mubr.bf16.gmra.mrb[0].mxu0 %v699
      %v829 = vpop.f32.mrb[0].mxu0
      %v830 = vadd.f32 0.0, %v829
      %v831 = vpop.f32.mrb[0].mxu0
      %v832 = vpop.f32.mrb[0].mxu0
      %v833 = vadd.f32 0.0, %v832
      %v834 = vpop.f32.mrb[0].mxu0
      %835 = vmatprep.mubr.bf16.mxu0 0
      %836 = vmatmul.mubr.bf16.gmra.mrb[0].mxu0 %v700
      %v837 = vpop.f32.mrb[0].mxu0
      %v838 = vadd.f32 0.0, %v837
      %v839 = vpop.f32.mrb[0].mxu0
      %v840 = vpop.f32.mrb[0].mxu0
      %v841 = vadd.f32 0.0, %v840
      %v842 = vpop.f32.mrb[0].mxu0
      %843 = vmatprep.mubr.bf16.mxu0 0
      %844 = vmatmul.mubr.bf16.gmra.mrb[0].mxu0 %v701
      %v845 = vpop.f32.mrb[0].mxu0
      %v846 = vadd.f32 0.0, %v845
      %v847 = vpop.f32.mrb[0].mxu0
      %v848 = vpop.f32.mrb[0].mxu0
      %v849 = vpop.f32.mrb[0].mxu0
      %850 = vdwg.mxu0
      %v851 = vmax.f32 %v513, %v750
      %v852 = vmax.f32 %v516, %v753
      %v853 = vmax.f32 %v521, %v758
      %v854 = vmax.f32 %v524, %v761
      %v855 = vmax.f32 %v529, %v766
      %v856 = vmax.f32 %v532, %v769
      %v857 = vmax.f32 %v537, %v774
      %v858 = vmax.f32 %v540, %v777
      %v859 = vmax.f32 %v545, %v782
      %v860 = vmax.f32 %v548, %v785
      %v861 = vmax.f32 %v553, %v790
      %v862 = vmax.f32 %v556, %v793
      %v863 = vmax.f32 %v561, %v798
      %v864 = vmax.f32 %v564, %v801
      %v865 = vmax.f32 %v569, %v806
      %v866 = vmax.f32 %v572, %v809
      %v867 = vmax.f32 %v577, %v814
      %v868 = vmax.f32 %v580, %v817
      %v869 = vmax.f32 %v585, %v822
      %v870 = vmax.f32 %v588, %v825
      %v871 = vmax.f32 %v593, %v830
      %v872 = vmax.f32 %v596, %v833
      %v873 = vmax.f32 %v601, %v838
      %v874 = vmax.f32 %v604, %v841
      %v875 = vmax.f32 %v609, %v846
      %v876 = vld [vmem:[%s301] sm:$0xf]
      %v877 = vld [vmem:[%s301 + $0x4] sm:$0xf]
      %v878 = vld [vmem:[%s301 + $0x8] sm:$0xf]
      %v879 = vld [vmem:[%s301 + $0xc] sm:$0xf]
      %v880 = vld [vmem:[%s301 + $0x10] sm:$0xf]
      %v881 = vld [vmem:[%s301 + $0x14] sm:$0xf]
      %v882 = vld [vmem:[%s301 + $0x18] sm:$0xf]
      %v883 = vld [vmem:[%s301 + $0x1c] sm:$0xf]
      %v884 = vld [vmem:[%s301 + $0x20] sm:$0xf]
      %v885 = vld [vmem:[%s301 + $0x24] sm:$0xf]
      %v886 = vld [vmem:[%s301 + $0x28] sm:$0xf]
      %v887 = vld [vmem:[%s301 + $0x2c] sm:$0xf]
      %v888 = vld [vmem:[%s301 + $0x30] sm:$0xf]
      %v889 = vld [vmem:[%s301 + $0x34] sm:$0xf]
      %v890 = vld [vmem:[%s301 + $0x38] sm:$0xf]
      %v891 = vld [vmem:[%s301 + $0x3c] sm:$0xf]
      %v892 = vld [vmem:[%s301 + $0x40] sm:$0xf]
      %v893 = vld [vmem:[%s301 + $0x44] sm:$0xf]
      %v894 = vld [vmem:[%s301 + $0x48] sm:$0xf]
      %v895 = vld [vmem:[%s301 + $0x4c] sm:$0xf]
      %v896 = vld [vmem:[%s301 + $0x50] sm:$0xf]
      %v897 = vld [vmem:[%s301 + $0x54] sm:$0xf]
      %v898 = vld [vmem:[%s301 + $0x58] sm:$0xf]
      %v899 = vld [vmem:[%s301 + $0x5c] sm:$0xf]
      %v900 = vld [vmem:[%s301 + $0x60] sm:$0x3]
      %v926 = vunpack.c.l.b16 %v876
      %v927 = vunpack.c.l.b16 %v877
      %v928 = vunpack.c.l.b16 %v878
      %v929 = vunpack.c.l.b16 %v879
      %v930 = vunpack.c.l.b16 %v880
      %v931 = vunpack.c.l.b16 %v881
      %v932 = vunpack.c.l.b16 %v882
      %v933 = vunpack.c.l.b16 %v883
      %v934 = vunpack.c.l.b16 %v884
      %v935 = vunpack.c.l.b16 %v885
      %v936 = vunpack.c.l.b16 %v886
      %v937 = vunpack.c.l.b16 %v887
      %v938 = vunpack.c.l.b16 %v888
      %v939 = vunpack.c.l.b16 %v889
      %v940 = vunpack.c.l.b16 %v890
      %v941 = vunpack.c.l.b16 %v891
      %v942 = vunpack.c.l.b16 %v892
      %v943 = vunpack.c.l.b16 %v893
      %v944 = vunpack.c.l.b16 %v894
      %v945 = vunpack.c.l.b16 %v895
      %v946 = vunpack.c.l.b16 %v896
      %v947 = vunpack.c.l.b16 %v897
      %v948 = vunpack.c.l.b16 %v898
      %v949 = vunpack.c.l.b16 %v899
      %v950 = vunpack.c.l.b16 %v900
      %v951 = vpack.c.b16 %v927, %v926
      %v952 = vpack.c.b16 %v929, %v928
      %v953 = vpack.c.b16 %v931, %v930
      %v954 = vpack.c.b16 %v933, %v932
      %v955 = vpack.c.b16 %v935, %v934
      %v956 = vpack.c.b16 %v937, %v936
      %v957 = vpack.c.b16 %v939, %v938
      %v958 = vpack.c.b16 %v941, %v940
      %v959 = vpack.c.b16 %v943, %v942
      %v960 = vpack.c.b16 %v945, %v944
      %v961 = vpack.c.b16 %v947, %v946
      %v962 = vpack.c.b16 %v949, %v948
      %v963 = vpack.c.b16 %v950, %v950
      %977 = vmatprep.subr.bf16.mxu0 0
      %978 = vmatpush1.bf16.msra.mxu0 %v462
      %979 = vmatprep.subr.bf16.mxu0 0
      %980 = vmatpush1.bf16.msra.mxu0 %v463
      %981 = vmatprep.subr.bf16.mxu0 0
      %982 = vmatpush1.bf16.msra.mxu0 %v464
      %983 = vmatprep.subr.bf16.mxu0 0
      %984 = vmatpush1.bf16.msra.mxu0 %v465
      %985 = vmatprep.subr.bf16.mxu0 0
      %986 = vmatpush1.bf16.msra.mxu0 %v466
      %987 = vmatprep.subr.bf16.mxu0 0
      %988 = vmatpush1.bf16.msra.mxu0 %v467
      %989 = vmatprep.subr.bf16.mxu0 0
      %990 = vmatpush1.bf16.msra.mxu0 %v468
      %991 = vmatprep.subr.bf16.mxu0 0
      %992 = vmatpush1.bf16.msra.mxu0 %v469
      %993 = vmatprep.subr.bf16.mxu0 0
      %994 = vmatpush1.bf16.msra.mxu0 0
      %995 = vmatprep.subr.bf16.mxu0 0
      %996 = vmatpush1.bf16.msra.mxu0 0
      %997 = vmatprep.subr.bf16.mxu0 0
      %998 = vmatpush1.bf16.msra.mxu0 0
      %999 = vmatprep.subr.bf16.mxu0 0
      %1000 = vmatpush1.bf16.msra.mxu0 0
      %1001 = vmatprep.subr.bf16.mxu0 0
      %1002 = vmatpush1.bf16.msra.mxu0 0
      %1003 = vmatprep.subr.bf16.mxu0 0
      %1004 = vmatpush1.bf16.msra.mxu0 0
      %1005 = vmatprep.subr.bf16.mxu0 0
      %1006 = vmatpush1.bf16.msra.mxu0 0
      %1007 = vmatprep.subr.bf16.mxu0 0
      %1008 = vmatpush1.bf16.msra.mxu0 0
      %1009 = vmatprep.mubr.bf16.mxu0 0
      %1010 = vmatmul.mubr.bf16.gmra.mrb[0].mxu0 %v951
      %v1011 = vpop.f32.mrb[0].mxu0
      %v1012 = vadd.f32 0.0, %v1011
      %v1013 = vpop.f32.mrb[0].mxu0
      %v1014 = vpop.f32.mrb[0].mxu0
      %v1015 = vadd.f32 0.0, %v1014
      %v1016 = vpop.f32.mrb[0].mxu0
      %1017 = vmatprep.mubr.bf16.mxu0 0
      %1018 = vmatmul.mubr.bf16.gmra.mrb[0].mxu0 %v952
      %v1019 = vpop.f32.mrb[0].mxu0
      %v1020 = vadd.f32 0.0, %v1019
      %v1021 = vpop.f32.mrb[0].mxu0
      %v1022 = vpop.f32.mrb[0].mxu0
      %v1023 = vadd.f32 0.0, %v1022
      %v1024 = vpop.f32.mrb[0].mxu0
      %1025 = vmatprep.mubr.bf16.mxu0 0
      %1026 = vmatmul.mubr.bf16.gmra.mrb[0].mxu0 %v953
      %v1027 = vpop.f32.mrb[0].mxu0
      %v1028 = vadd.f32 0.0, %v1027
      %v1029 = vpop.f32.mrb[0].mxu0
      %v1030 = vpop.f32.mrb[0].mxu0
      %v1031 = vadd.f32 0.0, %v1030
      %v1032 = vpop.f32.mrb[0].mxu0
      %1033 = vmatprep.mubr.bf16.mxu0 0
      %1034 = vmatmul.mubr.bf16.gmra.mrb[0].mxu0 %v954
      %v1035 = vpop.f32.mrb[0].mxu0
      %v1036 = vadd.f32 0.0, %v1035
      %v1037 = vpop.f32.mrb[0].mxu0
      %v1038 = vpop.f32.mrb[0].mxu0
      %v1039 = vadd.f32 0.0, %v1038
      %v1040 = vpop.f32.mrb[0].mxu0
      %1041 = vmatprep.mubr.bf16.mxu0 0
      %1042 = vmatmul.mubr.bf16.gmra.mrb[0].mxu0 %v955
      %v1043 = vpop.f32.mrb[0].mxu0
      %v1044 = vadd.f32 0.0, %v1043
      %v1045 = vpop.f32.mrb[0].mxu0
      %v1046 = vpop.f32.mrb[0].mxu0
      %v1047 = vadd.f32 0.0, %v1046
      %v1048 = vpop.f32.mrb[0].mxu0
      %1049 = vmatprep.mubr.bf16.mxu0 0
      %1050 = vmatmul.mubr.bf16.gmra.mrb[0].mxu0 %v956
      %v1051 = vpop.f32.mrb[0].mxu0
      %v1052 = vadd.f32 0.0, %v1051
      %v1053 = vpop.f32.mrb[0].mxu0
      %v1054 = vpop.f32.mrb[0].mxu0
      %v1055 = vadd.f32 0.0, %v1054
      %v1056 = vpop.f32.mrb[0].mxu0
      %1057 = vmatprep.mubr.bf16.mxu0 0
      %1058 = vmatmul.mubr.bf16.gmra.mrb[0].mxu0 %v957
      %v1059 = vpop.f32.mrb[0].mxu0
      %v1060 = vadd.f32 0.0, %v1059
      %v1061 = vpop.f32.mrb[0].mxu0
      %v1062 = vpop.f32.mrb[0].mxu0
      %v1063 = vadd.f32 0.0, %v1062
      %v1064 = vpop.f32.mrb[0].mxu0
      %1065 = vmatprep.mubr.bf16.mxu0 0
      %1066 = vmatmul.mubr.bf16.gmra.mrb[0].mxu0 %v958
      %v1067 = vpop.f32.mrb[0].mxu0
      %v1068 = vadd.f32 0.0, %v1067
      %v1069 = vpop.f32.mrb[0].mxu0
      %v1070 = vpop.f32.mrb[0].mxu0
      %v1071 = vadd.f32 0.0, %v1070
      %v1072 = vpop.f32.mrb[0].mxu0
      %1073 = vmatprep.mubr.bf16.mxu0 0
      %1074 = vmatmul.mubr.bf16.gmra.mrb[0].mxu0 %v959
      %v1075 = vpop.f32.mrb[0].mxu0
      %v1076 = vadd.f32 0.0, %v1075
      %v1077 = vpop.f32.mrb[0].mxu0
      %v1078 = vpop.f32.mrb[0].mxu0
      %v1079 = vadd.f32 0.0, %v1078
      %v1080 = vpop.f32.mrb[0].mxu0
      %1081 = vmatprep.mubr.bf16.mxu0 0
      %1082 = vmatmul.mubr.bf16.gmra.mrb[0].mxu0 %v960
      %v1083 = vpop.f32.mrb[0].mxu0
      %v1084 = vadd.f32 0.0, %v1083
      %v1085 = vpop.f32.mrb[0].mxu0
      %v1086 = vpop.f32.mrb[0].mxu0
      %v1087 = vadd.f32 0.0, %v1086
      %v1088 = vpop.f32.mrb[0].mxu0
      %1089 = vmatprep.mubr.bf16.mxu0 0
      %1090 = vmatmul.mubr.bf16.gmra.mrb[0].mxu0 %v961
      %v1091 = vpop.f32.mrb[0].mxu0
      %v1092 = vadd.f32 0.0, %v1091
      %v1093 = vpop.f32.mrb[0].mxu0
      %v1094 = vpop.f32.mrb[0].mxu0
      %v1095 = vadd.f32 0.0, %v1094
      %v1096 = vpop.f32.mrb[0].mxu0
      %1097 = vmatprep.mubr.bf16.mxu0 0
      %1098 = vmatmul.mubr.bf16.gmra.mrb[0].mxu0 %v962
      %v1099 = vpop.f32.mrb[0].mxu0
      %v1100 = vadd.f32 0.0, %v1099
      %v1101 = vpop.f32.mrb[0].mxu0
      %v1102 = vpop.f32.mrb[0].mxu0
      %v1103 = vadd.f32 0.0, %v1102
      %v1104 = vpop.f32.mrb[0].mxu0
      %1105 = vmatprep.mubr.bf16.mxu0 0
      %1106 = vmatmul.mubr.bf16.gmra.mrb[0].mxu0 %v963
      %v1107 = vpop.f32.mrb[0].mxu0
      %v1108 = vadd.f32 0.0, %v1107
      %v1109 = vpop.f32.mrb[0].mxu0
      %v1110 = vpop.f32.mrb[0].mxu0
      %v1111 = vpop.f32.mrb[0].mxu0
      %1112 = vdwg.mxu0
      %v1113 = vld [vmem:[%s306] sm:$0xf]
      %v1114 = vld [vmem:[%s306 + $0x4] sm:$0xf]
      %v1115 = vld [vmem:[%s306 + $0x8] sm:$0xf]
      %v1116 = vld [vmem:[%s306 + $0xc] sm:$0xf]
      %v1117 = vld [vmem:[%s306 + $0x10] sm:$0xf]
      %v1118 = vld [vmem:[%s306 + $0x14] sm:$0xf]
      %v1119 = vld [vmem:[%s306 + $0x18] sm:$0xf]
      %v1120 = vld [vmem:[%s306 + $0x1c] sm:$0xf]
      %v1121 = vld [vmem:[%s306 + $0x20] sm:$0xf]
      %v1122 = vld [vmem:[%s306 + $0x24] sm:$0xf]
      %v1123 = vld [vmem:[%s306 + $0x28] sm:$0xf]
      %v1124 = vld [vmem:[%s306 + $0x2c] sm:$0xf]
      %v1125 = vld [vmem:[%s306 + $0x30] sm:$0xf]
      %v1126 = vld [vmem:[%s306 + $0x34] sm:$0xf]
      %v1127 = vld [vmem:[%s306 + $0x38] sm:$0xf]
      %v1128 = vld [vmem:[%s306 + $0x3c] sm:$0xf]
      %v1129 = vld [vmem:[%s306 + $0x40] sm:$0xf]
      %v1130 = vld [vmem:[%s306 + $0x44] sm:$0xf]
      %v1131 = vld [vmem:[%s306 + $0x48] sm:$0xf]
      %v1132 = vld [vmem:[%s306 + $0x4c] sm:$0xf]
      %v1133 = vld [vmem:[%s306 + $0x50] sm:$0xf]
      %v1134 = vld [vmem:[%s306 + $0x54] sm:$0xf]
      %v1135 = vld [vmem:[%s306 + $0x58] sm:$0xf]
      %v1136 = vld [vmem:[%s306 + $0x5c] sm:$0xf]
      %v1137 = vld [vmem:[%s306 + $0x60] sm:$0x3]
      %v1163 = vunpack.c.l.b16 %v1113
      %v1164 = vunpack.c.l.b16 %v1114
      %v1165 = vunpack.c.l.b16 %v1115
      %v1166 = vunpack.c.l.b16 %v1116
      %v1167 = vunpack.c.l.b16 %v1117
      %v1168 = vunpack.c.l.b16 %v1118
      %v1169 = vunpack.c.l.b16 %v1119
      %v1170 = vunpack.c.l.b16 %v1120
      %v1171 = vunpack.c.l.b16 %v1121
      %v1172 = vunpack.c.l.b16 %v1122
      %v1173 = vunpack.c.l.b16 %v1123
      %v1174 = vunpack.c.l.b16 %v1124
      %v1175 = vunpack.c.l.b16 %v1125
      %v1176 = vunpack.c.l.b16 %v1126
      %v1177 = vunpack.c.l.b16 %v1127
      %v1178 = vunpack.c.l.b16 %v1128
      %v1179 = vunpack.c.l.b16 %v1129
      %v1180 = vunpack.c.l.b16 %v1130
      %v1181 = vunpack.c.l.b16 %v1131
      %v1182 = vunpack.c.l.b16 %v1132
      %v1183 = vunpack.c.l.b16 %v1133
      %v1184 = vunpack.c.l.b16 %v1134
      %v1185 = vunpack.c.l.b16 %v1135
      %v1186 = vunpack.c.l.b16 %v1136
      %v1187 = vunpack.c.l.b16 %v1137
      %v1188 = vpack.c.b16 %v1164, %v1163
      %v1189 = vpack.c.b16 %v1166, %v1165
      %v1190 = vpack.c.b16 %v1168, %v1167
      %v1191 = vpack.c.b16 %v1170, %v1169
      %v1192 = vpack.c.b16 %v1172, %v1171
      %v1193 = vpack.c.b16 %v1174, %v1173
      %v1194 = vpack.c.b16 %v1176, %v1175
      %v1195 = vpack.c.b16 %v1178, %v1177
      %v1196 = vpack.c.b16 %v1180, %v1179
      %v1197 = vpack.c.b16 %v1182, %v1181
      %v1198 = vpack.c.b16 %v1184, %v1183
      %v1199 = vpack.c.b16 %v1186, %v1185
      %v1200 = vpack.c.b16 %v1187, %v1187
      %1214 = vmatprep.subr.bf16.mxu0 0
      %1215 = vmatpush1.bf16.msra.mxu0 %v462
      %1216 = vmatprep.subr.bf16.mxu0 0
      %1217 = vmatpush1.bf16.msra.mxu0 %v463
      %1218 = vmatprep.subr.bf16.mxu0 0
      %1219 = vmatpush1.bf16.msra.mxu0 %v464
      %1220 = vmatprep.subr.bf16.mxu0 0
      %1221 = vmatpush1.bf16.msra.mxu0 %v465
      %1222 = vmatprep.subr.bf16.mxu0 0
      %1223 = vmatpush1.bf16.msra.mxu0 %v466
      %1224 = vmatprep.subr.bf16.mxu0 0
      %1225 = vmatpush1.bf16.msra.mxu0 %v467
      %1226 = vmatprep.subr.bf16.mxu0 0
      %1227 = vmatpush1.bf16.msra.mxu0 %v468
      %1228 = vmatprep.subr.bf16.mxu0 0
      %1229 = vmatpush1.bf16.msra.mxu0 %v469
      %1230 = vmatprep.subr.bf16.mxu0 0
      %1231 = vmatpush1.bf16.msra.mxu0 0
      %1232 = vmatprep.subr.bf16.mxu0 0
      %1233 = vmatpush1.bf16.msra.mxu0 0
      %1234 = vmatprep.subr.bf16.mxu0 0
      %1235 = vmatpush1.bf16.msra.mxu0 0
      %1236 = vmatprep.subr.bf16.mxu0 0
      %1237 = vmatpush1.bf16.msra.mxu0 0
      %1238 = vmatprep.subr.bf16.mxu0 0
      %1239 = vmatpush1.bf16.msra.mxu0 0
      %1240 = vmatprep.subr.bf16.mxu0 0
      %1241 = vmatpush1.bf16.msra.mxu0 0
      %1242 = vmatprep.subr.bf16.mxu0 0
      %1243 = vmatpush1.bf16.msra.mxu0 0
      %1244 = vmatprep.subr.bf16.mxu0 0
      %1245 = vmatpush1.bf16.msra.mxu0 0
      %1246 = vmatprep.mubr.bf16.mxu0 0
      %1247 = vmatmul.mubr.bf16.gmra.mrb[0].mxu0 %v1188
      %v1248 = vpop.f32.mrb[0].mxu0
      %v1249 = vadd.f32 0.0, %v1248
      %v1250 = vpop.f32.mrb[0].mxu0
      %v1251 = vpop.f32.mrb[0].mxu0
      %v1252 = vadd.f32 0.0, %v1251
      %v1253 = vpop.f32.mrb[0].mxu0
      %1254 = vmatprep.mubr.bf16.mxu0 0
      %1255 = vmatmul.mubr.bf16.gmra.mrb[0].mxu0 %v1189
      %v1256 = vpop.f32.mrb[0].mxu0
      %v1257 = vadd.f32 0.0, %v1256
      %v1258 = vpop.f32.mrb[0].mxu0
      %v1259 = vpop.f32.mrb[0].mxu0
      %v1260 = vadd.f32 0.0, %v1259
      %v1261 = vpop.f32.mrb[0].mxu0
      %1262 = vmatprep.mubr.bf16.mxu0 0
      %1263 = vmatmul.mubr.bf16.gmra.mrb[0].mxu0 %v1190
      %v1264 = vpop.f32.mrb[0].mxu0
      %v1265 = vadd.f32 0.0, %v1264
      %v1266 = vpop.f32.mrb[0].mxu0
      %v1267 = vpop.f32.mrb[0].mxu0
      %v1268 = vadd.f32 0.0, %v1267
      %v1269 = vpop.f32.mrb[0].mxu0
      %1270 = vmatprep.mubr.bf16.mxu0 0
      %1271 = vmatmul.mubr.bf16.gmra.mrb[0].mxu0 %v1191
      %v1272 = vpop.f32.mrb[0].mxu0
      %v1273 = vadd.f32 0.0, %v1272
      %v1274 = vpop.f32.mrb[0].mxu0
      %v1275 = vpop.f32.mrb[0].mxu0
      %v1276 = vadd.f32 0.0, %v1275
      %v1277 = vpop.f32.mrb[0].mxu0
      %1278 = vmatprep.mubr.bf16.mxu0 0
      %1279 = vmatmul.mubr.bf16.gmra.mrb[0].mxu0 %v1192
      %v1280 = vpop.f32.mrb[0].mxu0
      %v1281 = vadd.f32 0.0, %v1280
      %v1282 = vpop.f32.mrb[0].mxu0
      %v1283 = vpop.f32.mrb[0].mxu0
      %v1284 = vadd.f32 0.0, %v1283
      %v1285 = vpop.f32.mrb[0].mxu0
      %1286 = vmatprep.mubr.bf16.mxu0 0
      %1287 = vmatmul.mubr.bf16.gmra.mrb[0].mxu0 %v1193
      %v1288 = vpop.f32.mrb[0].mxu0
      %v1289 = vadd.f32 0.0, %v1288
      %v1290 = vpop.f32.mrb[0].mxu0
      %v1291 = vpop.f32.mrb[0].mxu0
      %v1292 = vadd.f32 0.0, %v1291
      %v1293 = vpop.f32.mrb[0].mxu0
      %1294 = vmatprep.mubr.bf16.mxu0 0
      %1295 = vmatmul.mubr.bf16.gmra.mrb[0].mxu0 %v1194
      %v1296 = vpop.f32.mrb[0].mxu0
      %v1297 = vadd.f32 0.0, %v1296
      %v1298 = vpop.f32.mrb[0].mxu0
      %v1299 = vpop.f32.mrb[0].mxu0
      %v1300 = vadd.f32 0.0, %v1299
      %v1301 = vpop.f32.mrb[0].mxu0
      %1302 = vmatprep.mubr.bf16.mxu0 0
      %1303 = vmatmul.mubr.bf16.gmra.mrb[0].mxu0 %v1195
      %v1304 = vpop.f32.mrb[0].mxu0
      %v1305 = vadd.f32 0.0, %v1304
      %v1306 = vpop.f32.mrb[0].mxu0
      %v1307 = vpop.f32.mrb[0].mxu0
      %v1308 = vadd.f32 0.0, %v1307
      %v1309 = vpop.f32.mrb[0].mxu0
      %1310 = vmatprep.mubr.bf16.mxu0 0
      %1311 = vmatmul.mubr.bf16.gmra.mrb[0].mxu0 %v1196
      %v1312 = vpop.f32.mrb[0].mxu0
      %v1313 = vadd.f32 0.0, %v1312
      %v1314 = vpop.f32.mrb[0].mxu0
      %v1315 = vpop.f32.mrb[0].mxu0
      %v1316 = vadd.f32 0.0, %v1315
      %v1317 = vpop.f32.mrb[0].mxu0
      %1318 = vmatprep.mubr.bf16.mxu0 0
      %1319 = vmatmul.mubr.bf16.gmra.mrb[0].mxu0 %v1197
      %v1320 = vpop.f32.mrb[0].mxu0
      %v1321 = vadd.f32 0.0, %v1320
      %v1322 = vpop.f32.mrb[0].mxu0
      %v1323 = vpop.f32.mrb[0].mxu0
      %v1324 = vadd.f32 0.0, %v1323
      %v1325 = vpop.f32.mrb[0].mxu0
      %1326 = vmatprep.mubr.bf16.mxu0 0
      %1327 = vmatmul.mubr.bf16.gmra.mrb[0].mxu0 %v1198
      %v1328 = vpop.f32.mrb[0].mxu0
      %v1329 = vadd.f32 0.0, %v1328
      %v1330 = vpop.f32.mrb[0].mxu0
      %v1331 = vpop.f32.mrb[0].mxu0
      %v1332 = vadd.f32 0.0, %v1331
      %v1333 = vpop.f32.mrb[0].mxu0
      %1334 = vmatprep.mubr.bf16.mxu0 0
      %1335 = vmatmul.mubr.bf16.gmra.mrb[0].mxu0 %v1199
      %v1336 = vpop.f32.mrb[0].mxu0
      %v1337 = vadd.f32 0.0, %v1336
      %v1338 = vpop.f32.mrb[0].mxu0
      %v1339 = vpop.f32.mrb[0].mxu0
      %v1340 = vadd.f32 0.0, %v1339
      %v1341 = vpop.f32.mrb[0].mxu0
      %1342 = vmatprep.mubr.bf16.mxu0 0
      %1343 = vmatmul.mubr.bf16.gmra.mrb[0].mxu0 %v1200
      %v1344 = vpop.f32.mrb[0].mxu0
      %v1345 = vadd.f32 0.0, %v1344
      %v1346 = vpop.f32.mrb[0].mxu0
      %v1347 = vpop.f32.mrb[0].mxu0
      %v1348 = vpop.f32.mrb[0].mxu0
      %1349 = vdwg.mxu0
      %v1350 = vmax.f32 %v1012, %v1249
      %v1351 = vmax.f32 %v1015, %v1252
      %v1352 = vmax.f32 %v1020, %v1257
      %v1353 = vmax.f32 %v1023, %v1260
      %v1354 = vmax.f32 %v1028, %v1265
      %v1355 = vmax.f32 %v1031, %v1268
      %v1356 = vmax.f32 %v1036, %v1273
      %v1357 = vmax.f32 %v1039, %v1276
      %v1358 = vmax.f32 %v1044, %v1281
      %v1359 = vmax.f32 %v1047, %v1284
      %v1360 = vmax.f32 %v1052, %v1289
      %v1361 = vmax.f32 %v1055, %v1292
      %v1362 = vmax.f32 %v1060, %v1297
      %v1363 = vmax.f32 %v1063, %v1300
      %v1364 = vmax.f32 %v1068, %v1305
      %v1365 = vmax.f32 %v1071, %v1308
      %v1366 = vmax.f32 %v1076, %v1313
      %v1367 = vmax.f32 %v1079, %v1316
      %v1368 = vmax.f32 %v1084, %v1321
      %v1369 = vmax.f32 %v1087, %v1324
      %v1370 = vmax.f32 %v1092, %v1329
      %v1371 = vmax.f32 %v1095, %v1332
      %v1372 = vmax.f32 %v1100, %v1337
      %v1373 = vmax.f32 %v1103, %v1340
      %v1374 = vmax.f32 %v1108, %v1345
      %v1375 = vmax.f32 %v851, %v1350
      %v1376 = vmax.f32 %v852, %v1351
      %v1377 = vmax.f32 %v853, %v1352
      %v1378 = vmax.f32 %v854, %v1353
      %v1379 = vmax.f32 %v855, %v1354
      %v1380 = vmax.f32 %v856, %v1355
      %v1381 = vmax.f32 %v857, %v1356
      %v1382 = vmax.f32 %v858, %v1357
      %v1383 = vmax.f32 %v859, %v1358
      %v1384 = vmax.f32 %v860, %v1359
      %v1385 = vmax.f32 %v861, %v1360
      %v1386 = vmax.f32 %v862, %v1361
      %v1387 = vmax.f32 %v863, %v1362
      %v1388 = vmax.f32 %v864, %v1363
      %v1389 = vmax.f32 %v865, %v1364
      %v1390 = vmax.f32 %v866, %v1365
      %v1391 = vmax.f32 %v867, %v1366
      %v1392 = vmax.f32 %v868, %v1367
      %v1393 = vmax.f32 %v869, %v1368
      %v1394 = vmax.f32 %v870, %v1369
      %v1395 = vmax.f32 %v871, %v1370
      %v1396 = vmax.f32 %v872, %v1371
      %v1397 = vmax.f32 %v873, %v1372
      %v1398 = vmax.f32 %v874, %v1373
      %v1399 = vmax.f32 %v875, %v1374
      %v1400 = vld [vmem:[%s5] sm:$0x1]
      %v1402 = vlaneseq
      %v1403 = vshrl.u32 %v1402, 7
      %v1404 = vsub.s32 0, %v1403
      %v1405 = vrot.slane %v1400, %v1404
      %v1407 = vadd.f32 %v1375, %v1405
      %v1408 = vadd.f32 %v1376, %v1405
      %v1409 = vadd.f32 %v1377, %v1405
      %v1410 = vadd.f32 %v1378, %v1405
      %v1411 = vadd.f32 %v1379, %v1405
      %v1412 = vadd.f32 %v1380, %v1405
      %v1413 = vadd.f32 %v1381, %v1405
      %v1414 = vadd.f32 %v1382, %v1405
      %v1415 = vadd.f32 %v1383, %v1405
      %v1416 = vadd.f32 %v1384, %v1405
      %v1417 = vadd.f32 %v1385, %v1405
      %v1418 = vadd.f32 %v1386, %v1405
      %v1419 = vadd.f32 %v1387, %v1405
      %v1420 = vadd.f32 %v1388, %v1405
      %v1421 = vadd.f32 %v1389, %v1405
      %v1422 = vadd.f32 %v1390, %v1405
      %v1423 = vadd.f32 %v1391, %v1405
      %v1424 = vadd.f32 %v1392, %v1405
      %v1425 = vadd.f32 %v1393, %v1405
      %v1426 = vadd.f32 %v1394, %v1405
      %v1427 = vadd.f32 %v1395, %v1405
      %v1428 = vadd.f32 %v1396, %v1405
      %v1429 = vadd.f32 %v1397, %v1405
      %v1430 = vadd.f32 %v1398, %v1405
      %v1431 = vadd.f32 %v1399, %v1405
      %v1432 = vmax.f32 %v1407, 0.0
      %v1433 = vmax.f32 %v1408, 0.0
      %v1434 = vmax.f32 %v1409, 0.0
      %v1435 = vmax.f32 %v1410, 0.0
      %v1436 = vmax.f32 %v1411, 0.0
      %v1437 = vmax.f32 %v1412, 0.0
      %v1438 = vmax.f32 %v1413, 0.0
      %v1439 = vmax.f32 %v1414, 0.0
      %v1440 = vmax.f32 %v1415, 0.0
      %v1441 = vmax.f32 %v1416, 0.0
      %v1442 = vmax.f32 %v1417, 0.0
      %v1443 = vmax.f32 %v1418, 0.0
      %v1444 = vmax.f32 %v1419, 0.0
      %v1445 = vmax.f32 %v1420, 0.0
      %v1446 = vmax.f32 %v1421, 0.0
      %v1447 = vmax.f32 %v1422, 0.0
      %v1448 = vmax.f32 %v1423, 0.0
      %v1449 = vmax.f32 %v1424, 0.0
      %v1450 = vmax.f32 %v1425, 0.0
      %v1451 = vmax.f32 %v1426, 0.0
      %v1452 = vmax.f32 %v1427, 0.0
      %v1453 = vmax.f32 %v1428, 0.0
      %v1454 = vmax.f32 %v1429, 0.0
      %v1455 = vmax.f32 %v1430, 0.0
      %v1456 = vmax.f32 %v1431, 0.0
      %v1457 = vpack.c.bf16 %v1433, %v1432
      %v1458 = vpack.c.bf16 %v1435, %v1434
      %v1459 = vpack.c.bf16 %v1437, %v1436
      %v1460 = vpack.c.bf16 %v1439, %v1438
      %v1461 = vpack.c.bf16 %v1441, %v1440
      %v1462 = vpack.c.bf16 %v1443, %v1442
      %v1463 = vpack.c.bf16 %v1445, %v1444
      %v1464 = vpack.c.bf16 %v1447, %v1446
      %v1465 = vpack.c.bf16 %v1449, %v1448
      %v1466 = vpack.c.bf16 %v1451, %v1450
      %v1467 = vpack.c.bf16 %v1453, %v1452
      %v1468 = vpack.c.bf16 %v1455, %v1454
      %v1469 = vpack.c.bf16 %v1456, %v1456
      %v1483 = vunpack.c.l.b16 %v1457
      %v1484 = vunpack.c.h.b16 %v1457
      %v1485 = vunpack.c.l.b16 %v1458
      %v1486 = vunpack.c.h.b16 %v1458
      %v1487 = vunpack.c.l.b16 %v1459
      %v1488 = vunpack.c.h.b16 %v1459
      %v1489 = vunpack.c.l.b16 %v1460
      %v1490 = vunpack.c.h.b16 %v1460
      %v1491 = vunpack.c.l.b16 %v1461
      %v1492 = vunpack.c.h.b16 %v1461
      %v1493 = vunpack.c.l.b16 %v1462
      %v1494 = vunpack.c.h.b16 %v1462
      %v1495 = vunpack.c.l.b16 %v1463
      %v1496 = vunpack.c.h.b16 %v1463
      %v1497 = vunpack.c.l.b16 %v1464
      %v1498 = vunpack.c.h.b16 %v1464
      %v1499 = vunpack.c.l.b16 %v1465
      %v1500 = vunpack.c.h.b16 %v1465
      %v1501 = vunpack.c.l.b16 %v1466
      %v1502 = vunpack.c.h.b16 %v1466
      %v1503 = vunpack.c.l.b16 %v1467
      %v1504 = vunpack.c.h.b16 %v1467
      %v1505 = vunpack.c.l.b16 %v1468
      %v1506 = vunpack.c.h.b16 %v1468
      %v1507 = vunpack.c.l.b16 %v1469
      %v1508 = vpack.c.b16 %v1483, %v1483
      %v1509 = vpack.c.b16 %v1484, %v1484
      %v1510 = vpack.c.b16 %v1485, %v1485
      %v1511 = vpack.c.b16 %v1486, %v1486
      %v1512 = vpack.c.b16 %v1487, %v1487
      %v1513 = vpack.c.b16 %v1488, %v1488
      %v1514 = vpack.c.b16 %v1489, %v1489
      %v1515 = vpack.c.b16 %v1490, %v1490
      %v1516 = vpack.c.b16 %v1491, %v1491
      %v1517 = vpack.c.b16 %v1492, %v1492
      %v1518 = vpack.c.b16 %v1493, %v1493
      %v1519 = vpack.c.b16 %v1494, %v1494
      %v1520 = vpack.c.b16 %v1495, %v1495
      %v1521 = vpack.c.b16 %v1496, %v1496
      %v1522 = vpack.c.b16 %v1497, %v1497
      %v1523 = vpack.c.b16 %v1498, %v1498
      %v1524 = vpack.c.b16 %v1499, %v1499
      %v1525 = vpack.c.b16 %v1500, %v1500
      %v1526 = vpack.c.b16 %v1501, %v1501
      %v1527 = vpack.c.b16 %v1502, %v1502
      %v1528 = vpack.c.b16 %v1503, %v1503
      %v1529 = vpack.c.b16 %v1504, %v1504
      %v1530 = vpack.c.b16 %v1505, %v1505
      %v1531 = vpack.c.b16 %v1506, %v1506
      %v1532 = vpack.c.b16 %v1507, %v1507
      %1558 = vst [vmem:[%s311] sm:$0xf] %v1508
      %1559 = vst [vmem:[%s311 + $0x4] sm:$0xf] %v1509
      %1560 = vst [vmem:[%s311 + $0x8] sm:$0xf] %v1510
      %1561 = vst [vmem:[%s311 + $0xc] sm:$0xf] %v1511
      %1562 = vst [vmem:[%s311 + $0x10] sm:$0xf] %v1512
      %1563 = vst [vmem:[%s311 + $0x14] sm:$0xf] %v1513
      %1564 = vst [vmem:[%s311 + $0x18] sm:$0xf] %v1514
      %1565 = vst [vmem:[%s311 + $0x1c] sm:$0xf] %v1515
      %1566 = vst [vmem:[%s311 + $0x20] sm:$0xf] %v1516
      %1567 = vst [vmem:[%s311 + $0x24] sm:$0xf] %v1517
      %1568 = vst [vmem:[%s311 + $0x28] sm:$0xf] %v1518
      %1569 = vst [vmem:[%s311 + $0x2c] sm:$0xf] %v1519
      %1570 = vst [vmem:[%s311 + $0x30] sm:$0xf] %v1520
      %1571 = vst [vmem:[%s311 + $0x34] sm:$0xf] %v1521
      %1572 = vst [vmem:[%s311 + $0x38] sm:$0xf] %v1522
      %1573 = vst [vmem:[%s311 + $0x3c] sm:$0xf] %v1523
      %1574 = vst [vmem:[%s311 + $0x40] sm:$0xf] %v1524
      %1575 = vst [vmem:[%s311 + $0x44] sm:$0xf] %v1525
      %1576 = vst [vmem:[%s311 + $0x48] sm:$0xf] %v1526
      %1577 = vst [vmem:[%s311 + $0x4c] sm:$0xf] %v1527
      %1578 = vst [vmem:[%s311 + $0x50] sm:$0xf] %v1528
      %1579 = vst [vmem:[%s311 + $0x54] sm:$0xf] %v1529
      %1580 = vst [vmem:[%s311 + $0x58] sm:$0xf] %v1530
      %1581 = vst [vmem:[%s311 + $0x5c] sm:$0xf] %v1531
      %1582 = vst [vmem:[%s311 + $0x60] sm:$0x3] %v1532
      %p1583 = scmp.lt.s32.totalorder %s17, 1
      %s1584 = scalar_select %p1583, %s17, 1
      %s1585 = smul.addr %s1584, 25
      %s1586 = smul.addr %s1585, 4
      %s1587 = scalar_lea.vmem %s6, %s1586
      // Predicated region
      $region45: #{_lenet_forward.3} parent=43 // pred_check
        %p1588 = pneg %p181
      $region46: #{_lenet_forward.3} parent=43 // pred_check_branch
        %1590 = sbr.rel (%p1588) target = $region48
      $region47: #{_lenet_forward.3} parent=43 // pred_region
        _
      $region48: #{_lenet_forward.3} parent=43 // pred_fallthru
        _
    $region44: #{_lenet_forward.3} parent=5 // pred_fallthru
      _
    %p1591 = scmp.le.s32.totalorder 2, %s12
    // Predicated region
    $region49: #{_lenet_forward.3} parent=5 // pred_check
      %p1592 = pneg %p1591
    $region50: #{_lenet_forward.3} parent=5 // pred_check_branch
      %1594 = sbr.rel (%p1592) target = $region52
    $region51: #{_lenet_forward.3} parent=5 // pred_region
      %s1595 = ssub.s32 %s12, 2
      // Predicated region
      $region53: #{_lenet_forward.3} parent=51 // pred_check
        %p1596 = pneg %p187
      $region54: #{_lenet_forward.3} parent=51 // pred_check_branch
        %1598 = sbr.rel (%p1596) target = $region56
      $region55: #{_lenet_forward.3} parent=51 // pred_region
        %p1599 = scmp.lt.s32.totalorder %s18, 1
        %s1600 = scalar_select %p1599, %s18, 1
        %s1601 = smul.addr %s1600, 25
        %s1602 = smul.addr %s1601, 4
        %s1603 = scalar_lea.vmem %s6, %s1602
      $region56: #{_lenet_forward.3} parent=51 // pred_fallthru
        _
    $region52: #{_lenet_forward.3} parent=5 // pred_fallthru
      _
  $region6: #{_lenet_forward.3} parent=0 // loop_footer
    %s16 = sadd.s32 1, %s12
  $region7: #{_lenet_forward.3} parent=0 // loop_footer_branch
    %11 = sbr.rel target = $region3
  $region8: #{_lenet_forward.3} parent=0 // loop_exit
    _

// kernel: _lenet_forward.4
$region0: #{_lenet_forward.4}
  #allocation0 [shape = 'u32[]', space=smem, size = 0x4, offset = 0x4, fixed_abs, tag = 'smem constant byte address 0x4 - core index']
  #allocation1 [shape = 'u32[144,128]{1,0:T(1,128)}', space=vmem, size = 0x12000, scoped, tag = 'internal scratch']
  %s0 = inlined_call_operand.vmem [shape: bf16[2,25,256], index: 0, kind: input, shape index: {}]
  %s1 = inlined_call_operand.vmem [shape: bf16[2,25,256], index: 1, kind: input, shape index: {}]
  %s2 = inlined_call_operand.vmem [shape: bf16[2,25,256], index: 2, kind: input, shape index: {}]
  %s3 = inlined_call_operand.vmem [shape: bf16[2,25,256], index: 3, kind: input, shape index: {}]
  %s4 = inlined_call_operand.vmem [shape: bf16[256,128], index: 4, kind: input, shape index: {}]
  %s5 = inlined_call_operand.vmem [shape: f32[1,128], index: 5, kind: input, shape index: {}]
  %s6 = inlined_call_operand.vmem [shape: bf16[2,25,128], index: 6, kind: output, shape index: {}]
  %s7 = sld [smem:[#allocation0]]
  $region57: #{_lenet_forward.4} parent=0
    _
  %s9 = ssub.s32 1, %s7
  %s10 = scalar_select 0, %s9, %s7
  loop: start=0, step=1, limit=4
  $region2: #{_lenet_forward.4} parent=0 // loop_pre_header
    _
  $region3: #{_lenet_forward.4} parent=0 // loop_header
    %s12 = sphi 0, %s16
    %p13 = scmp.ge.s32.totalorder %s12, 4
    %s22 = sphi 0, %s24
    %s25 = sphi 0, %s22
    %s26 = sphi 0, %s25
    %s42 = sphi 0, %s26
    %s48 = sphi 0, %s50
    %s51 = sphi 0, %s48
    %s52 = sphi 0, %s51
    %s68 = sphi 0, %s52
    %s74 = sphi 0, %s76
    %s77 = sphi 0, %s74
    %s78 = sphi 0, %s77
    %s94 = sphi 0, %s78
    %s100 = sphi 0, %s102
    %s103 = sphi 0, %s100
    %s104 = sphi 0, %s103
    %s120 = sphi 0, %s104
    %s124 = sphi 0, %s124
    %s126 = sphi 0, %s124
    %s127 = sphi 0, %s126
    %s141 = sphi 0, %s127
    %s145 = sphi 0, %s145
    %s147 = sphi 0, %s145
    %s148 = sphi 0, %s147
    %s162 = sphi 0, %s148
    %s168 = sphi 0, %s170
    %s171 = sphi 0, %s168
    %s172 = sphi 0, %s171
    %s188 = sphi 0, %s172
  $region4: #{_lenet_forward.4} parent=0 // loop_header_branch
    %15 = sbr.rel (%p13) target = $region8
  $region5: #{_lenet_forward.4} parent=0 // loop_body
    %s17 = ssub.s32 %s12, 1
    %s18 = ssub.s32 %s12, 2
    %s19 = sadd.s32 %s12, 1
    %s20 = ssub.s32 %s12, %s19
    %p21 = scmp.eq.s32.totalorder %s20, 0
    %s23 = sadd.s32 %s22, 1
    %s24 = scalar_select %p21, %s22, %s23
    %p27 = pneg %p21
    %p28 = scmp.eq.s32.totalorder %s12, 1
    %p29 = por %p27, %p28
    %p30 = scmp.ne.s32.totalorder %s22, %s25
    %p31 = scmp.eq.s32.totalorder %s12, 0
    %p32 = por %p30, %p31
    %p33 = scmp.ne.s32.totalorder %s22, %s25
    %p34 = scmp.eq.s32.totalorder %s17, 1
    %p35 = por %p33, %p34
    %p36 = scmp.ne.s32.totalorder %s25, %s26
    %p37 = scmp.eq.s32.totalorder %s17, 0
    %p38 = por %p36, %p37
    %p39 = scmp.ne.s32.totalorder %s25, %s26
    %p40 = scmp.eq.s32.totalorder %s18, 1
    %p41 = por %p39, %p40
    %p43 = scmp.ne.s32.totalorder %s26, %s42
    %p44 = scmp.eq.s32.totalorder %s18, 0
    %p45 = por %p43, %p44
    %s46 = ssub.s32 %s12, %s19
    %p47 = scmp.eq.s32.totalorder %s46, 0
    %s49 = sadd.s32 %s48, 1
    %s50 = scalar_select %p47, %s48, %s49
    %p53 = pneg %p47
    %p54 = scmp.eq.s32.totalorder %s12, 1
    %p55 = por %p53, %p54
    %p56 = scmp.ne.s32.totalorder %s48, %s51
    %p57 = scmp.eq.s32.totalorder %s12, 0
    %p58 = por %p56, %p57
    %p59 = scmp.ne.s32.totalorder %s48, %s51
    %p60 = scmp.eq.s32.totalorder %s17, 1
    %p61 = por %p59, %p60
    %p62 = scmp.ne.s32.totalorder %s51, %s52
    %p63 = scmp.eq.s32.totalorder %s17, 0
    %p64 = por %p62, %p63
    %p65 = scmp.ne.s32.totalorder %s51, %s52
    %p66 = scmp.eq.s32.totalorder %s18, 1
    %p67 = por %p65, %p66
    %p69 = scmp.ne.s32.totalorder %s52, %s68
    %p70 = scmp.eq.s32.totalorder %s18, 0
    %p71 = por %p69, %p70
    %s72 = ssub.s32 %s12, %s19
    %p73 = scmp.eq.s32.totalorder %s72, 0
    %s75 = sadd.s32 %s74, 1
    %s76 = scalar_select %p73, %s74, %s75
    %p79 = pneg %p73
    %p80 = scmp.eq.s32.totalorder %s12, 1
    %p81 = por %p79, %p80
    %p82 = scmp.ne.s32.totalorder %s74, %s77
    %p83 = scmp.eq.s32.totalorder %s12, 0
    %p84 = por %p82, %p83
    %p85 = scmp.ne.s32.totalorder %s74, %s77
    %p86 = scmp.eq.s32.totalorder %s17, 1
    %p87 = por %p85, %p86
    %p88 = scmp.ne.s32.totalorder %s77, %s78
    %p89 = scmp.eq.s32.totalorder %s17, 0
    %p90 = por %p88, %p89
    %p91 = scmp.ne.s32.totalorder %s77, %s78
    %p92 = scmp.eq.s32.totalorder %s18, 1
    %p93 = por %p91, %p92
    %p95 = scmp.ne.s32.totalorder %s78, %s94
    %p96 = scmp.eq.s32.totalorder %s18, 0
    %p97 = por %p95, %p96
    %s98 = ssub.s32 %s12, %s19
    %p99 = scmp.eq.s32.totalorder %s98, 0
    %s101 = sadd.s32 %s100, 1
    %s102 = scalar_select %p99, %s100, %s101
    %p105 = pneg %p99
    %p106 = scmp.eq.s32.totalorder %s12, 1
    %p107 = por %p105, %p106
    %p108 = scmp.ne.s32.totalorder %s100, %s103
    %p109 = scmp.eq.s32.totalorder %s12, 0
    %p110 = por %p108, %p109
    %p111 = scmp.ne.s32.totalorder %s100, %s103
    %p112 = scmp.eq.s32.totalorder %s17, 1
    %p113 = por %p111, %p112
    %p114 = scmp.ne.s32.totalorder %s103, %s104
    %p115 = scmp.eq.s32.totalorder %s17, 0
    %p116 = por %p114, %p115
    %p117 = scmp.ne.s32.totalorder %s103, %s104
    %p118 = scmp.eq.s32.totalorder %s18, 1
    %p119 = por %p117, %p118
    %p121 = scmp.ne.s32.totalorder %s104, %s120
    %p122 = scmp.eq.s32.totalorder %s18, 0
    %p123 = por %p121, %p122
    %s125 = sadd.s32 %s124, 1
    %p128 = scmp.eq.s32.totalorder %s12, 1
    %p129 = scmp.ne.s32.totalorder %s124, %s126
    %p130 = scmp.eq.s32.totalorder %s12, 0
    %p131 = por %p129, %p130
    %p132 = scmp.ne.s32.totalorder %s124, %s126
    %p133 = scmp.eq.s32.totalorder %s17, 1
    %p134 = por %p132, %p133
    %p135 = scmp.ne.s32.totalorder %s126, %s127
    %p136 = scmp.eq.s32.totalorder %s17, 0
    %p137 = por %p135, %p136
    %p138 = scmp.ne.s32.totalorder %s126, %s127
    %p139 = scmp.eq.s32.totalorder %s18, 1
    %p140 = por %p138, %p139
    %p142 = scmp.ne.s32.totalorder %s127, %s141
    %p143 = scmp.eq.s32.totalorder %s18, 0
    %p144 = por %p142, %p143
    %s146 = sadd.s32 %s145, 1
    %p149 = scmp.eq.s32.totalorder %s12, 1
    %p150 = scmp.ne.s32.totalorder %s145, %s147
    %p151 = scmp.eq.s32.totalorder %s12, 0
    %p152 = por %p150, %p151
    %p153 = scmp.ne.s32.totalorder %s145, %s147
    %p154 = scmp.eq.s32.totalorder %s17, 1
    %p155 = por %p153, %p154
    %p156 = scmp.ne.s32.totalorder %s147, %s148
    %p157 = scmp.eq.s32.totalorder %s17, 0
    %p158 = por %p156, %p157
    %p159 = scmp.ne.s32.totalorder %s147, %s148
    %p160 = scmp.eq.s32.totalorder %s18, 1
    %p161 = por %p159, %p160
    %p163 = scmp.ne.s32.totalorder %s148, %s162
    %p164 = scmp.eq.s32.totalorder %s18, 0
    %p165 = por %p163, %p164
    %s166 = ssub.s32 %s12, %s19
    %p167 = scmp.eq.s32.totalorder %s166, 0
    %s169 = sadd.s32 %s168, 1
    %s170 = scalar_select %p167, %s168, %s169
    %p173 = pneg %p167
    %p174 = scmp.eq.s32.totalorder %s12, 1
    %p175 = por %p173, %p174
    %p176 = scmp.ne.s32.totalorder %s168, %s171
    %p177 = scmp.eq.s32.totalorder %s12, 0
    %p178 = por %p176, %p177
    %p179 = scmp.ne.s32.totalorder %s168, %s171
    %p180 = scmp.eq.s32.totalorder %s17, 1
    %p181 = por %p179, %p180
    %p182 = scmp.ne.s32.totalorder %s171, %s172
    %p183 = scmp.eq.s32.totalorder %s17, 0
    %p184 = por %p182, %p183
    %p185 = scmp.ne.s32.totalorder %s171, %s172
    %p186 = scmp.eq.s32.totalorder %s18, 1
    %p187 = por %p185, %p186
    %p189 = scmp.ne.s32.totalorder %s172, %s188
    %p190 = scmp.eq.s32.totalorder %s18, 0
    %p191 = por %p189, %p190
    %p192 = scmp.le.s32.totalorder 1, %s12
    %p193 = scmp.lt.s32.totalorder %s12, 3
    %p194 = pnand %p192, %p193
    %p195 = pneg %p194
    // Predicated region
    $region9: #{_lenet_forward.4} parent=5 // pred_check
      _
    $region10: #{_lenet_forward.4} parent=5 // pred_check_branch
      %197 = sbr.rel (%p194) target = $region12
    $region11: #{_lenet_forward.4} parent=5 // pred_region
      %s198 = ssub.s32 %s12, 1
      // Predicated region
      $region13: #{_lenet_forward.4} parent=11 // pred_check
        %p199 = pneg %p137
      $region14: #{_lenet_forward.4} parent=11 // pred_check_branch
        %201 = sbr.rel (%p199) target = $region16
      $region15: #{_lenet_forward.4} parent=11 // pred_region
        _
      $region16: #{_lenet_forward.4} parent=11 // pred_fallthru
        _
      // Predicated region
      $region17: #{_lenet_forward.4} parent=11 // pred_check
        %p202 = pneg %p158
      $region18: #{_lenet_forward.4} parent=11 // pred_check_branch
        %204 = sbr.rel (%p202) target = $region20
      $region19: #{_lenet_forward.4} parent=11 // pred_region
        _
      $region20: #{_lenet_forward.4} parent=11 // pred_fallthru
        _
    $region12: #{_lenet_forward.4} parent=5 // pred_fallthru
      _
    %p205 = scmp.lt.s32.totalorder %s12, 2
    // Predicated region
    $region21: #{_lenet_forward.4} parent=5 // pred_check
      %p206 = pneg %p205
    $region22: #{_lenet_forward.4} parent=5 // pred_check_branch
      %208 = sbr.rel (%p206) target = $region24
    $region23: #{_lenet_forward.4} parent=5 // pred_region
      // Predicated region
      $region25: #{_lenet_forward.4} parent=23 // pred_check
        %p209 = pneg %p32
      $region26: #{_lenet_forward.4} parent=23 // pred_check_branch
        %211 = sbr.rel (%p209) target = $region28
      $region27: #{_lenet_forward.4} parent=23 // pred_region
        %p212 = scmp.lt.s32.totalorder %s12, 1
        %s213 = scalar_select %p212, %s12, 1
        %s214 = smul.addr %s213, 8
        %s215 = smul.addr %s214, 4
        %s216 = scalar_lea.vmem %s0, %s215
      $region28: #{_lenet_forward.4} parent=23 // pred_fallthru
        _
      // Predicated region
      $region29: #{_lenet_forward.4} parent=23 // pred_check
        %p217 = pneg %p58
      $region30: #{_lenet_forward.4} parent=23 // pred_check_branch
        %219 = sbr.rel (%p217) target = $region32
      $region31: #{_lenet_forward.4} parent=23 // pred_region
        %p220 = scmp.lt.s32.totalorder %s12, 1
        %s221 = scalar_select %p220, %s12, 1
        %s222 = smul.addr %s221, 8
        %s223 = smul.addr %s222, 4
        %s224 = scalar_lea.vmem %s1, %s223
      $region32: #{_lenet_forward.4} parent=23 // pred_fallthru
        _
      // Predicated region
      $region33: #{_lenet_forward.4} parent=23 // pred_check
        %p225 = pneg %p84
      $region34: #{_lenet_forward.4} parent=23 // pred_check_branch
        %227 = sbr.rel (%p225) target = $region36
      $region35: #{_lenet_forward.4} parent=23 // pred_region
        %p228 = scmp.lt.s32.totalorder %s12, 1
        %s229 = scalar_select %p228, %s12, 1
        %s230 = smul.addr %s229, 8
        %s231 = smul.addr %s230, 4
        %s232 = scalar_lea.vmem %s2, %s231
      $region36: #{_lenet_forward.4} parent=23 // pred_fallthru
        _
      // Predicated region
      $region37: #{_lenet_forward.4} parent=23 // pred_check
        %p233 = pneg %p110
      $region38: #{_lenet_forward.4} parent=23 // pred_check_branch
        %235 = sbr.rel (%p233) target = $region40
      $region39: #{_lenet_forward.4} parent=23 // pred_region
        %p236 = scmp.lt.s32.totalorder %s12, 1
        %s237 = scalar_select %p236, %s12, 1
        %s238 = smul.addr %s237, 8
        %s239 = smul.addr %s238, 4
        %s240 = scalar_lea.vmem %s3, %s239
      $region40: #{_lenet_forward.4} parent=23 // pred_fallthru
        _
    $region24: #{_lenet_forward.4} parent=5 // pred_fallthru
      _
    %p241 = scmp.le.s32.totalorder 1, %s12
    %p242 = scmp.lt.s32.totalorder %s12, 3
    %p243 = pnand %p241, %p242
    %p244 = pneg %p243
    // Predicated region
    $region41: #{_lenet_forward.4} parent=5 // pred_check
      _
    $region42: #{_lenet_forward.4} parent=5 // pred_check_branch
      %246 = sbr.rel (%p243) target = $region44
    $region43: #{_lenet_forward.4} parent=5 // pred_region
      %s247 = ssub.s32 %s12, 1
      %p248 = scmp.lt.s32.totalorder %s17, 1
      %s249 = scalar_select %p248, %s17, 1
      %s250 = smul.addr %s249, 8
      %s251 = smul.addr %s250, 4
      %s252 = scalar_lea.vmem %s0, %s251
      %p253 = pneg %p38
      %p254 = pneg %p35
      %p255 = scmp.lt.s32.totalorder %s17, 1
      %s256 = scalar_select %p255, %s17, 1
      %s257 = smul.addr %s256, 8
      %s258 = smul.addr %s257, 4
      %s259 = scalar_lea.vmem %s1, %s258
      %p260 = pneg %p64
      %p261 = pneg %p61
      %p262 = scmp.lt.s32.totalorder %s17, 1
      %s263 = scalar_select %p262, %s17, 1
      %s264 = smul.addr %s263, 8
      %s265 = smul.addr %s264, 4
      %s266 = scalar_lea.vmem %s2, %s265
      %p267 = pneg %p90
      %p268 = pneg %p87
      %p269 = scmp.lt.s32.totalorder %s17, 1
      %s270 = scalar_select %p269, %s17, 1
      %s271 = smul.addr %s270, 8
      %s272 = smul.addr %s271, 4
      %s273 = scalar_lea.vmem %s3, %s272
      %p274 = pneg %p116
      %p275 = pneg %p113
      %p276 = pneg %p137
      %p277 = pneg %p134
      %p278 = pneg %p158
      %p279 = pneg %p155
      %p280 = pneg %p184
      %p281 = pneg %p181
      %p282 = scmp.lt.s32.totalorder %s17, 1
      %s283 = scalar_select %p282, %s17, 1
      %s284 = smul.addr %s283, 4
      %s285 = smul.addr %s284, 4
      %s286 = scalar_lea.vmem %s6, %s285
      %p287 = scmp.lt.s32.totalorder %s17, 1
      %s288 = scalar_select %p287, %s17, 1
      %s289 = smul.addr %s288, 8
      %s290 = smul.addr %s289, 4
      %s291 = scalar_lea.vmem %s0, %s290
      %p292 = scmp.lt.s32.totalorder %s17, 1
      %s293 = scalar_select %p292, %s17, 1
      %s294 = smul.addr %s293, 8
      %s295 = smul.addr %s294, 4
      %s296 = scalar_lea.vmem %s1, %s295
      %p297 = scmp.lt.s32.totalorder %s17, 1
      %s298 = scalar_select %p297, %s17, 1
      %s299 = smul.addr %s298, 8
      %s300 = smul.addr %s299, 4
      %s301 = scalar_lea.vmem %s2, %s300
      %p302 = scmp.lt.s32.totalorder %s17, 1
      %s303 = scalar_select %p302, %s17, 1
      %s304 = smul.addr %s303, 8
      %s305 = smul.addr %s304, 4
      %s306 = scalar_lea.vmem %s3, %s305
      %p307 = scmp.lt.s32.totalorder %s17, 1
      %s308 = scalar_select %p307, %s17, 1
      %s309 = smul.addr %s308, 4
      %s310 = smul.addr %s309, 4
      %s311 = scalar_lea.vmem %s6, %s310
      %v313 = vld [vmem:[%s4] sm:$0xf]
      %v314 = vld [vmem:[%s4 + $0x4] sm:$0xf]
      %v315 = vld [vmem:[%s4 + $0x8] sm:$0xf]
      %v316 = vld [vmem:[%s4 + $0xc] sm:$0xf]
      %v317 = vld [vmem:[%s4 + $0x10] sm:$0xf]
      %v318 = vld [vmem:[%s4 + $0x14] sm:$0xf]
      %v319 = vld [vmem:[%s4 + $0x18] sm:$0xf]
      %v320 = vld [vmem:[%s4 + $0x1c] sm:$0xf]
      %v321 = vld [vmem:[%s4 + $0x20] sm:$0xf]
      %v322 = vld [vmem:[%s4 + $0x24] sm:$0xf]
      %v323 = vld [vmem:[%s4 + $0x28] sm:$0xf]
      %v324 = vld [vmem:[%s4 + $0x2c] sm:$0xf]
      %v325 = vld [vmem:[%s4 + $0x30] sm:$0xf]
      %v326 = vld [vmem:[%s4 + $0x34] sm:$0xf]
      %v327 = vld [vmem:[%s4 + $0x38] sm:$0xf]
      %v328 = vld [vmem:[%s4 + $0x3c] sm:$0xf]
      %v329 = vld [vmem:[%s4 + $0x40] sm:$0xf]
      %v330 = vld [vmem:[%s4 + $0x44] sm:$0xf]
      %v331 = vld [vmem:[%s4 + $0x48] sm:$0xf]
      %v332 = vld [vmem:[%s4 + $0x4c] sm:$0xf]
      %v333 = vld [vmem:[%s4 + $0x50] sm:$0xf]
      %v334 = vld [vmem:[%s4 + $0x54] sm:$0xf]
      %v335 = vld [vmem:[%s4 + $0x58] sm:$0xf]
      %v336 = vld [vmem:[%s4 + $0x5c] sm:$0xf]
      %v337 = vld [vmem:[%s4 + $0x60] sm:$0xf]
      %v338 = vld [vmem:[%s4 + $0x64] sm:$0xf]
      %v339 = vld [vmem:[%s4 + $0x68] sm:$0xf]
      %v340 = vld [vmem:[%s4 + $0x6c] sm:$0xf]
      %v341 = vld [vmem:[%s4 + $0x70] sm:$0xf]
      %v342 = vld [vmem:[%s4 + $0x74] sm:$0xf]
      %v343 = vld [vmem:[%s4 + $0x78] sm:$0xf]
      %v344 = vld [vmem:[%s4 + $0x7c] sm:$0xf]
      %v345 = vld [vmem:[%s291] sm:$0xff]
      %v346 = vld [vmem:[%s291 + $0x8] sm:$0xff]
      %v347 = vld [vmem:[%s291 + $0x10] sm:$0xff]
      %v348 = vld [vmem:[%s291 + $0x18] sm:$0x11]
      %v353 = vunpack.c.l.b16 %v345
      %v354 = vunpack.c.h.b16 %v345
      %v355 = vunpack.c.l.b16 %v346
      %v356 = vunpack.c.h.b16 %v346
      %v357 = vunpack.c.l.b16 %v347
      %v358 = vunpack.c.h.b16 %v347
      %v359 = vunpack.c.l.b16 %v348
      %v360 = vunpack.c.h.b16 %v348
      %v361 = vpack.c.b16 %v355, %v353
      %v362 = vpack.c.b16 %v356, %v354
      %v363 = vpack.c.b16 %v359, %v357
      %v364 = vpack.c.b16 %v360, %v358
      %v401 = vunpack.c.l.b16 %v313
      %v402 = vunpack.c.l.b16 %v314
      %v403 = vunpack.c.l.b16 %v315
      %v404 = vunpack.c.l.b16 %v316
      %v405 = vunpack.c.l.b16 %v317
      %v406 = vunpack.c.l.b16 %v318
      %v407 = vunpack.c.l.b16 %v319
      %v408 = vunpack.c.l.b16 %v320
      %v409 = vunpack.c.l.b16 %v321
      %v410 = vunpack.c.l.b16 %v322
      %v411 = vunpack.c.l.b16 %v323
      %v412 = vunpack.c.l.b16 %v324
      %v413 = vunpack.c.l.b16 %v325
      %v414 = vunpack.c.l.b16 %v326
      %v415 = vunpack.c.l.b16 %v327
      %v416 = vunpack.c.l.b16 %v328
      %v417 = vunpack.c.l.b16 %v329
      %v418 = vunpack.c.l.b16 %v330
      %v419 = vunpack.c.l.b16 %v331
      %v420 = vunpack.c.l.b16 %v332
      %v421 = vunpack.c.l.b16 %v333
      %v422 = vunpack.c.l.b16 %v334
      %v423 = vunpack.c.l.b16 %v335
      %v424 = vunpack.c.l.b16 %v336
      %v425 = vunpack.c.l.b16 %v337
      %v426 = vunpack.c.l.b16 %v338
      %v427 = vunpack.c.l.b16 %v339
      %v428 = vunpack.c.l.b16 %v340
      %v429 = vunpack.c.l.b16 %v341
      %v430 = vunpack.c.l.b16 %v342
      %v431 = vunpack.c.l.b16 %v343
      %v432 = vunpack.c.l.b16 %v344
      %v433 = vpack.c.b16 %v402, %v401
      %v434 = vpack.c.b16 %v404, %v403
      %v435 = vpack.c.b16 %v406, %v405
      %v436 = vpack.c.b16 %v408, %v407
      %v437 = vpack.c.b16 %v410, %v409
      %v438 = vpack.c.b16 %v412, %v411
      %v439 = vpack.c.b16 %v414, %v413
      %v440 = vpack.c.b16 %v416, %v415
      %v441 = vpack.c.b16 %v418, %v417
      %v442 = vpack.c.b16 %v420, %v419
      %v443 = vpack.c.b16 %v422, %v421
      %v444 = vpack.c.b16 %v424, %v423
      %v445 = vpack.c.b16 %v426, %v425
      %v446 = vpack.c.b16 %v428, %v427
      %v447 = vpack.c.b16 %v430, %v429
      %v448 = vpack.c.b16 %v432, %v431
      %465 = vmatprep.subr.bf16.mxu0 0
      %466 = vmatpush1.bf16.msra.mxu0 %v433
      %467 = vmatprep.subr.bf16.mxu0 0
      %468 = vmatpush1.bf16.msra.mxu0 %v434
      %469 = vmatprep.subr.bf16.mxu0 0
      %470 = vmatpush1.bf16.msra.mxu0 %v435
      %471 = vmatprep.subr.bf16.mxu0 0
      %472 = vmatpush1.bf16.msra.mxu0 %v436
      %473 = vmatprep.subr.bf16.mxu0 0
      %474 = vmatpush1.bf16.msra.mxu0 %v437
      %475 = vmatprep.subr.bf16.mxu0 0
      %476 = vmatpush1.bf16.msra.mxu0 %v438
      %477 = vmatprep.subr.bf16.mxu0 0
      %478 = vmatpush1.bf16.msra.mxu0 %v439
      %479 = vmatprep.subr.bf16.mxu0 0
      %480 = vmatpush1.bf16.msra.mxu0 %v440
      %481 = vmatprep.subr.bf16.mxu0 0
      %482 = vmatpush1.bf16.msra.mxu0 %v441
      %483 = vmatprep.subr.bf16.mxu0 0
      %484 = vmatpush1.bf16.msra.mxu0 %v442
      %485 = vmatprep.subr.bf16.mxu0 0
      %486 = vmatpush1.bf16.msra.mxu0 %v443
      %487 = vmatprep.subr.bf16.mxu0 0
      %488 = vmatpush1.bf16.msra.mxu0 %v444
      %489 = vmatprep.subr.bf16.mxu0 0
      %490 = vmatpush1.bf16.msra.mxu0 %v445
      %491 = vmatprep.subr.bf16.mxu0 0
      %492 = vmatpush1.bf16.msra.mxu0 %v446
      %493 = vmatprep.subr.bf16.mxu0 0
      %494 = vmatpush1.bf16.msra.mxu0 %v447
      %495 = vmatprep.subr.bf16.mxu0 0
      %496 = vmatpush1.bf16.msra.mxu0 %v448
      %497 = vmatprep.mubr.bf16.mxu0 %v362
      %498 = vmatmul.mubr.bf16.gmra.mrb[0].mxu0 %v361
      %v499 = vpop.f32.mrb[0].mxu0
      %v500 = vadd.f32 0.0, %v499
      %v501 = vpop.f32.mrb[0].mxu0
      %v502 = vpop.f32.mrb[0].mxu0
      %v503 = vadd.f32 0.0, %v502
      %v504 = vpop.f32.mrb[0].mxu0
      %505 = vmatprep.mubr.bf16.mxu0 %v364
      %506 = vmatmul.mubr.bf16.gmra.mrb[0].mxu0 %v363
      %v507 = vpop.f32.mrb[0].mxu0
      %v508 = vadd.f32 0.0, %v507
      %v509 = vpop.f32.mrb[0].mxu0
      %v510 = vpop.f32.mrb[0].mxu0
      %v511 = vadd.f32 0.0, %v510
      %v512 = vpop.f32.mrb[0].mxu0
      %513 = vdwg.mxu0
      %v514 = vld [vmem:[%s296] sm:$0xff]
      %v515 = vld [vmem:[%s296 + $0x8] sm:$0xff]
      %v516 = vld [vmem:[%s296 + $0x10] sm:$0xff]
      %v517 = vld [vmem:[%s296 + $0x18] sm:$0x11]
      %v522 = vunpack.c.l.b16 %v514
      %v523 = vunpack.c.h.b16 %v514
      %v524 = vunpack.c.l.b16 %v515
      %v525 = vunpack.c.h.b16 %v515
      %v526 = vunpack.c.l.b16 %v516
      %v527 = vunpack.c.h.b16 %v516
      %v528 = vunpack.c.l.b16 %v517
      %v529 = vunpack.c.h.b16 %v517
      %v530 = vpack.c.b16 %v524, %v522
      %v531 = vpack.c.b16 %v525, %v523
      %v532 = vpack.c.b16 %v528, %v526
      %v533 = vpack.c.b16 %v529, %v527
      %538 = vmatprep.subr.bf16.mxu0 0
      %539 = vmatpush1.bf16.msra.mxu0 %v433
      %540 = vmatprep.subr.bf16.mxu0 0
      %541 = vmatpush1.bf16.msra.mxu0 %v434
      %542 = vmatprep.subr.bf16.mxu0 0
      %543 = vmatpush1.bf16.msra.mxu0 %v435
      %544 = vmatprep.subr.bf16.mxu0 0
      %545 = vmatpush1.bf16.msra.mxu0 %v436
      %546 = vmatprep.subr.bf16.mxu0 0
      %547 = vmatpush1.bf16.msra.mxu0 %v437
      %548 = vmatprep.subr.bf16.mxu0 0
      %549 = vmatpush1.bf16.msra.mxu0 %v438
      %550 = vmatprep.subr.bf16.mxu0 0
      %551 = vmatpush1.bf16.msra.mxu0 %v439
      %552 = vmatprep.subr.bf16.mxu0 0
      %553 = vmatpush1.bf16.msra.mxu0 %v440
      %554 = vmatprep.subr.bf16.mxu0 0
      %555 = vmatpush1.bf16.msra.mxu0 %v441
      %556 = vmatprep.subr.bf16.mxu0 0
      %557 = vmatpush1.bf16.msra.mxu0 %v442
      %558 = vmatprep.subr.bf16.mxu0 0
      %559 = vmatpush1.bf16.msra.mxu0 %v443
      %560 = vmatprep.subr.bf16.mxu0 0
      %561 = vmatpush1.bf16.msra.mxu0 %v444
      %562 = vmatprep.subr.bf16.mxu0 0
      %563 = vmatpush1.bf16.msra.mxu0 %v445
      %564 = vmatprep.subr.bf16.mxu0 0
      %565 = vmatpush1.bf16.msra.mxu0 %v446
      %566 = vmatprep.subr.bf16.mxu0 0
      %567 = vmatpush1.bf16.msra.mxu0 %v447
      %568 = vmatprep.subr.bf16.mxu0 0
      %569 = vmatpush1.bf16.msra.mxu0 %v448
      %570 = vmatprep.mubr.bf16.mxu0 %v531
      %571 = vmatmul.mubr.bf16.gmra.mrb[0].mxu0 %v530
      %v572 = vpop.f32.mrb[0].mxu0
      %v573 = vadd.f32 0.0, %v572
      %v574 = vpop.f32.mrb[0].mxu0
      %v575 = vpop.f32.mrb[0].mxu0
      %v576 = vadd.f32 0.0, %v575
      %v577 = vpop.f32.mrb[0].mxu0
      %578 = vmatprep.mubr.bf16.mxu0 %v533
      %579 = vmatmul.mubr.bf16.gmra.mrb[0].mxu0 %v532
      %v580 = vpop.f32.mrb[0].mxu0
      %v581 = vadd.f32 0.0, %v580
      %v582 = vpop.f32.mrb[0].mxu0
      %v583 = vpop.f32.mrb[0].mxu0
      %v584 = vadd.f32 0.0, %v583
      %v585 = vpop.f32.mrb[0].mxu0
      %586 = vdwg.mxu0
      %v587 = vmax.f32 %v500, %v573
      %v588 = vmax.f32 %v503, %v576
      %v589 = vmax.f32 %v508, %v581
      %v590 = vmax.f32 %v511, %v584
      %v591 = vld [vmem:[%s301] sm:$0xff]
      %v592 = vld [vmem:[%s301 + $0x8] sm:$0xff]
      %v593 = vld [vmem:[%s301 + $0x10] sm:$0xff]
      %v594 = vld [vmem:[%s301 + $0x18] sm:$0x11]
      %v599 = vunpack.c.l.b16 %v591
      %v600 = vunpack.c.h.b16 %v591
      %v601 = vunpack.c.l.b16 %v592
      %v602 = vunpack.c.h.b16 %v592
      %v603 = vunpack.c.l.b16 %v593
      %v604 = vunpack.c.h.b16 %v593
      %v605 = vunpack.c.l.b16 %v594
      %v606 = vunpack.c.h.b16 %v594
      %v607 = vpack.c.b16 %v601, %v599
      %v608 = vpack.c.b16 %v602, %v600
      %v609 = vpack.c.b16 %v605, %v603
      %v610 = vpack.c.b16 %v606, %v604
      %615 = vmatprep.subr.bf16.mxu0 0
      %616 = vmatpush1.bf16.msra.mxu0 %v433
      %617 = vmatprep.subr.bf16.mxu0 0
      %618 = vmatpush1.bf16.msra.mxu0 %v434
      %619 = vmatprep.subr.bf16.mxu0 0
      %620 = vmatpush1.bf16.msra.mxu0 %v435
      %621 = vmatprep.subr.bf16.mxu0 0
      %622 = vmatpush1.bf16.msra.mxu0 %v436
      %623 = vmatprep.subr.bf16.mxu0 0
      %624 = vmatpush1.bf16.msra.mxu0 %v437
      %625 = vmatprep.subr.bf16.mxu0 0
      %626 = vmatpush1.bf16.msra.mxu0 %v438
      %627 = vmatprep.subr.bf16.mxu0 0
      %628 = vmatpush1.bf16.msra.mxu0 %v439
      %629 = vmatprep.subr.bf16.mxu0 0
      %630 = vmatpush1.bf16.msra.mxu0 %v440
      %631 = vmatprep.subr.bf16.mxu0 0
      %632 = vmatpush1.bf16.msra.mxu0 %v441
      %633 = vmatprep.subr.bf16.mxu0 0
      %634 = vmatpush1.bf16.msra.mxu0 %v442
      %635 = vmatprep.subr.bf16.mxu0 0
      %636 = vmatpush1.bf16.msra.mxu0 %v443
      %637 = vmatprep.subr.bf16.mxu0 0
      %638 = vmatpush1.bf16.msra.mxu0 %v444
      %639 = vmatprep.subr.bf16.mxu0 0
      %640 = vmatpush1.bf16.msra.mxu0 %v445
      %641 = vmatprep.subr.bf16.mxu0 0
      %642 = vmatpush1.bf16.msra.mxu0 %v446
      %643 = vmatprep.subr.bf16.mxu0 0
      %644 = vmatpush1.bf16.msra.mxu0 %v447
      %645 = vmatprep.subr.bf16.mxu0 0
      %646 = vmatpush1.bf16.msra.mxu0 %v448
      %647 = vmatprep.mubr.bf16.mxu0 %v608
      %648 = vmatmul.mubr.bf16.gmra.mrb[0].mxu0 %v607
      %v649 = vpop.f32.mrb[0].mxu0
      %v650 = vadd.f32 0.0, %v649
      %v651 = vpop.f32.mrb[0].mxu0
      %v652 = vpop.f32.mrb[0].mxu0
      %v653 = vadd.f32 0.0, %v652
      %v654 = vpop.f32.mrb[0].mxu0
      %655 = vmatprep.mubr.bf16.mxu0 %v610
      %656 = vmatmul.mubr.bf16.gmra.mrb[0].mxu0 %v609
      %v657 = vpop.f32.mrb[0].mxu0
      %v658 = vadd.f32 0.0, %v657
      %v659 = vpop.f32.mrb[0].mxu0
      %v660 = vpop.f32.mrb[0].mxu0
      %v661 = vadd.f32 0.0, %v660
      %v662 = vpop.f32.mrb[0].mxu0
      %663 = vdwg.mxu0
      %v664 = vld [vmem:[%s306] sm:$0xff]
      %v665 = vld [vmem:[%s306 + $0x8] sm:$0xff]
      %v666 = vld [vmem:[%s306 + $0x10] sm:$0xff]
      %v667 = vld [vmem:[%s306 + $0x18] sm:$0x11]
      %v672 = vunpack.c.l.b16 %v664
      %v673 = vunpack.c.h.b16 %v664
      %v674 = vunpack.c.l.b16 %v665
      %v675 = vunpack.c.h.b16 %v665
      %v676 = vunpack.c.l.b16 %v666
      %v677 = vunpack.c.h.b16 %v666
      %v678 = vunpack.c.l.b16 %v667
      %v679 = vunpack.c.h.b16 %v667
      %v680 = vpack.c.b16 %v674, %v672
      %v681 = vpack.c.b16 %v675, %v673
      %v682 = vpack.c.b16 %v678, %v676
      %v683 = vpack.c.b16 %v679, %v677
      %688 = vmatprep.subr.bf16.mxu0 0
      %689 = vmatpush1.bf16.msra.mxu0 %v433
      %690 = vmatprep.subr.bf16.mxu0 0
      %691 = vmatpush1.bf16.msra.mxu0 %v434
      %692 = vmatprep.subr.bf16.mxu0 0
      %693 = vmatpush1.bf16.msra.mxu0 %v435
      %694 = vmatprep.subr.bf16.mxu0 0
      %695 = vmatpush1.bf16.msra.mxu0 %v436
      %696 = vmatprep.subr.bf16.mxu0 0
      %697 = vmatpush1.bf16.msra.mxu0 %v437
      %698 = vmatprep.subr.bf16.mxu0 0
      %699 = vmatpush1.bf16.msra.mxu0 %v438
      %700 = vmatprep.subr.bf16.mxu0 0
      %701 = vmatpush1.bf16.msra.mxu0 %v439
      %702 = vmatprep.subr.bf16.mxu0 0
      %703 = vmatpush1.bf16.msra.mxu0 %v440
      %704 = vmatprep.subr.bf16.mxu0 0
      %705 = vmatpush1.bf16.msra.mxu0 %v441
      %706 = vmatprep.subr.bf16.mxu0 0
      %707 = vmatpush1.bf16.msra.mxu0 %v442
      %708 = vmatprep.subr.bf16.mxu0 0
      %709 = vmatpush1.bf16.msra.mxu0 %v443
      %710 = vmatprep.subr.bf16.mxu0 0
      %711 = vmatpush1.bf16.msra.mxu0 %v444
      %712 = vmatprep.subr.bf16.mxu0 0
      %713 = vmatpush1.bf16.msra.mxu0 %v445
      %714 = vmatprep.subr.bf16.mxu0 0
      %715 = vmatpush1.bf16.msra.mxu0 %v446
      %716 = vmatprep.subr.bf16.mxu0 0
      %717 = vmatpush1.bf16.msra.mxu0 %v447
      %718 = vmatprep.subr.bf16.mxu0 0
      %719 = vmatpush1.bf16.msra.mxu0 %v448
      %720 = vmatprep.mubr.bf16.mxu0 %v681
      %721 = vmatmul.mubr.bf16.gmra.mrb[0].mxu0 %v680
      %v722 = vpop.f32.mrb[0].mxu0
      %v723 = vadd.f32 0.0, %v722
      %v724 = vpop.f32.mrb[0].mxu0
      %v725 = vpop.f32.mrb[0].mxu0
      %v726 = vadd.f32 0.0, %v725
      %v727 = vpop.f32.mrb[0].mxu0
      %728 = vmatprep.mubr.bf16.mxu0 %v683
      %729 = vmatmul.mubr.bf16.gmra.mrb[0].mxu0 %v682
      %v730 = vpop.f32.mrb[0].mxu0
      %v731 = vadd.f32 0.0, %v730
      %v732 = vpop.f32.mrb[0].mxu0
      %v733 = vpop.f32.mrb[0].mxu0
      %v734 = vadd.f32 0.0, %v733
      %v735 = vpop.f32.mrb[0].mxu0
      %736 = vdwg.mxu0
      %v737 = vmax.f32 %v650, %v723
      %v738 = vmax.f32 %v653, %v726
      %v739 = vmax.f32 %v658, %v731
      %v740 = vmax.f32 %v661, %v734
      %v741 = vmax.f32 %v587, %v737
      %v742 = vmax.f32 %v588, %v738
      %v743 = vmax.f32 %v589, %v739
      %v744 = vmax.f32 %v590, %v740
      %v745 = vld [vmem:[%s5] sm:$0x1]
      %v747 = vlaneseq
      %v748 = vshrl.u32 %v747, 7
      %v749 = vsub.s32 0, %v748
      %v750 = vrot.slane %v745, %v749
      %v752 = vadd.f32 %v741, %v750
      %v753 = vadd.f32 %v742, %v750
      %v754 = vadd.f32 %v743, %v750
      %v755 = vadd.f32 %v744, %v750
      %v756 = vmax.f32 %v752, 0.0
      %v757 = vmax.f32 %v753, 0.0
      %v758 = vmax.f32 %v754, 0.0
      %v759 = vmax.f32 %v755, 0.0
      %v760 = vpack.c.bf16 %v757, %v756
      %v761 = vpack.c.bf16 %v759, %v758
      %v764 = vunpack.c.l.b16 %v760
      %v765 = vunpack.c.h.b16 %v760
      %v766 = vunpack.c.l.b16 %v761
      %v767 = vunpack.c.h.b16 %v761
      %v768 = vpack.c.b16 %v764, %v764
      %v769 = vpack.c.b16 %v765, %v765
      %v770 = vpack.c.b16 %v766, %v766
      %v771 = vpack.c.b16 %v767, %v767
      %776 = vst [vmem:[%s311] sm:$0xf] %v768
      %777 = vst [vmem:[%s311 + $0x4] sm:$0xf] %v769
      %778 = vst [vmem:[%s311 + $0x8] sm:$0xf] %v770
      %vm779 = vcmask 1040384
      %vm780 = vsmask.f32 256
      %vm781 = vmand %vm779, %vm780
      %v782 = vld [vmem:[%s311 + $0xc] sm:$0x1]
      %v783 = vsel %vm781, %v771, %v782
      %784 = vst [vmem:[%s311 + $0xc] sm:$0x1] %v783
      %p785 = scmp.lt.s32.totalorder %s17, 1
      %s786 = scalar_select %p785, %s17, 1
      %s787 = smul.addr %s786, 4
      %s788 = smul.addr %s787, 4
      %s789 = scalar_lea.vmem %s6, %s788
      // Predicated region
      $region45: #{_lenet_forward.4} parent=43 // pred_check
        %p790 = pneg %p181
      $region46: #{_lenet_forward.4} parent=43 // pred_check_branch
        %792 = sbr.rel (%p790) target = $region48
      $region47: #{_lenet_forward.4} parent=43 // pred_region
        _
      $region48: #{_lenet_forward.4} parent=43 // pred_fallthru
        _
    $region44: #{_lenet_forward.4} parent=5 // pred_fallthru
      _
    %p793 = scmp.le.s32.totalorder 2, %s12
    // Predicated region
    $region49: #{_lenet_forward.4} parent=5 // pred_check
      %p794 = pneg %p793
    $region50: #{_lenet_forward.4} parent=5 // pred_check_branch
      %796 = sbr.rel (%p794) target = $region52
    $region51: #{_lenet_forward.4} parent=5 // pred_region
      %s797 = ssub.s32 %s12, 2
      // Predicated region
      $region53: #{_lenet_forward.4} parent=51 // pred_check
        %p798 = pneg %p187
      $region54: #{_lenet_forward.4} parent=51 // pred_check_branch
        %800 = sbr.rel (%p798) target = $region56
      $region55: #{_lenet_forward.4} parent=51 // pred_region
        %p801 = scmp.lt.s32.totalorder %s18, 1
        %s802 = scalar_select %p801, %s18, 1
        %s803 = smul.addr %s802, 4
        %s804 = smul.addr %s803, 4
        %s805 = scalar_lea.vmem %s6, %s804
      $region56: #{_lenet_forward.4} parent=51 // pred_fallthru
        _
    $region52: #{_lenet_forward.4} parent=5 // pred_fallthru
      _
  $region6: #{_lenet_forward.4} parent=0 // loop_footer
    %s16 = sadd.s32 1, %s12
  $region7: #{_lenet_forward.4} parent=0 // loop_footer_branch
    %11 = sbr.rel target = $region3
  $region8: #{_lenet_forward.4} parent=0 // loop_exit
    _

// kernel: _lenet_forward.5
$region0: #{_lenet_forward.5}
  #allocation0 [shape = 'u32[]', space=smem, size = 0x4, offset = 0x4, fixed_abs, tag = 'smem constant byte address 0x4 - core index']
  #allocation1 [shape = 'u32[144,128]{1,0:T(1,128)}', space=vmem, size = 0x12000, scoped, tag = 'internal scratch']
  %s0 = inlined_call_operand.vmem [shape: bf16[2,3200], index: 0, kind: input, shape index: {}]
  %s1 = inlined_call_operand.vmem [shape: bf16[3200,128], index: 1, kind: input, shape index: {}]
  %s2 = inlined_call_operand.vmem [shape: f32[1,128], index: 2, kind: input, shape index: {}]
  %s3 = inlined_call_operand.vmem [shape: bf16[128,128], index: 3, kind: input, shape index: {}]
  %s4 = inlined_call_operand.vmem [shape: f32[1,128], index: 4, kind: input, shape index: {}]
  %s5 = inlined_call_operand.vmem [shape: bf16[128,128], index: 5, kind: input, shape index: {}]
  %s6 = inlined_call_operand.vmem [shape: f32[1,128], index: 6, kind: input, shape index: {}]
  %s7 = inlined_call_operand.hbm [shape: f32[2,128], index: 7, kind: output, shape index: {}]
  %s8 = sld [smem:[#allocation0]]
  $region38: #{_lenet_forward.5} parent=0
    _
  %s10 = ssub.s32 1, %s8
  %s11 = scalar_select 0, %s10, %s8
  $region1: #{_lenet_forward.5} parent=0
    #allocation2 [shape = 'u8[1024]{0}', space=vmem, size = 0x400, scoped, tag = 'output window, operand 0, single buffered']
    #allocation3 [shape = 's32[1]{0}', space=sflag, size = 0x4, scoped, tag = 'scoped memory for _lenet_forward.5']
    %12 = vsyncpa [#allocation3], 0
    // Predicated region
    $region2: #{_lenet_forward.5} parent=1 // pred_check
      _
    $region3: #{_lenet_forward.5} parent=1 // pred_check_branch
      %14 = sbr.rel (0) target = $region5
    $region4: #{_lenet_forward.5} parent=1 // pred_region
      _
    $region5: #{_lenet_forward.5} parent=1 // pred_fallthru
      _
    // Predicated region
    $region6: #{_lenet_forward.5} parent=1 // pred_check
      _
    $region7: #{_lenet_forward.5} parent=1 // pred_check_branch
      %16 = sbr.rel (0) target = $region9
    $region8: #{_lenet_forward.5} parent=1 // pred_region
      _
    $region9: #{_lenet_forward.5} parent=1 // pred_fallthru
      _
    // Predicated region
    $region10: #{_lenet_forward.5} parent=1 // pred_check
      _
    $region11: #{_lenet_forward.5} parent=1 // pred_check_branch
      %18 = sbr.rel (0) target = $region13
    $region12: #{_lenet_forward.5} parent=1 // pred_region
      _
    $region13: #{_lenet_forward.5} parent=1 // pred_fallthru
      _
    // Predicated region
    $region14: #{_lenet_forward.5} parent=1 // pred_check
      _
    $region15: #{_lenet_forward.5} parent=1 // pred_check_branch
      %20 = sbr.rel (0) target = $region17
    $region16: #{_lenet_forward.5} parent=1 // pred_region
      _
    $region17: #{_lenet_forward.5} parent=1 // pred_fallthru
      _
    // Predicated region
    $region18: #{_lenet_forward.5} parent=1 // pred_check
      _
    $region19: #{_lenet_forward.5} parent=1 // pred_check_branch
      %22 = sbr.rel (0) target = $region21
    $region20: #{_lenet_forward.5} parent=1 // pred_region
      _
    $region21: #{_lenet_forward.5} parent=1 // pred_fallthru
      _
    // Predicated region
    $region22: #{_lenet_forward.5} parent=1 // pred_check
      _
    $region23: #{_lenet_forward.5} parent=1 // pred_check_branch
      %24 = sbr.rel (0) target = $region25
    $region24: #{_lenet_forward.5} parent=1 // pred_region
      _
    $region25: #{_lenet_forward.5} parent=1 // pred_fallthru
      _
    // Predicated region
    $region26: #{_lenet_forward.5} parent=1 // pred_check
      _
    $region27: #{_lenet_forward.5} parent=1 // pred_check_branch
      %26 = sbr.rel (0) target = $region29
    $region28: #{_lenet_forward.5} parent=1 // pred_region
      _
    $region29: #{_lenet_forward.5} parent=1 // pred_fallthru
      _
    %v28 = vld [vmem:[%s0] sm:$0xff]
    %v29 = vld [vmem:[%s0 + $0x8] sm:$0xff]
    %v30 = vld [vmem:[%s0 + $0x10] sm:$0xff]
    %v31 = vld [vmem:[%s0 + $0x18] sm:$0x1]
    %v32 = vld [vmem:[%s1] sm:$0xf]
    %v33 = vld [vmem:[%s1 + $0x4] sm:$0xf]
    %v34 = vld [vmem:[%s1 + $0x8] sm:$0xf]
    %v35 = vld [vmem:[%s1 + $0xc] sm:$0xf]
    %v36 = vld [vmem:[%s1 + $0x10] sm:$0xf]
    %v37 = vld [vmem:[%s1 + $0x14] sm:$0xf]
    %v38 = vld [vmem:[%s1 + $0x18] sm:$0xf]
    %v39 = vld [vmem:[%s1 + $0x1c] sm:$0xf]
    %v40 = vld [vmem:[%s1 + $0x20] sm:$0xf]
    %v41 = vld [vmem:[%s1 + $0x24] sm:$0xf]
    %v42 = vld [vmem:[%s1 + $0x28] sm:$0xf]
    %v43 = vld [vmem:[%s1 + $0x2c] sm:$0xf]
    %v44 = vld [vmem:[%s1 + $0x30] sm:$0xf]
    %v45 = vld [vmem:[%s1 + $0x34] sm:$0xf]
    %v46 = vld [vmem:[%s1 + $0x38] sm:$0xf]
    %v47 = vld [vmem:[%s1 + $0x3c] sm:$0xf]
    %v48 = vld [vmem:[%s1 + $0x40] sm:$0xf]
    %v49 = vld [vmem:[%s1 + $0x44] sm:$0xf]
    %v50 = vld [vmem:[%s1 + $0x48] sm:$0xf]
    %v51 = vld [vmem:[%s1 + $0x4c] sm:$0xf]
    %v52 = vld [vmem:[%s1 + $0x50] sm:$0xf]
    %v53 = vld [vmem:[%s1 + $0x54] sm:$0xf]
    %v54 = vld [vmem:[%s1 + $0x58] sm:$0xf]
    %v55 = vld [vmem:[%s1 + $0x5c] sm:$0xf]
    %v56 = vld [vmem:[%s1 + $0x60] sm:$0xf]
    %v57 = vld [vmem:[%s1 + $0x64] sm:$0xf]
    %v58 = vld [vmem:[%s1 + $0x68] sm:$0xf]
    %v59 = vld [vmem:[%s1 + $0x6c] sm:$0xf]
    %v60 = vld [vmem:[%s1 + $0x70] sm:$0xf]
    %v61 = vld [vmem:[%s1 + $0x74] sm:$0xf]
    %v62 = vld [vmem:[%s1 + $0x78] sm:$0xf]
    %v63 = vld [vmem:[%s1 + $0x7c] sm:$0xf]
    %v64 = vld [vmem:[%s1 + $0x80] sm:$0xf]
    %v65 = vld [vmem:[%s1 + $0x84] sm:$0xf]
    %v66 = vld [vmem:[%s1 + $0x88] sm:$0xf]
    %v67 = vld [vmem:[%s1 + $0x8c] sm:$0xf]
    %v68 = vld [vmem:[%s1 + $0x90] sm:$0xf]
    %v69 = vld [vmem:[%s1 + $0x94] sm:$0xf]
    %v70 = vld [vmem:[%s1 + $0x98] sm:$0xf]
    %v71 = vld [vmem:[%s1 + $0x9c] sm:$0xf]
    %v72 = vld [vmem:[%s1 + $0xa0] sm:$0xf]
    %v73 = vld [vmem:[%s1 + $0xa4] sm:$0xf]
    %v74 = vld [vmem:[%s1 + $0xa8] sm:$0xf]
    %v75 = vld [vmem:[%s1 + $0xac] sm:$0xf]
    %v76 = vld [vmem:[%s1 + $0xb0] sm:$0xf]
    %v77 = vld [vmem:[%s1 + $0xb4] sm:$0xf]
    %v78 = vld [vmem:[%s1 + $0xb8] sm:$0xf]
    %v79 = vld [vmem:[%s1 + $0xbc] sm:$0xf]
    %v80 = vld [vmem:[%s1 + $0xc0] sm:$0xf]
    %v81 = vld [vmem:[%s1 + $0xc4] sm:$0xf]
    %v82 = vld [vmem:[%s1 + $0xc8] sm:$0xf]
    %v83 = vld [vmem:[%s1 + $0xcc] sm:$0xf]
    %v84 = vld [vmem:[%s1 + $0xd0] sm:$0xf]
    %v85 = vld [vmem:[%s1 + $0xd4] sm:$0xf]
    %v86 = vld [vmem:[%s1 + $0xd8] sm:$0xf]
    %v87 = vld [vmem:[%s1 + $0xdc] sm:$0xf]
    %v88 = vld [vmem:[%s1 + $0xe0] sm:$0xf]
    %v89 = vld [vmem:[%s1 + $0xe4] sm:$0xf]
    %v90 = vld [vmem:[%s1 + $0xe8] sm:$0xf]
    %v91 = vld [vmem:[%s1 + $0xec] sm:$0xf]
    %v92 = vld [vmem:[%s1 + $0xf0] sm:$0xf]
    %v93 = vld [vmem:[%s1 + $0xf4] sm:$0xf]
    %v94 = vld [vmem:[%s1 + $0xf8] sm:$0xf]
    %v95 = vld [vmem:[%s1 + $0xfc] sm:$0xf]
    %v96 = vld [vmem:[%s1 + $0x100] sm:$0xf]
    %v97 = vld [vmem:[%s1 + $0x104] sm:$0xf]
    %v98 = vld [vmem:[%s1 + $0x108] sm:$0xf]
    %v99 = vld [vmem:[%s1 + $0x10c] sm:$0xf]
    %v100 = vld [vmem:[%s1 + $0x110] sm:$0xf]
    %v101 = vld [vmem:[%s1 + $0x114] sm:$0xf]
    %v102 = vld [vmem:[%s1 + $0x118] sm:$0xf]
    %v103 = vld [vmem:[%s1 + $0x11c] sm:$0xf]
    %v104 = vld [vmem:[%s1 + $0x120] sm:$0xf]
    %v105 = vld [vmem:[%s1 + $0x124] sm:$0xf]
    %v106 = vld [vmem:[%s1 + $0x128] sm:$0xf]
    %v107 = vld [vmem:[%s1 + $0x12c] sm:$0xf]
    %v108 = vld [vmem:[%s1 + $0x130] sm:$0xf]
    %v109 = vld [vmem:[%s1 + $0x134] sm:$0xf]
    %v110 = vld [vmem:[%s1 + $0x138] sm:$0xf]
    %v111 = vld [vmem:[%s1 + $0x13c] sm:$0xf]
    %v112 = vld [vmem:[%s1 + $0x140] sm:$0xf]
    %v113 = vld [vmem:[%s1 + $0x144] sm:$0xf]
    %v114 = vld [vmem:[%s1 + $0x148] sm:$0xf]
    %v115 = vld [vmem:[%s1 + $0x14c] sm:$0xf]
    %v116 = vld [vmem:[%s1 + $0x150] sm:$0xf]
    %v117 = vld [vmem:[%s1 + $0x154] sm:$0xf]
    %v118 = vld [vmem:[%s1 + $0x158] sm:$0xf]
    %v119 = vld [vmem:[%s1 + $0x15c] sm:$0xf]
    %v120 = vld [vmem:[%s1 + $0x160] sm:$0xf]
    %v121 = vld [vmem:[%s1 + $0x164] sm:$0xf]
    %v122 = vld [vmem:[%s1 + $0x168] sm:$0xf]
    %v123 = vld [vmem:[%s1 + $0x16c] sm:$0xf]
    %v124 = vld [vmem:[%s1 + $0x170] sm:$0xf]
    %v125 = vld [vmem:[%s1 + $0x174] sm:$0xf]
    %v126 = vld [vmem:[%s1 + $0x178] sm:$0xf]
    %v127 = vld [vmem:[%s1 + $0x17c] sm:$0xf]
    %v128 = vld [vmem:[%s1 + $0x180] sm:$0xf]
    %v129 = vld [vmem:[%s1 + $0x184] sm:$0xf]
    %v130 = vld [vmem:[%s1 + $0x188] sm:$0xf]
    %v131 = vld [vmem:[%s1 + $0x18c] sm:$0xf]
    %v132 = vld [vmem:[%s1 + $0x190] sm:$0xf]
    %v133 = vld [vmem:[%s1 + $0x194] sm:$0xf]
    %v134 = vld [vmem:[%s1 + $0x198] sm:$0xf]
    %v135 = vld [vmem:[%s1 + $0x19c] sm:$0xf]
    %v136 = vld [vmem:[%s1 + $0x1a0] sm:$0xf]
    %v137 = vld [vmem:[%s1 + $0x1a4] sm:$0xf]
    %v138 = vld [vmem:[%s1 + $0x1a8] sm:$0xf]
    %v139 = vld [vmem:[%s1 + $0x1ac] sm:$0xf]
    %v140 = vld [vmem:[%s1 + $0x1b0] sm:$0xf]
    %v141 = vld [vmem:[%s1 + $0x1b4] sm:$0xf]
    %v142 = vld [vmem:[%s1 + $0x1b8] sm:$0xf]
    %v143 = vld [vmem:[%s1 + $0x1bc] sm:$0xf]
    %v144 = vld [vmem:[%s1 + $0x1c0] sm:$0xf]
    %v145 = vld [vmem:[%s1 + $0x1c4] sm:$0xf]
    %v146 = vld [vmem:[%s1 + $0x1c8] sm:$0xf]
    %v147 = vld [vmem:[%s1 + $0x1cc] sm:$0xf]
    %v148 = vld [vmem:[%s1 + $0x1d0] sm:$0xf]
    %v149 = vld [vmem:[%s1 + $0x1d4] sm:$0xf]
    %v150 = vld [vmem:[%s1 + $0x1d8] sm:$0xf]
    %v151 = vld [vmem:[%s1 + $0x1dc] sm:$0xf]
    %v152 = vld [vmem:[%s1 + $0x1e0] sm:$0xf]
    %v153 = vld [vmem:[%s1 + $0x1e4] sm:$0xf]
    %v154 = vld [vmem:[%s1 + $0x1e8] sm:$0xf]
    %v155 = vld [vmem:[%s1 + $0x1ec] sm:$0xf]
    %v156 = vld [vmem:[%s1 + $0x1f0] sm:$0xf]
    %v157 = vld [vmem:[%s1 + $0x1f4] sm:$0xf]
    %v158 = vld [vmem:[%s1 + $0x1f8] sm:$0xf]
    %v159 = vld [vmem:[%s1 + $0x1fc] sm:$0xf]
    %v160 = vld [vmem:[%s1 + $0x200] sm:$0xf]
    %v161 = vld [vmem:[%s1 + $0x204] sm:$0xf]
    %v162 = vld [vmem:[%s1 + $0x208] sm:$0xf]
    %v163 = vld [vmem:[%s1 + $0x20c] sm:$0xf]
    %v164 = vld [vmem:[%s1 + $0x210] sm:$0xf]
    %v165 = vld [vmem:[%s1 + $0x214] sm:$0xf]
    %v166 = vld [vmem:[%s1 + $0x218] sm:$0xf]
    %v167 = vld [vmem:[%s1 + $0x21c] sm:$0xf]
    %v168 = vld [vmem:[%s1 + $0x220] sm:$0xf]
    %v169 = vld [vmem:[%s1 + $0x224] sm:$0xf]
    %v170 = vld [vmem:[%s1 + $0x228] sm:$0xf]
    %v171 = vld [vmem:[%s1 + $0x22c] sm:$0xf]
    %v172 = vld [vmem:[%s1 + $0x230] sm:$0xf]
    %v173 = vld [vmem:[%s1 + $0x234] sm:$0xf]
    %v174 = vld [vmem:[%s1 + $0x238] sm:$0xf]
    %v175 = vld [vmem:[%s1 + $0x23c] sm:$0xf]
    %v176 = vld [vmem:[%s1 + $0x240] sm:$0xf]
    %v177 = vld [vmem:[%s1 + $0x244] sm:$0xf]
    %v178 = vld [vmem:[%s1 + $0x248] sm:$0xf]
    %v179 = vld [vmem:[%s1 + $0x24c] sm:$0xf]
    %v180 = vld [vmem:[%s1 + $0x250] sm:$0xf]
    %v181 = vld [vmem:[%s1 + $0x254] sm:$0xf]
    %v182 = vld [vmem:[%s1 + $0x258] sm:$0xf]
    %v183 = vld [vmem:[%s1 + $0x25c] sm:$0xf]
    %v184 = vld [vmem:[%s1 + $0x260] sm:$0xf]
    %v185 = vld [vmem:[%s1 + $0x264] sm:$0xf]
    %v186 = vld [vmem:[%s1 + $0x268] sm:$0xf]
    %v187 = vld [vmem:[%s1 + $0x26c] sm:$0xf]
    %v188 = vld [vmem:[%s1 + $0x270] sm:$0xf]
    %v189 = vld [vmem:[%s1 + $0x274] sm:$0xf]
    %v190 = vld [vmem:[%s1 + $0x278] sm:$0xf]
    %v191 = vld [vmem:[%s1 + $0x27c] sm:$0xf]
    %v192 = vld [vmem:[%s1 + $0x280] sm:$0xf]
    %v193 = vld [vmem:[%s1 + $0x284] sm:$0xf]
    %v194 = vld [vmem:[%s1 + $0x288] sm:$0xf]
    %v195 = vld [vmem:[%s1 + $0x28c] sm:$0xf]
    %v196 = vld [vmem:[%s1 + $0x290] sm:$0xf]
    %v197 = vld [vmem:[%s1 + $0x294] sm:$0xf]
    %v198 = vld [vmem:[%s1 + $0x298] sm:$0xf]
    %v199 = vld [vmem:[%s1 + $0x29c] sm:$0xf]
    %v200 = vld [vmem:[%s1 + $0x2a0] sm:$0xf]
    %v201 = vld [vmem:[%s1 + $0x2a4] sm:$0xf]
    %v202 = vld [vmem:[%s1 + $0x2a8] sm:$0xf]
    %v203 = vld [vmem:[%s1 + $0x2ac] sm:$0xf]
    %v204 = vld [vmem:[%s1 + $0x2b0] sm:$0xf]
    %v205 = vld [vmem:[%s1 + $0x2b4] sm:$0xf]
    %v206 = vld [vmem:[%s1 + $0x2b8] sm:$0xf]
    %v207 = vld [vmem:[%s1 + $0x2bc] sm:$0xf]
    %v208 = vld [vmem:[%s1 + $0x2c0] sm:$0xf]
    %v209 = vld [vmem:[%s1 + $0x2c4] sm:$0xf]
    %v210 = vld [vmem:[%s1 + $0x2c8] sm:$0xf]
    %v211 = vld [vmem:[%s1 + $0x2cc] sm:$0xf]
    %v212 = vld [vmem:[%s1 + $0x2d0] sm:$0xf]
    %v213 = vld [vmem:[%s1 + $0x2d4] sm:$0xf]
    %v214 = vld [vmem:[%s1 + $0x2d8] sm:$0xf]
    %v215 = vld [vmem:[%s1 + $0x2dc] sm:$0xf]
    %v216 = vld [vmem:[%s1 + $0x2e0] sm:$0xf]
    %v217 = vld [vmem:[%s1 + $0x2e4] sm:$0xf]
    %v218 = vld [vmem:[%s1 + $0x2e8] sm:$0xf]
    %v219 = vld [vmem:[%s1 + $0x2ec] sm:$0xf]
    %v220 = vld [vmem:[%s1 + $0x2f0] sm:$0xf]
    %v221 = vld [vmem:[%s1 + $0x2f4] sm:$0xf]
    %v222 = vld [vmem:[%s1 + $0x2f8] sm:$0xf]
    %v223 = vld [vmem:[%s1 + $0x2fc] sm:$0xf]
    %v224 = vld [vmem:[%s1 + $0x300] sm:$0xf]
    %v225 = vld [vmem:[%s1 + $0x304] sm:$0xf]
    %v226 = vld [vmem:[%s1 + $0x308] sm:$0xf]
    %v227 = vld [vmem:[%s1 + $0x30c] sm:$0xf]
    %v228 = vld [vmem:[%s1 + $0x310] sm:$0xf]
    %v229 = vld [vmem:[%s1 + $0x314] sm:$0xf]
    %v230 = vld [vmem:[%s1 + $0x318] sm:$0xf]
    %v231 = vld [vmem:[%s1 + $0x31c] sm:$0xf]
    %v232 = vld [vmem:[%s1 + $0x320] sm:$0xf]
    %v233 = vld [vmem:[%s1 + $0x324] sm:$0xf]
    %v234 = vld [vmem:[%s1 + $0x328] sm:$0xf]
    %v235 = vld [vmem:[%s1 + $0x32c] sm:$0xf]
    %v236 = vld [vmem:[%s1 + $0x330] sm:$0xf]
    %v237 = vld [vmem:[%s1 + $0x334] sm:$0xf]
    %v238 = vld [vmem:[%s1 + $0x338] sm:$0xf]
    %v239 = vld [vmem:[%s1 + $0x33c] sm:$0xf]
    %v240 = vld [vmem:[%s1 + $0x340] sm:$0xf]
    %v241 = vld [vmem:[%s1 + $0x344] sm:$0xf]
    %v242 = vld [vmem:[%s1 + $0x348] sm:$0xf]
    %v243 = vld [vmem:[%s1 + $0x34c] sm:$0xf]
    %v244 = vld [vmem:[%s1 + $0x350] sm:$0xf]
    %v245 = vld [vmem:[%s1 + $0x354] sm:$0xf]
    %v246 = vld [vmem:[%s1 + $0x358] sm:$0xf]
    %v247 = vld [vmem:[%s1 + $0x35c] sm:$0xf]
    %v248 = vld [vmem:[%s1 + $0x360] sm:$0xf]
    %v249 = vld [vmem:[%s1 + $0x364] sm:$0xf]
    %v250 = vld [vmem:[%s1 + $0x368] sm:$0xf]
    %v251 = vld [vmem:[%s1 + $0x36c] sm:$0xf]
    %v252 = vld [vmem:[%s1 + $0x370] sm:$0xf]
    %v253 = vld [vmem:[%s1 + $0x374] sm:$0xf]
    %v254 = vld [vmem:[%s1 + $0x378] sm:$0xf]
    %v255 = vld [vmem:[%s1 + $0x37c] sm:$0xf]
    %v256 = vld [vmem:[%s1 + $0x380] sm:$0xf]
    %v257 = vld [vmem:[%s1 + $0x384] sm:$0xf]
    %v258 = vld [vmem:[%s1 + $0x388] sm:$0xf]
    %v259 = vld [vmem:[%s1 + $0x38c] sm:$0xf]
    %v260 = vld [vmem:[%s1 + $0x390] sm:$0xf]
    %v261 = vld [vmem:[%s1 + $0x394] sm:$0xf]
    %v262 = vld [vmem:[%s1 + $0x398] sm:$0xf]
    %v263 = vld [vmem:[%s1 + $0x39c] sm:$0xf]
    %v264 = vld [vmem:[%s1 + $0x3a0] sm:$0xf]
    %v265 = vld [vmem:[%s1 + $0x3a4] sm:$0xf]
    %v266 = vld [vmem:[%s1 + $0x3a8] sm:$0xf]
    %v267 = vld [vmem:[%s1 + $0x3ac] sm:$0xf]
    %v268 = vld [vmem:[%s1 + $0x3b0] sm:$0xf]
    %v269 = vld [vmem:[%s1 + $0x3b4] sm:$0xf]
    %v270 = vld [vmem:[%s1 + $0x3b8] sm:$0xf]
    %v271 = vld [vmem:[%s1 + $0x3bc] sm:$0xf]
    %v272 = vld [vmem:[%s1 + $0x3c0] sm:$0xf]
    %v273 = vld [vmem:[%s1 + $0x3c4] sm:$0xf]
    %v274 = vld [vmem:[%s1 + $0x3c8] sm:$0xf]
    %v275 = vld [vmem:[%s1 + $0x3cc] sm:$0xf]
    %v276 = vld [vmem:[%s1 + $0x3d0] sm:$0xf]
    %v277 = vld [vmem:[%s1 + $0x3d4] sm:$0xf]
    %v278 = vld [vmem:[%s1 + $0x3d8] sm:$0xf]
    %v279 = vld [vmem:[%s1 + $0x3dc] sm:$0xf]
    %v280 = vld [vmem:[%s1 + $0x3e0] sm:$0xf]
    %v281 = vld [vmem:[%s1 + $0x3e4] sm:$0xf]
    %v282 = vld [vmem:[%s1 + $0x3e8] sm:$0xf]
    %v283 = vld [vmem:[%s1 + $0x3ec] sm:$0xf]
    %v284 = vld [vmem:[%s1 + $0x3f0] sm:$0xf]
    %v285 = vld [vmem:[%s1 + $0x3f4] sm:$0xf]
    %v286 = vld [vmem:[%s1 + $0x3f8] sm:$0xf]
    %v287 = vld [vmem:[%s1 + $0x3fc] sm:$0xf]
    %v288 = vld [vmem:[%s1 + $0x400] sm:$0xf]
    %v289 = vld [vmem:[%s1 + $0x404] sm:$0xf]
    %v290 = vld [vmem:[%s1 + $0x408] sm:$0xf]
    %v291 = vld [vmem:[%s1 + $0x40c] sm:$0xf]
    %v292 = vld [vmem:[%s1 + $0x410] sm:$0xf]
    %v293 = vld [vmem:[%s1 + $0x414] sm:$0xf]
    %v294 = vld [vmem:[%s1 + $0x418] sm:$0xf]
    %v295 = vld [vmem:[%s1 + $0x41c] sm:$0xf]
    %v296 = vld [vmem:[%s1 + $0x420] sm:$0xf]
    %v297 = vld [vmem:[%s1 + $0x424] sm:$0xf]
    %v298 = vld [vmem:[%s1 + $0x428] sm:$0xf]
    %v299 = vld [vmem:[%s1 + $0x42c] sm:$0xf]
    %v300 = vld [vmem:[%s1 + $0x430] sm:$0xf]
    %v301 = vld [vmem:[%s1 + $0x434] sm:$0xf]
    %v302 = vld [vmem:[%s1 + $0x438] sm:$0xf]
    %v303 = vld [vmem:[%s1 + $0x43c] sm:$0xf]
    %v304 = vld [vmem:[%s1 + $0x440] sm:$0xf]
    %v305 = vld [vmem:[%s1 + $0x444] sm:$0xf]
    %v306 = vld [vmem:[%s1 + $0x448] sm:$0xf]
    %v307 = vld [vmem:[%s1 + $0x44c] sm:$0xf]
    %v308 = vld [vmem:[%s1 + $0x450] sm:$0xf]
    %v309 = vld [vmem:[%s1 + $0x454] sm:$0xf]
    %v310 = vld [vmem:[%s1 + $0x458] sm:$0xf]
    %v311 = vld [vmem:[%s1 + $0x45c] sm:$0xf]
    %v312 = vld [vmem:[%s1 + $0x460] sm:$0xf]
    %v313 = vld [vmem:[%s1 + $0x464] sm:$0xf]
    %v314 = vld [vmem:[%s1 + $0x468] sm:$0xf]
    %v315 = vld [vmem:[%s1 + $0x46c] sm:$0xf]
    %v316 = vld [vmem:[%s1 + $0x470] sm:$0xf]
    %v317 = vld [vmem:[%s1 + $0x474] sm:$0xf]
    %v318 = vld [vmem:[%s1 + $0x478] sm:$0xf]
    %v319 = vld [vmem:[%s1 + $0x47c] sm:$0xf]
    %v320 = vld [vmem:[%s1 + $0x480] sm:$0xf]
    %v321 = vld [vmem:[%s1 + $0x484] sm:$0xf]
    %v322 = vld [vmem:[%s1 + $0x488] sm:$0xf]
    %v323 = vld [vmem:[%s1 + $0x48c] sm:$0xf]
    %v324 = vld [vmem:[%s1 + $0x490] sm:$0xf]
    %v325 = vld [vmem:[%s1 + $0x494] sm:$0xf]
    %v326 = vld [vmem:[%s1 + $0x498] sm:$0xf]
    %v327 = vld [vmem:[%s1 + $0x49c] sm:$0xf]
    %v328 = vld [vmem:[%s1 + $0x4a0] sm:$0xf]
    %v329 = vld [vmem:[%s1 + $0x4a4] sm:$0xf]
    %v330 = vld [vmem:[%s1 + $0x4a8] sm:$0xf]
    %v331 = vld [vmem:[%s1 + $0x4ac] sm:$0xf]
    %v332 = vld [vmem:[%s1 + $0x4b0] sm:$0xf]
    %v333 = vld [vmem:[%s1 + $0x4b4] sm:$0xf]
    %v334 = vld [vmem:[%s1 + $0x4b8] sm:$0xf]
    %v335 = vld [vmem:[%s1 + $0x4bc] sm:$0xf]
    %v336 = vld [vmem:[%s1 + $0x4c0] sm:$0xf]
    %v337 = vld [vmem:[%s1 + $0x4c4] sm:$0xf]
    %v338 = vld [vmem:[%s1 + $0x4c8] sm:$0xf]
    %v339 = vld [vmem:[%s1 + $0x4cc] sm:$0xf]
    %v340 = vld [vmem:[%s1 + $0x4d0] sm:$0xf]
    %v341 = vld [vmem:[%s1 + $0x4d4] sm:$0xf]
    %v342 = vld [vmem:[%s1 + $0x4d8] sm:$0xf]
    %v343 = vld [vmem:[%s1 + $0x4dc] sm:$0xf]
    %v344 = vld [vmem:[%s1 + $0x4e0] sm:$0xf]
    %v345 = vld [vmem:[%s1 + $0x4e4] sm:$0xf]
    %v346 = vld [vmem:[%s1 + $0x4e8] sm:$0xf]
    %v347 = vld [vmem:[%s1 + $0x4ec] sm:$0xf]
    %v348 = vld [vmem:[%s1 + $0x4f0] sm:$0xf]
    %v349 = vld [vmem:[%s1 + $0x4f4] sm:$0xf]
    %v350 = vld [vmem:[%s1 + $0x4f8] sm:$0xf]
    %v351 = vld [vmem:[%s1 + $0x4fc] sm:$0xf]
    %v352 = vld [vmem:[%s1 + $0x500] sm:$0xf]
    %v353 = vld [vmem:[%s1 + $0x504] sm:$0xf]
    %v354 = vld [vmem:[%s1 + $0x508] sm:$0xf]
    %v355 = vld [vmem:[%s1 + $0x50c] sm:$0xf]
    %v356 = vld [vmem:[%s1 + $0x510] sm:$0xf]
    %v357 = vld [vmem:[%s1 + $0x514] sm:$0xf]
    %v358 = vld [vmem:[%s1 + $0x518] sm:$0xf]
    %v359 = vld [vmem:[%s1 + $0x51c] sm:$0xf]
    %v360 = vld [vmem:[%s1 + $0x520] sm:$0xf]
    %v361 = vld [vmem:[%s1 + $0x524] sm:$0xf]
    %v362 = vld [vmem:[%s1 + $0x528] sm:$0xf]
    %v363 = vld [vmem:[%s1 + $0x52c] sm:$0xf]
    %v364 = vld [vmem:[%s1 + $0x530] sm:$0xf]
    %v365 = vld [vmem:[%s1 + $0x534] sm:$0xf]
    %v366 = vld [vmem:[%s1 + $0x538] sm:$0xf]
    %v367 = vld [vmem:[%s1 + $0x53c] sm:$0xf]
    %v368 = vld [vmem:[%s1 + $0x540] sm:$0xf]
    %v369 = vld [vmem:[%s1 + $0x544] sm:$0xf]
    %v370 = vld [vmem:[%s1 + $0x548] sm:$0xf]
    %v371 = vld [vmem:[%s1 + $0x54c] sm:$0xf]
    %v372 = vld [vmem:[%s1 + $0x550] sm:$0xf]
    %v373 = vld [vmem:[%s1 + $0x554] sm:$0xf]
    %v374 = vld [vmem:[%s1 + $0x558] sm:$0xf]
    %v375 = vld [vmem:[%s1 + $0x55c] sm:$0xf]
    %v376 = vld [vmem:[%s1 + $0x560] sm:$0xf]
    %v377 = vld [vmem:[%s1 + $0x564] sm:$0xf]
    %v378 = vld [vmem:[%s1 + $0x568] sm:$0xf]
    %v379 = vld [vmem:[%s1 + $0x56c] sm:$0xf]
    %v380 = vld [vmem:[%s1 + $0x570] sm:$0xf]
    %v381 = vld [vmem:[%s1 + $0x574] sm:$0xf]
    %v382 = vld [vmem:[%s1 + $0x578] sm:$0xf]
    %v383 = vld [vmem:[%s1 + $0x57c] sm:$0xf]
    %v384 = vld [vmem:[%s1 + $0x580] sm:$0xf]
    %v385 = vld [vmem:[%s1 + $0x584] sm:$0xf]
    %v386 = vld [vmem:[%s1 + $0x588] sm:$0xf]
    %v387 = vld [vmem:[%s1 + $0x58c] sm:$0xf]
    %v388 = vld [vmem:[%s1 + $0x590] sm:$0xf]
    %v389 = vld [vmem:[%s1 + $0x594] sm:$0xf]
    %v390 = vld [vmem:[%s1 + $0x598] sm:$0xf]
    %v391 = vld [vmem:[%s1 + $0x59c] sm:$0xf]
    %v392 = vld [vmem:[%s1 + $0x5a0] sm:$0xf]
    %v393 = vld [vmem:[%s1 + $0x5a4] sm:$0xf]
    %v394 = vld [vmem:[%s1 + $0x5a8] sm:$0xf]
    %v395 = vld [vmem:[%s1 + $0x5ac] sm:$0xf]
    %v396 = vld [vmem:[%s1 + $0x5b0] sm:$0xf]
    %v397 = vld [vmem:[%s1 + $0x5b4] sm:$0xf]
    %v398 = vld [vmem:[%s1 + $0x5b8] sm:$0xf]
    %v399 = vld [vmem:[%s1 + $0x5bc] sm:$0xf]
    %v400 = vld [vmem:[%s1 + $0x5c0] sm:$0xf]
    %v401 = vld [vmem:[%s1 + $0x5c4] sm:$0xf]
    %v402 = vld [vmem:[%s1 + $0x5c8] sm:$0xf]
    %v403 = vld [vmem:[%s1 + $0x5cc] sm:$0xf]
    %v404 = vld [vmem:[%s1 + $0x5d0] sm:$0xf]
    %v405 = vld [vmem:[%s1 + $0x5d4] sm:$0xf]
    %v406 = vld [vmem:[%s1 + $0x5d8] sm:$0xf]
    %v407 = vld [vmem:[%s1 + $0x5dc] sm:$0xf]
    %v408 = vld [vmem:[%s1 + $0x5e0] sm:$0xf]
    %v409 = vld [vmem:[%s1 + $0x5e4] sm:$0xf]
    %v410 = vld [vmem:[%s1 + $0x5e8] sm:$0xf]
    %v411 = vld [vmem:[%s1 + $0x5ec] sm:$0xf]
    %v412 = vld [vmem:[%s1 + $0x5f0] sm:$0xf]
    %v413 = vld [vmem:[%s1 + $0x5f4] sm:$0xf]
    %v414 = vld [vmem:[%s1 + $0x5f8] sm:$0xf]
    %v415 = vld [vmem:[%s1 + $0x5fc] sm:$0xf]
    %v416 = vld [vmem:[%s1 + $0x600] sm:$0xf]
    %v417 = vld [vmem:[%s1 + $0x604] sm:$0xf]
    %v418 = vld [vmem:[%s1 + $0x608] sm:$0xf]
    %v419 = vld [vmem:[%s1 + $0x60c] sm:$0xf]
    %v420 = vld [vmem:[%s1 + $0x610] sm:$0xf]
    %v421 = vld [vmem:[%s1 + $0x614] sm:$0xf]
    %v422 = vld [vmem:[%s1 + $0x618] sm:$0xf]
    %v423 = vld [vmem:[%s1 + $0x61c] sm:$0xf]
    %v424 = vld [vmem:[%s1 + $0x620] sm:$0xf]
    %v425 = vld [vmem:[%s1 + $0x624] sm:$0xf]
    %v426 = vld [vmem:[%s1 + $0x628] sm:$0xf]
    %v427 = vld [vmem:[%s1 + $0x62c] sm:$0xf]
    %v428 = vld [vmem:[%s1 + $0x630] sm:$0xf]
    %v429 = vld [vmem:[%s1 + $0x634] sm:$0xf]
    %v430 = vld [vmem:[%s1 + $0x638] sm:$0xf]
    %v431 = vld [vmem:[%s1 + $0x63c] sm:$0xf]
    %v432 = vld [vmem:[%s2] sm:$0x1]
    %v434 = vlaneseq
    %v435 = vshrl.u32 %v434, 7
    %v436 = vsub.s32 0, %v435
    %v437 = vrot.slane %v432, %v436
    %v443 = vcombine.high %v28, %v28
    %v445 = vunpack.c.l.s4 1966171168
    %v446 = vunpack.c.0.s8 %v445
    %v447 = vlaneseq
    %v448 = vshrl.u32 %v447, 7
    %v449 = vsub.s32 %v446, %v448
    %v450 = vrot.slane %v28, %v449
    %v452 = vunpack.c.l.s4 1966171168
    %v453 = vunpack.c.0.s8 %v452
    %v454 = vlaneseq
    %v455 = vshrl.u32 %v454, 7
    %v456 = vsub.s32 %v453, %v455
    %v457 = vrot.slane %v443, %v456
    %v458 = vcombine.high %v450, %v450
    %v459 = vcombine.high %v457, %v457
    %v461 = vunpack.c.l.s4 1966171168
    %v462 = vunpack.c.0.s8 %v461
    %v463 = vlaneseq
    %v464 = vshrl.u32 %v463, 7
    %v465 = vsub.s32 %v462, %v464
    %v466 = vrot.slane %v450, %v465
    %v468 = vunpack.c.l.s4 1966171168
    %v469 = vunpack.c.0.s8 %v468
    %v470 = vlaneseq
    %v471 = vshrl.u32 %v470, 7
    %v472 = vsub.s32 %v469, %v471
    %v473 = vrot.slane %v457, %v472
    %v475 = vunpack.c.l.s4 1966171168
    %v476 = vunpack.c.0.s8 %v475
    %v477 = vlaneseq
    %v478 = vshrl.u32 %v477, 7
    %v479 = vsub.s32 %v476, %v478
    %v480 = vrot.slane %v458, %v479
    %v482 = vunpack.c.l.s4 1966171168
    %v483 = vunpack.c.0.s8 %v482
    %v484 = vlaneseq
    %v485 = vshrl.u32 %v484, 7
    %v486 = vsub.s32 %v483, %v485
    %v487 = vrot.slane %v459, %v486
    %v488 = vcombine.high %v466, %v466
    %v489 = vcombine.high %v473, %v473
    %v490 = vcombine.high %v480, %v480
    %v491 = vcombine.high %v487, %v487
    %v492 = vcombine.high %v29, %v29
    %v494 = vunpack.c.l.s4 1966171168
    %v495 = vunpack.c.0.s8 %v494
    %v496 = vlaneseq
    %v497 = vshrl.u32 %v496, 7
    %v498 = vsub.s32 %v495, %v497
    %v499 = vrot.slane %v29, %v498
    %v501 = vunpack.c.l.s4 1966171168
    %v502 = vunpack.c.0.s8 %v501
    %v503 = vlaneseq
    %v504 = vshrl.u32 %v503, 7
    %v505 = vsub.s32 %v502, %v504
    %v506 = vrot.slane %v492, %v505
    %v507 = vcombine.high %v499, %v499
    %v508 = vcombine.high %v506, %v506
    %v510 = vunpack.c.l.s4 1966171168
    %v511 = vunpack.c.0.s8 %v510
    %v512 = vlaneseq
    %v513 = vshrl.u32 %v512, 7
    %v514 = vsub.s32 %v511, %v513
    %v515 = vrot.slane %v499, %v514
    %v517 = vunpack.c.l.s4 1966171168
    %v518 = vunpack.c.0.s8 %v517
    %v519 = vlaneseq
    %v520 = vshrl.u32 %v519, 7
    %v521 = vsub.s32 %v518, %v520
    %v522 = vrot.slane %v506, %v521
    %v524 = vunpack.c.l.s4 1966171168
    %v525 = vunpack.c.0.s8 %v524
    %v526 = vlaneseq
    %v527 = vshrl.u32 %v526, 7
    %v528 = vsub.s32 %v525, %v527
    %v529 = vrot.slane %v507, %v528
    %v531 = vunpack.c.l.s4 1966171168
    %v532 = vunpack.c.0.s8 %v531
    %v533 = vlaneseq
    %v534 = vshrl.u32 %v533, 7
    %v535 = vsub.s32 %v532, %v534
    %v536 = vrot.slane %v508, %v535
    %v537 = vcombine.high %v515, %v515
    %v538 = vcombine.high %v522, %v522
    %v539 = vcombine.high %v529, %v529
    %v540 = vcombine.high %v536, %v536
    %v541 = vcombine.high %v30, %v30
    %v543 = vunpack.c.l.s4 1966171168
    %v544 = vunpack.c.0.s8 %v543
    %v545 = vlaneseq
    %v546 = vshrl.u32 %v545, 7
    %v547 = vsub.s32 %v544, %v546
    %v548 = vrot.slane %v30, %v547
    %v550 = vunpack.c.l.s4 1966171168
    %v551 = vunpack.c.0.s8 %v550
    %v552 = vlaneseq
    %v553 = vshrl.u32 %v552, 7
    %v554 = vsub.s32 %v551, %v553
    %v555 = vrot.slane %v541, %v554
    %v556 = vcombine.high %v548, %v548
    %v557 = vcombine.high %v555, %v555
    %v559 = vunpack.c.l.s4 1966171168
    %v560 = vunpack.c.0.s8 %v559
    %v561 = vlaneseq
    %v562 = vshrl.u32 %v561, 7
    %v563 = vsub.s32 %v560, %v562
    %v564 = vrot.slane %v548, %v563
    %v566 = vunpack.c.l.s4 1966171168
    %v567 = vunpack.c.0.s8 %v566
    %v568 = vlaneseq
    %v569 = vshrl.u32 %v568, 7
    %v570 = vsub.s32 %v567, %v569
    %v571 = vrot.slane %v555, %v570
    %v573 = vunpack.c.l.s4 1966171168
    %v574 = vunpack.c.0.s8 %v573
    %v575 = vlaneseq
    %v576 = vshrl.u32 %v575, 7
    %v577 = vsub.s32 %v574, %v576
    %v578 = vrot.slane %v556, %v577
    %v580 = vunpack.c.l.s4 1966171168
    %v581 = vunpack.c.0.s8 %v580
    %v582 = vlaneseq
    %v583 = vshrl.u32 %v582, 7
    %v584 = vsub.s32 %v581, %v583
    %v585 = vrot.slane %v557, %v584
    %v586 = vcombine.high %v564, %v564
    %v587 = vcombine.high %v571, %v571
    %v588 = vcombine.high %v578, %v578
    %v589 = vcombine.high %v585, %v585
    %v591 = vunpack.c.l.s4 1966171168
    %v592 = vunpack.c.0.s8 %v591
    %v593 = vlaneseq
    %v594 = vshrl.u32 %v593, 7
    %v595 = vsub.s32 %v592, %v594
    %v596 = vrot.slane %v31, %v595
    %v598 = vunpack.c.l.s4 1966171168
    %v599 = vunpack.c.0.s8 %v598
    %v600 = vlaneseq
    %v601 = vshrl.u32 %v600, 7
    %v602 = vsub.s32 %v599, %v601
    %v603 = vrot.slane %v596, %v602
    %v1029 = vunpack.c.l.b16 %v32
    %v1030 = vunpack.c.l.b16 %v33
    %v1031 = vunpack.c.l.b16 %v34
    %v1032 = vunpack.c.l.b16 %v35
    %v1033 = vunpack.c.l.b16 %v36
    %v1034 = vunpack.c.l.b16 %v37
    %v1035 = vunpack.c.l.b16 %v38
    %v1036 = vunpack.c.l.b16 %v39
    %v1037 = vunpack.c.l.b16 %v40
    %v1038 = vunpack.c.l.b16 %v41
    %v1039 = vunpack.c.l.b16 %v42
    %v1040 = vunpack.c.l.b16 %v43
    %v1041 = vunpack.c.l.b16 %v44
    %v1042 = vunpack.c.l.b16 %v45
    %v1043 = vunpack.c.l.b16 %v46
    %v1044 = vunpack.c.l.b16 %v47
    %v1045 = vunpack.c.l.b16 %v48
    %v1046 = vunpack.c.l.b16 %v49
    %v1047 = vunpack.c.l.b16 %v50
    %v1048 = vunpack.c.l.b16 %v51
    %v1049 = vunpack.c.l.b16 %v52
    %v1050 = vunpack.c.l.b16 %v53
    %v1051 = vunpack.c.l.b16 %v54
    %v1052 = vunpack.c.l.b16 %v55
    %v1053 = vunpack.c.l.b16 %v56
    %v1054 = vunpack.c.l.b16 %v57
    %v1055 = vunpack.c.l.b16 %v58
    %v1056 = vunpack.c.l.b16 %v59
    %v1057 = vunpack.c.l.b16 %v60
    %v1058 = vunpack.c.l.b16 %v61
    %v1059 = vunpack.c.l.b16 %v62
    %v1060 = vunpack.c.l.b16 %v63
    %v1061 = vunpack.c.l.b16 %v64
    %v1062 = vunpack.c.l.b16 %v65
    %v1063 = vunpack.c.l.b16 %v66
    %v1064 = vunpack.c.l.b16 %v67
    %v1065 = vunpack.c.l.b16 %v68
    %v1066 = vunpack.c.l.b16 %v69
    %v1067 = vunpack.c.l.b16 %v70
    %v1068 = vunpack.c.l.b16 %v71
    %v1069 = vunpack.c.l.b16 %v72
    %v1070 = vunpack.c.l.b16 %v73
    %v1071 = vunpack.c.l.b16 %v74
    %v1072 = vunpack.c.l.b16 %v75
    %v1073 = vunpack.c.l.b16 %v76
    %v1074 = vunpack.c.l.b16 %v77
    %v1075 = vunpack.c.l.b16 %v78
    %v1076 = vunpack.c.l.b16 %v79
    %v1077 = vunpack.c.l.b16 %v80
    %v1078 = vunpack.c.l.b16 %v81
    %v1079 = vunpack.c.l.b16 %v82
    %v1080 = vunpack.c.l.b16 %v83
    %v1081 = vunpack.c.l.b16 %v84
    %v1082 = vunpack.c.l.b16 %v85
    %v1083 = vunpack.c.l.b16 %v86
    %v1084 = vunpack.c.l.b16 %v87
    %v1085 = vunpack.c.l.b16 %v88
    %v1086 = vunpack.c.l.b16 %v89
    %v1087 = vunpack.c.l.b16 %v90
    %v1088 = vunpack.c.l.b16 %v91
    %v1089 = vunpack.c.l.b16 %v92
    %v1090 = vunpack.c.l.b16 %v93
    %v1091 = vunpack.c.l.b16 %v94
    %v1092 = vunpack.c.l.b16 %v95
    %v1093 = vunpack.c.l.b16 %v96
    %v1094 = vunpack.c.l.b16 %v97
    %v1095 = vunpack.c.l.b16 %v98
    %v1096 = vunpack.c.l.b16 %v99
    %v1097 = vunpack.c.l.b16 %v100
    %v1098 = vunpack.c.l.b16 %v101
    %v1099 = vunpack.c.l.b16 %v102
    %v1100 = vunpack.c.l.b16 %v103
    %v1101 = vunpack.c.l.b16 %v104
    %v1102 = vunpack.c.l.b16 %v105
    %v1103 = vunpack.c.l.b16 %v106
    %v1104 = vunpack.c.l.b16 %v107
    %v1105 = vunpack.c.l.b16 %v108
    %v1106 = vunpack.c.l.b16 %v109
    %v1107 = vunpack.c.l.b16 %v110
    %v1108 = vunpack.c.l.b16 %v111
    %v1109 = vunpack.c.l.b16 %v112
    %v1110 = vunpack.c.l.b16 %v113
    %v1111 = vunpack.c.l.b16 %v114
    %v1112 = vunpack.c.l.b16 %v115
    %v1113 = vunpack.c.l.b16 %v116
    %v1114 = vunpack.c.l.b16 %v117
    %v1115 = vunpack.c.l.b16 %v118
    %v1116 = vunpack.c.l.b16 %v119
    %v1117 = vunpack.c.l.b16 %v120
    %v1118 = vunpack.c.l.b16 %v121
    %v1119 = vunpack.c.l.b16 %v122
    %v1120 = vunpack.c.l.b16 %v123
    %v1121 = vunpack.c.l.b16 %v124
    %v1122 = vunpack.c.l.b16 %v125
    %v1123 = vunpack.c.l.b16 %v126
    %v1124 = vunpack.c.l.b16 %v127
    %v1125 = vunpack.c.l.b16 %v128
    %v1126 = vunpack.c.l.b16 %v129
    %v1127 = vunpack.c.l.b16 %v130
    %v1128 = vunpack.c.l.b16 %v131
    %v1129 = vunpack.c.l.b16 %v132
    %v1130 = vunpack.c.l.b16 %v133
    %v1131 = vunpack.c.l.b16 %v134
    %v1132 = vunpack.c.l.b16 %v135
    %v1133 = vunpack.c.l.b16 %v136
    %v1134 = vunpack.c.l.b16 %v137
    %v1135 = vunpack.c.l.b16 %v138
    %v1136 = vunpack.c.l.b16 %v139
    %v1137 = vunpack.c.l.b16 %v140
    %v1138 = vunpack.c.l.b16 %v141
    %v1139 = vunpack.c.l.b16 %v142
    %v1140 = vunpack.c.l.b16 %v143
    %v1141 = vunpack.c.l.b16 %v144
    %v1142 = vunpack.c.l.b16 %v145
    %v1143 = vunpack.c.l.b16 %v146
    %v1144 = vunpack.c.l.b16 %v147
    %v1145 = vunpack.c.l.b16 %v148
    %v1146 = vunpack.c.l.b16 %v149
    %v1147 = vunpack.c.l.b16 %v150
    %v1148 = vunpack.c.l.b16 %v151
    %v1149 = vunpack.c.l.b16 %v152
    %v1150 = vunpack.c.l.b16 %v153
    %v1151 = vunpack.c.l.b16 %v154
    %v1152 = vunpack.c.l.b16 %v155
    %v1153 = vunpack.c.l.b16 %v156
    %v1154 = vunpack.c.l.b16 %v157
    %v1155 = vunpack.c.l.b16 %v158
    %v1156 = vunpack.c.l.b16 %v159
    %v1157 = vunpack.c.l.b16 %v160
    %v1158 = vunpack.c.l.b16 %v161
    %v1159 = vunpack.c.l.b16 %v162
    %v1160 = vunpack.c.l.b16 %v163
    %v1161 = vunpack.c.l.b16 %v164
    %v1162 = vunpack.c.l.b16 %v165
    %v1163 = vunpack.c.l.b16 %v166
    %v1164 = vunpack.c.l.b16 %v167
    %v1165 = vunpack.c.l.b16 %v168
    %v1166 = vunpack.c.l.b16 %v169
    %v1167 = vunpack.c.l.b16 %v170
    %v1168 = vunpack.c.l.b16 %v171
    %v1169 = vunpack.c.l.b16 %v172
    %v1170 = vunpack.c.l.b16 %v173
    %v1171 = vunpack.c.l.b16 %v174
    %v1172 = vunpack.c.l.b16 %v175
    %v1173 = vunpack.c.l.b16 %v176
    %v1174 = vunpack.c.l.b16 %v177
    %v1175 = vunpack.c.l.b16 %v178
    %v1176 = vunpack.c.l.b16 %v179
    %v1177 = vunpack.c.l.b16 %v180
    %v1178 = vunpack.c.l.b16 %v181
    %v1179 = vunpack.c.l.b16 %v182
    %v1180 = vunpack.c.l.b16 %v183
    %v1181 = vunpack.c.l.b16 %v184
    %v1182 = vunpack.c.l.b16 %v185
    %v1183 = vunpack.c.l.b16 %v186
    %v1184 = vunpack.c.l.b16 %v187
    %v1185 = vunpack.c.l.b16 %v188
    %v1186 = vunpack.c.l.b16 %v189
    %v1187 = vunpack.c.l.b16 %v190
    %v1188 = vunpack.c.l.b16 %v191
    %v1189 = vunpack.c.l.b16 %v192
    %v1190 = vunpack.c.l.b16 %v193
    %v1191 = vunpack.c.l.b16 %v194
    %v1192 = vunpack.c.l.b16 %v195
    %v1193 = vunpack.c.l.b16 %v196
    %v1194 = vunpack.c.l.b16 %v197
    %v1195 = vunpack.c.l.b16 %v198
    %v1196 = vunpack.c.l.b16 %v199
    %v1197 = vunpack.c.l.b16 %v200
    %v1198 = vunpack.c.l.b16 %v201
    %v1199 = vunpack.c.l.b16 %v202
    %v1200 = vunpack.c.l.b16 %v203
    %v1201 = vunpack.c.l.b16 %v204
    %v1202 = vunpack.c.l.b16 %v205
    %v1203 = vunpack.c.l.b16 %v206
    %v1204 = vunpack.c.l.b16 %v207
    %v1205 = vunpack.c.l.b16 %v208
    %v1206 = vunpack.c.l.b16 %v209
    %v1207 = vunpack.c.l.b16 %v210
    %v1208 = vunpack.c.l.b16 %v211
    %v1209 = vunpack.c.l.b16 %v212
    %v1210 = vunpack.c.l.b16 %v213
    %v1211 = vunpack.c.l.b16 %v214
    %v1212 = vunpack.c.l.b16 %v215
    %v1213 = vunpack.c.l.b16 %v216
    %v1214 = vunpack.c.l.b16 %v217
    %v1215 = vunpack.c.l.b16 %v218
    %v1216 = vunpack.c.l.b16 %v219
    %v1217 = vunpack.c.l.b16 %v220
    %v1218 = vunpack.c.l.b16 %v221
    %v1219 = vunpack.c.l.b16 %v222
    %v1220 = vunpack.c.l.b16 %v223
    %v1221 = vunpack.c.l.b16 %v224
    %v1222 = vunpack.c.l.b16 %v225
    %v1223 = vunpack.c.l.b16 %v226
    %v1224 = vunpack.c.l.b16 %v227
    %v1225 = vunpack.c.l.b16 %v228
    %v1226 = vunpack.c.l.b16 %v229
    %v1227 = vunpack.c.l.b16 %v230
    %v1228 = vunpack.c.l.b16 %v231
    %v1229 = vunpack.c.l.b16 %v232
    %v1230 = vunpack.c.l.b16 %v233
    %v1231 = vunpack.c.l.b16 %v234
    %v1232 = vunpack.c.l.b16 %v235
    %v1233 = vunpack.c.l.b16 %v236
    %v1234 = vunpack.c.l.b16 %v237
    %v1235 = vunpack.c.l.b16 %v238
    %v1236 = vunpack.c.l.b16 %v239
    %v1237 = vunpack.c.l.b16 %v240
    %v1238 = vunpack.c.l.b16 %v241
    %v1239 = vunpack.c.l.b16 %v242
    %v1240 = vunpack.c.l.b16 %v243
    %v1241 = vunpack.c.l.b16 %v244
    %v1242 = vunpack.c.l.b16 %v245
    %v1243 = vunpack.c.l.b16 %v246
    %v1244 = vunpack.c.l.b16 %v247
    %v1245 = vunpack.c.l.b16 %v248
    %v1246 = vunpack.c.l.b16 %v249
    %v1247 = vunpack.c.l.b16 %v250
    %v1248 = vunpack.c.l.b16 %v251
    %v1249 = vunpack.c.l.b16 %v252
    %v1250 = vunpack.c.l.b16 %v253
    %v1251 = vunpack.c.l.b16 %v254
    %v1252 = vunpack.c.l.b16 %v255
    %v1253 = vunpack.c.l.b16 %v256
    %v1254 = vunpack.c.l.b16 %v257
    %v1255 = vunpack.c.l.b16 %v258
    %v1256 = vunpack.c.l.b16 %v259
    %v1257 = vunpack.c.l.b16 %v260
    %v1258 = vunpack.c.l.b16 %v261
    %v1259 = vunpack.c.l.b16 %v262
    %v1260 = vunpack.c.l.b16 %v263
    %v1261 = vunpack.c.l.b16 %v264
    %v1262 = vunpack.c.l.b16 %v265
    %v1263 = vunpack.c.l.b16 %v266
    %v1264 = vunpack.c.l.b16 %v267
    %v1265 = vunpack.c.l.b16 %v268
    %v1266 = vunpack.c.l.b16 %v269
    %v1267 = vunpack.c.l.b16 %v270
    %v1268 = vunpack.c.l.b16 %v271
    %v1269 = vunpack.c.l.b16 %v272
    %v1270 = vunpack.c.l.b16 %v273
    %v1271 = vunpack.c.l.b16 %v274
    %v1272 = vunpack.c.l.b16 %v275
    %v1273 = vunpack.c.l.b16 %v276
    %v1274 = vunpack.c.l.b16 %v277
    %v1275 = vunpack.c.l.b16 %v278
    %v1276 = vunpack.c.l.b16 %v279
    %v1277 = vunpack.c.l.b16 %v280
    %v1278 = vunpack.c.l.b16 %v281
    %v1279 = vunpack.c.l.b16 %v282
    %v1280 = vunpack.c.l.b16 %v283
    %v1281 = vunpack.c.l.b16 %v284
    %v1282 = vunpack.c.l.b16 %v285
    %v1283 = vunpack.c.l.b16 %v286
    %v1284 = vunpack.c.l.b16 %v287
    %v1285 = vunpack.c.l.b16 %v288
    %v1286 = vunpack.c.l.b16 %v289
    %v1287 = vunpack.c.l.b16 %v290
    %v1288 = vunpack.c.l.b16 %v291
    %v1289 = vunpack.c.l.b16 %v292
    %v1290 = vunpack.c.l.b16 %v293
    %v1291 = vunpack.c.l.b16 %v294
    %v1292 = vunpack.c.l.b16 %v295
    %v1293 = vunpack.c.l.b16 %v296
    %v1294 = vunpack.c.l.b16 %v297
    %v1295 = vunpack.c.l.b16 %v298
    %v1296 = vunpack.c.l.b16 %v299
    %v1297 = vunpack.c.l.b16 %v300
    %v1298 = vunpack.c.l.b16 %v301
    %v1299 = vunpack.c.l.b16 %v302
    %v1300 = vunpack.c.l.b16 %v303
    %v1301 = vunpack.c.l.b16 %v304
    %v1302 = vunpack.c.l.b16 %v305
    %v1303 = vunpack.c.l.b16 %v306
    %v1304 = vunpack.c.l.b16 %v307
    %v1305 = vunpack.c.l.b16 %v308
    %v1306 = vunpack.c.l.b16 %v309
    %v1307 = vunpack.c.l.b16 %v310
    %v1308 = vunpack.c.l.b16 %v311
    %v1309 = vunpack.c.l.b16 %v312
    %v1310 = vunpack.c.l.b16 %v313
    %v1311 = vunpack.c.l.b16 %v314
    %v1312 = vunpack.c.l.b16 %v315
    %v1313 = vunpack.c.l.b16 %v316
    %v1314 = vunpack.c.l.b16 %v317
    %v1315 = vunpack.c.l.b16 %v318
    %v1316 = vunpack.c.l.b16 %v319
    %v1317 = vunpack.c.l.b16 %v320
    %v1318 = vunpack.c.l.b16 %v321
    %v1319 = vunpack.c.l.b16 %v322
    %v1320 = vunpack.c.l.b16 %v323
    %v1321 = vunpack.c.l.b16 %v324
    %v1322 = vunpack.c.l.b16 %v325
    %v1323 = vunpack.c.l.b16 %v326
    %v1324 = vunpack.c.l.b16 %v327
    %v1325 = vunpack.c.l.b16 %v328
    %v1326 = vunpack.c.l.b16 %v329
    %v1327 = vunpack.c.l.b16 %v330
    %v1328 = vunpack.c.l.b16 %v331
    %v1329 = vunpack.c.l.b16 %v332
    %v1330 = vunpack.c.l.b16 %v333
    %v1331 = vunpack.c.l.b16 %v334
    %v1332 = vunpack.c.l.b16 %v335
    %v1333 = vunpack.c.l.b16 %v336
    %v1334 = vunpack.c.l.b16 %v337
    %v1335 = vunpack.c.l.b16 %v338
    %v1336 = vunpack.c.l.b16 %v339
    %v1337 = vunpack.c.l.b16 %v340
    %v1338 = vunpack.c.l.b16 %v341
    %v1339 = vunpack.c.l.b16 %v342
    %v1340 = vunpack.c.l.b16 %v343
    %v1341 = vunpack.c.l.b16 %v344
    %v1342 = vunpack.c.l.b16 %v345
    %v1343 = vunpack.c.l.b16 %v346
    %v1344 = vunpack.c.l.b16 %v347
    %v1345 = vunpack.c.l.b16 %v348
    %v1346 = vunpack.c.l.b16 %v349
    %v1347 = vunpack.c.l.b16 %v350
    %v1348 = vunpack.c.l.b16 %v351
    %v1349 = vunpack.c.l.b16 %v352
    %v1350 = vunpack.c.l.b16 %v353
    %v1351 = vunpack.c.l.b16 %v354
    %v1352 = vunpack.c.l.b16 %v355
    %v1353 = vunpack.c.l.b16 %v356
    %v1354 = vunpack.c.l.b16 %v357
    %v1355 = vunpack.c.l.b16 %v358
    %v1356 = vunpack.c.l.b16 %v359
    %v1357 = vunpack.c.l.b16 %v360
    %v1358 = vunpack.c.l.b16 %v361
    %v1359 = vunpack.c.l.b16 %v362
    %v1360 = vunpack.c.l.b16 %v363
    %v1361 = vunpack.c.l.b16 %v364
    %v1362 = vunpack.c.l.b16 %v365
    %v1363 = vunpack.c.l.b16 %v366
    %v1364 = vunpack.c.l.b16 %v367
    %v1365 = vunpack.c.l.b16 %v368
    %v1366 = vunpack.c.l.b16 %v369
    %v1367 = vunpack.c.l.b16 %v370
    %v1368 = vunpack.c.l.b16 %v371
    %v1369 = vunpack.c.l.b16 %v372
    %v1370 = vunpack.c.l.b16 %v373
    %v1371 = vunpack.c.l.b16 %v374
    %v1372 = vunpack.c.l.b16 %v375
    %v1373 = vunpack.c.l.b16 %v376
    %v1374 = vunpack.c.l.b16 %v377
    %v1375 = vunpack.c.l.b16 %v378
    %v1376 = vunpack.c.l.b16 %v379
    %v1377 = vunpack.c.l.b16 %v380
    %v1378 = vunpack.c.l.b16 %v381
    %v1379 = vunpack.c.l.b16 %v382
    %v1380 = vunpack.c.l.b16 %v383
    %v1381 = vunpack.c.l.b16 %v384
    %v1382 = vunpack.c.l.b16 %v385
    %v1383 = vunpack.c.l.b16 %v386
    %v1384 = vunpack.c.l.b16 %v387
    %v1385 = vunpack.c.l.b16 %v388
    %v1386 = vunpack.c.l.b16 %v389
    %v1387 = vunpack.c.l.b16 %v390
    %v1388 = vunpack.c.l.b16 %v391
    %v1389 = vunpack.c.l.b16 %v392
    %v1390 = vunpack.c.l.b16 %v393
    %v1391 = vunpack.c.l.b16 %v394
    %v1392 = vunpack.c.l.b16 %v395
    %v1393 = vunpack.c.l.b16 %v396
    %v1394 = vunpack.c.l.b16 %v397
    %v1395 = vunpack.c.l.b16 %v398
    %v1396 = vunpack.c.l.b16 %v399
    %v1397 = vunpack.c.l.b16 %v400
    %v1398 = vunpack.c.l.b16 %v401
    %v1399 = vunpack.c.l.b16 %v402
    %v1400 = vunpack.c.l.b16 %v403
    %v1401 = vunpack.c.l.b16 %v404
    %v1402 = vunpack.c.l.b16 %v405
    %v1403 = vunpack.c.l.b16 %v406
    %v1404 = vunpack.c.l.b16 %v407
    %v1405 = vunpack.c.l.b16 %v408
    %v1406 = vunpack.c.l.b16 %v409
    %v1407 = vunpack.c.l.b16 %v410
    %v1408 = vunpack.c.l.b16 %v411
    %v1409 = vunpack.c.l.b16 %v412
    %v1410 = vunpack.c.l.b16 %v413
    %v1411 = vunpack.c.l.b16 %v414
    %v1412 = vunpack.c.l.b16 %v415
    %v1413 = vunpack.c.l.b16 %v416
    %v1414 = vunpack.c.l.b16 %v417
    %v1415 = vunpack.c.l.b16 %v418
    %v1416 = vunpack.c.l.b16 %v419
    %v1417 = vunpack.c.l.b16 %v420
    %v1418 = vunpack.c.l.b16 %v421
    %v1419 = vunpack.c.l.b16 %v422
    %v1420 = vunpack.c.l.b16 %v423
    %v1421 = vunpack.c.l.b16 %v424
    %v1422 = vunpack.c.l.b16 %v425
    %v1423 = vunpack.c.l.b16 %v426
    %v1424 = vunpack.c.l.b16 %v427
    %v1425 = vunpack.c.l.b16 %v428
    %v1426 = vunpack.c.l.b16 %v429
    %v1427 = vunpack.c.l.b16 %v430
    %v1428 = vunpack.c.l.b16 %v431
    %v1429 = vpack.c.b16 %v1030, %v1029
    %v1430 = vpack.c.b16 %v1032, %v1031
    %v1431 = vpack.c.b16 %v1034, %v1033
    %v1432 = vpack.c.b16 %v1036, %v1035
    %v1433 = vpack.c.b16 %v1038, %v1037
    %v1434 = vpack.c.b16 %v1040, %v1039
    %v1435 = vpack.c.b16 %v1042, %v1041
    %v1436 = vpack.c.b16 %v1044, %v1043
    %v1437 = vpack.c.b16 %v1046, %v1045
    %v1438 = vpack.c.b16 %v1048, %v1047
    %v1439 = vpack.c.b16 %v1050, %v1049
    %v1440 = vpack.c.b16 %v1052, %v1051
    %v1441 = vpack.c.b16 %v1054, %v1053
    %v1442 = vpack.c.b16 %v1056, %v1055
    %v1443 = vpack.c.b16 %v1058, %v1057
    %v1444 = vpack.c.b16 %v1060, %v1059
    %v1445 = vpack.c.b16 %v1062, %v1061
    %v1446 = vpack.c.b16 %v1064, %v1063
    %v1447 = vpack.c.b16 %v1066, %v1065
    %v1448 = vpack.c.b16 %v1068, %v1067
    %v1449 = vpack.c.b16 %v1070, %v1069
    %v1450 = vpack.c.b16 %v1072, %v1071
    %v1451 = vpack.c.b16 %v1074, %v1073
    %v1452 = vpack.c.b16 %v1076, %v1075
    %v1453 = vpack.c.b16 %v1078, %v1077
    %v1454 = vpack.c.b16 %v1080, %v1079
    %v1455 = vpack.c.b16 %v1082, %v1081
    %v1456 = vpack.c.b16 %v1084, %v1083
    %v1457 = vpack.c.b16 %v1086, %v1085
    %v1458 = vpack.c.b16 %v1088, %v1087
    %v1459 = vpack.c.b16 %v1090, %v1089
    %v1460 = vpack.c.b16 %v1092, %v1091
    %v1461 = vpack.c.b16 %v1094, %v1093
    %v1462 = vpack.c.b16 %v1096, %v1095
    %v1463 = vpack.c.b16 %v1098, %v1097
    %v1464 = vpack.c.b16 %v1100, %v1099
    %v1465 = vpack.c.b16 %v1102, %v1101
    %v1466 = vpack.c.b16 %v1104, %v1103
    %v1467 = vpack.c.b16 %v1106, %v1105
    %v1468 = vpack.c.b16 %v1108, %v1107
    %v1469 = vpack.c.b16 %v1110, %v1109
    %v1470 = vpack.c.b16 %v1112, %v1111
    %v1471 = vpack.c.b16 %v1114, %v1113
    %v1472 = vpack.c.b16 %v1116, %v1115
    %v1473 = vpack.c.b16 %v1118, %v1117
    %v1474 = vpack.c.b16 %v1120, %v1119
    %v1475 = vpack.c.b16 %v1122, %v1121
    %v1476 = vpack.c.b16 %v1124, %v1123
    %v1477 = vpack.c.b16 %v1126, %v1125
    %v1478 = vpack.c.b16 %v1128, %v1127
    %v1479 = vpack.c.b16 %v1130, %v1129
    %v1480 = vpack.c.b16 %v1132, %v1131
    %v1481 = vpack.c.b16 %v1134, %v1133
    %v1482 = vpack.c.b16 %v1136, %v1135
    %v1483 = vpack.c.b16 %v1138, %v1137
    %v1484 = vpack.c.b16 %v1140, %v1139
    %v1485 = vpack.c.b16 %v1142, %v1141
    %v1486 = vpack.c.b16 %v1144, %v1143
    %v1487 = vpack.c.b16 %v1146, %v1145
    %v1488 = vpack.c.b16 %v1148, %v1147
    %v1489 = vpack.c.b16 %v1150, %v1149
    %v1490 = vpack.c.b16 %v1152, %v1151
    %v1491 = vpack.c.b16 %v1154, %v1153
    %v1492 = vpack.c.b16 %v1156, %v1155
    %v1493 = vpack.c.b16 %v1158, %v1157
    %v1494 = vpack.c.b16 %v1160, %v1159
    %v1495 = vpack.c.b16 %v1162, %v1161
    %v1496 = vpack.c.b16 %v1164, %v1163
    %v1497 = vpack.c.b16 %v1166, %v1165
    %v1498 = vpack.c.b16 %v1168, %v1167
    %v1499 = vpack.c.b16 %v1170, %v1169
    %v1500 = vpack.c.b16 %v1172, %v1171
    %v1501 = vpack.c.b16 %v1174, %v1173
    %v1502 = vpack.c.b16 %v1176, %v1175
    %v1503 = vpack.c.b16 %v1178, %v1177
    %v1504 = vpack.c.b16 %v1180, %v1179
    %v1505 = vpack.c.b16 %v1182, %v1181
    %v1506 = vpack.c.b16 %v1184, %v1183
    %v1507 = vpack.c.b16 %v1186, %v1185
    %v1508 = vpack.c.b16 %v1188, %v1187
    %v1509 = vpack.c.b16 %v1190, %v1189
    %v1510 = vpack.c.b16 %v1192, %v1191
    %v1511 = vpack.c.b16 %v1194, %v1193
    %v1512 = vpack.c.b16 %v1196, %v1195
    %v1513 = vpack.c.b16 %v1198, %v1197
    %v1514 = vpack.c.b16 %v1200, %v1199
    %v1515 = vpack.c.b16 %v1202, %v1201
    %v1516 = vpack.c.b16 %v1204, %v1203
    %v1517 = vpack.c.b16 %v1206, %v1205
    %v1518 = vpack.c.b16 %v1208, %v1207
    %v1519 = vpack.c.b16 %v1210, %v1209
    %v1520 = vpack.c.b16 %v1212, %v1211
    %v1521 = vpack.c.b16 %v1214, %v1213
    %v1522 = vpack.c.b16 %v1216, %v1215
    %v1523 = vpack.c.b16 %v1218, %v1217
    %v1524 = vpack.c.b16 %v1220, %v1219
    %v1525 = vpack.c.b16 %v1222, %v1221
    %v1526 = vpack.c.b16 %v1224, %v1223
    %v1527 = vpack.c.b16 %v1226, %v1225
    %v1528 = vpack.c.b16 %v1228, %v1227
    %v1529 = vpack.c.b16 %v1230, %v1229
    %v1530 = vpack.c.b16 %v1232, %v1231
    %v1531 = vpack.c.b16 %v1234, %v1233
    %v1532 = vpack.c.b16 %v1236, %v1235
    %v1533 = vpack.c.b16 %v1238, %v1237
    %v1534 = vpack.c.b16 %v1240, %v1239
    %v1535 = vpack.c.b16 %v1242, %v1241
    %v1536 = vpack.c.b16 %v1244, %v1243
    %v1537 = vpack.c.b16 %v1246, %v1245
    %v1538 = vpack.c.b16 %v1248, %v1247
    %v1539 = vpack.c.b16 %v1250, %v1249
    %v1540 = vpack.c.b16 %v1252, %v1251
    %v1541 = vpack.c.b16 %v1254, %v1253
    %v1542 = vpack.c.b16 %v1256, %v1255
    %v1543 = vpack.c.b16 %v1258, %v1257
    %v1544 = vpack.c.b16 %v1260, %v1259
    %v1545 = vpack.c.b16 %v1262, %v1261
    %v1546 = vpack.c.b16 %v1264, %v1263
    %v1547 = vpack.c.b16 %v1266, %v1265
    %v1548 = vpack.c.b16 %v1268, %v1267
    %v1549 = vpack.c.b16 %v1270, %v1269
    %v1550 = vpack.c.b16 %v1272, %v1271
    %v1551 = vpack.c.b16 %v1274, %v1273
    %v1552 = vpack.c.b16 %v1276, %v1275
    %v1553 = vpack.c.b16 %v1278, %v1277
    %v1554 = vpack.c.b16 %v1280, %v1279
    %v1555 = vpack.c.b16 %v1282, %v1281
    %v1556 = vpack.c.b16 %v1284, %v1283
    %v1557 = vpack.c.b16 %v1286, %v1285
    %v1558 = vpack.c.b16 %v1288, %v1287
    %v1559 = vpack.c.b16 %v1290, %v1289
    %v1560 = vpack.c.b16 %v1292, %v1291
    %v1561 = vpack.c.b16 %v1294, %v1293
    %v1562 = vpack.c.b16 %v1296, %v1295
    %v1563 = vpack.c.b16 %v1298, %v1297
    %v1564 = vpack.c.b16 %v1300, %v1299
    %v1565 = vpack.c.b16 %v1302, %v1301
    %v1566 = vpack.c.b16 %v1304, %v1303
    %v1567 = vpack.c.b16 %v1306, %v1305
    %v1568 = vpack.c.b16 %v1308, %v1307
    %v1569 = vpack.c.b16 %v1310, %v1309
    %v1570 = vpack.c.b16 %v1312, %v1311
    %v1571 = vpack.c.b16 %v1314, %v1313
    %v1572 = vpack.c.b16 %v1316, %v1315
    %v1573 = vpack.c.b16 %v1318, %v1317
    %v1574 = vpack.c.b16 %v1320, %v1319
    %v1575 = vpack.c.b16 %v1322, %v1321
    %v1576 = vpack.c.b16 %v1324, %v1323
    %v1577 = vpack.c.b16 %v1326, %v1325
    %v1578 = vpack.c.b16 %v1328, %v1327
    %v1579 = vpack.c.b16 %v1330, %v1329
    %v1580 = vpack.c.b16 %v1332, %v1331
    %v1581 = vpack.c.b16 %v1334, %v1333
    %v1582 = vpack.c.b16 %v1336, %v1335
    %v1583 = vpack.c.b16 %v1338, %v1337
    %v1584 = vpack.c.b16 %v1340, %v1339
    %v1585 = vpack.c.b16 %v1342, %v1341
    %v1586 = vpack.c.b16 %v1344, %v1343
    %v1587 = vpack.c.b16 %v1346, %v1345
    %v1588 = vpack.c.b16 %v1348, %v1347
    %v1589 = vpack.c.b16 %v1350, %v1349
    %v1590 = vpack.c.b16 %v1352, %v1351
    %v1591 = vpack.c.b16 %v1354, %v1353
    %v1592 = vpack.c.b16 %v1356, %v1355
    %v1593 = vpack.c.b16 %v1358, %v1357
    %v1594 = vpack.c.b16 %v1360, %v1359
    %v1595 = vpack.c.b16 %v1362, %v1361
    %v1596 = vpack.c.b16 %v1364, %v1363
    %v1597 = vpack.c.b16 %v1366, %v1365
    %v1598 = vpack.c.b16 %v1368, %v1367
    %v1599 = vpack.c.b16 %v1370, %v1369
    %v1600 = vpack.c.b16 %v1372, %v1371
    %v1601 = vpack.c.b16 %v1374, %v1373
    %v1602 = vpack.c.b16 %v1376, %v1375
    %v1603 = vpack.c.b16 %v1378, %v1377
    %v1604 = vpack.c.b16 %v1380, %v1379
    %v1605 = vpack.c.b16 %v1382, %v1381
    %v1606 = vpack.c.b16 %v1384, %v1383
    %v1607 = vpack.c.b16 %v1386, %v1385
    %v1608 = vpack.c.b16 %v1388, %v1387
    %v1609 = vpack.c.b16 %v1390, %v1389
    %v1610 = vpack.c.b16 %v1392, %v1391
    %v1611 = vpack.c.b16 %v1394, %v1393
    %v1612 = vpack.c.b16 %v1396, %v1395
    %v1613 = vpack.c.b16 %v1398, %v1397
    %v1614 = vpack.c.b16 %v1400, %v1399
    %v1615 = vpack.c.b16 %v1402, %v1401
    %v1616 = vpack.c.b16 %v1404, %v1403
    %v1617 = vpack.c.b16 %v1406, %v1405
    %v1618 = vpack.c.b16 %v1408, %v1407
    %v1619 = vpack.c.b16 %v1410, %v1409
    %v1620 = vpack.c.b16 %v1412, %v1411
    %v1621 = vpack.c.b16 %v1414, %v1413
    %v1622 = vpack.c.b16 %v1416, %v1415
    %v1623 = vpack.c.b16 %v1418, %v1417
    %v1624 = vpack.c.b16 %v1420, %v1419
    %v1625 = vpack.c.b16 %v1422, %v1421
    %v1626 = vpack.c.b16 %v1424, %v1423
    %v1627 = vpack.c.b16 %v1426, %v1425
    %v1628 = vpack.c.b16 %v1428, %v1427
    %1829 = vmatprep.subr.bf16.mxu0 0
    %1830 = vmatpush1.bf16.msra.mxu0 %v1429
    %1831 = vmatprep.subr.bf16.mxu0 0
    %1832 = vmatpush1.bf16.msra.mxu0 %v1430
    %1833 = vmatprep.subr.bf16.mxu0 0
    %1834 = vmatpush1.bf16.msra.mxu0 %v1431
    %1835 = vmatprep.subr.bf16.mxu0 0
    %1836 = vmatpush1.bf16.msra.mxu0 %v1432
    %1837 = vmatprep.subr.bf16.mxu0 0
    %1838 = vmatpush1.bf16.msra.mxu0 %v1433
    %1839 = vmatprep.subr.bf16.mxu0 0
    %1840 = vmatpush1.bf16.msra.mxu0 %v1434
    %1841 = vmatprep.subr.bf16.mxu0 0
    %1842 = vmatpush1.bf16.msra.mxu0 %v1435
    %1843 = vmatprep.subr.bf16.mxu0 0
    %1844 = vmatpush1.bf16.msra.mxu0 %v1436
    %1845 = vmatprep.subr.bf16.mxu0 0
    %1846 = vmatpush1.bf16.msra.mxu0 %v1437
    %1847 = vmatprep.subr.bf16.mxu0 0
    %1848 = vmatpush1.bf16.msra.mxu0 %v1438
    %1849 = vmatprep.subr.bf16.mxu0 0
    %1850 = vmatpush1.bf16.msra.mxu0 %v1439
    %1851 = vmatprep.subr.bf16.mxu0 0
    %1852 = vmatpush1.bf16.msra.mxu0 %v1440
    %1853 = vmatprep.subr.bf16.mxu0 0
    %1854 = vmatpush1.bf16.msra.mxu0 %v1441
    %1855 = vmatprep.subr.bf16.mxu0 0
    %1856 = vmatpush1.bf16.msra.mxu0 %v1442
    %1857 = vmatprep.subr.bf16.mxu0 0
    %1858 = vmatpush1.bf16.msra.mxu0 %v1443
    %1859 = vmatprep.subr.bf16.mxu0 0
    %1860 = vmatpush1.bf16.msra.mxu0 %v1444
    %1861 = vmatprep.mubr.bf16.mxu0 %v480
    %1862 = vmatmul.mubr.bf16.gmra.mrb[0].mxu0 %v466
    %v1863 = vpop.f32.mrb[0].mxu0
    %v1864 = vadd.f32 %v437, %v1863
    %v1865 = vpop.f32.mrb[0].mxu0
    %v1866 = vpop.f32.mrb[0].mxu0
    %v1867 = vpop.f32.mrb[0].mxu0
    %1868 = vdwg.mxu0
    %1869 = vmatprep.subr.bf16.mxu0 0
    %1870 = vmatpush1.bf16.msra.mxu0 %v1445
    %1871 = vmatprep.subr.bf16.mxu0 0
    %1872 = vmatpush1.bf16.msra.mxu0 %v1446
    %1873 = vmatprep.subr.bf16.mxu0 0
    %1874 = vmatpush1.bf16.msra.mxu0 %v1447
    %1875 = vmatprep.subr.bf16.mxu0 0
    %1876 = vmatpush1.bf16.msra.mxu0 %v1448
    %1877 = vmatprep.subr.bf16.mxu0 0
    %1878 = vmatpush1.bf16.msra.mxu0 %v1449
    %1879 = vmatprep.subr.bf16.mxu0 0
    %1880 = vmatpush1.bf16.msra.mxu0 %v1450
    %1881 = vmatprep.subr.bf16.mxu0 0
    %1882 = vmatpush1.bf16.msra.mxu0 %v1451
    %1883 = vmatprep.subr.bf16.mxu0 0
    %1884 = vmatpush1.bf16.msra.mxu0 %v1452
    %1885 = vmatprep.subr.bf16.mxu0 0
    %1886 = vmatpush1.bf16.msra.mxu0 %v1453
    %1887 = vmatprep.subr.bf16.mxu0 0
    %1888 = vmatpush1.bf16.msra.mxu0 %v1454
    %1889 = vmatprep.subr.bf16.mxu0 0
    %1890 = vmatpush1.bf16.msra.mxu0 %v1455
    %1891 = vmatprep.subr.bf16.mxu0 0
    %1892 = vmatpush1.bf16.msra.mxu0 %v1456
    %1893 = vmatprep.subr.bf16.mxu0 0
    %1894 = vmatpush1.bf16.msra.mxu0 %v1457
    %1895 = vmatprep.subr.bf16.mxu0 0
    %1896 = vmatpush1.bf16.msra.mxu0 %v1458
    %1897 = vmatprep.subr.bf16.mxu0 0
    %1898 = vmatpush1.bf16.msra.mxu0 %v1459
    %1899 = vmatprep.subr.bf16.mxu0 0
    %1900 = vmatpush1.bf16.msra.mxu0 %v1460
    %1901 = vmatprep.mubr.bf16.mxu0 %v490
    %1902 = vmatmul.mubr.bf16.gmra.mrb[0].mxu0 %v488
    %v1903 = vpop.f32.mrb[0].mxu0
    %v1904 = vadd.f32 %v1864, %v1903
    %v1905 = vpop.f32.mrb[0].mxu0
    %v1906 = vpop.f32.mrb[0].mxu0
    %v1907 = vpop.f32.mrb[0].mxu0
    %1908 = vdwg.mxu0
    %1909 = vmatprep.subr.bf16.mxu0 0
    %1910 = vmatpush1.bf16.msra.mxu0 %v1461
    %1911 = vmatprep.subr.bf16.mxu0 0
    %1912 = vmatpush1.bf16.msra.mxu0 %v1462
    %1913 = vmatprep.subr.bf16.mxu0 0
    %1914 = vmatpush1.bf16.msra.mxu0 %v1463
    %1915 = vmatprep.subr.bf16.mxu0 0
    %1916 = vmatpush1.bf16.msra.mxu0 %v1464
    %1917 = vmatprep.subr.bf16.mxu0 0
    %1918 = vmatpush1.bf16.msra.mxu0 %v1465
    %1919 = vmatprep.subr.bf16.mxu0 0
    %1920 = vmatpush1.bf16.msra.mxu0 %v1466
    %1921 = vmatprep.subr.bf16.mxu0 0
    %1922 = vmatpush1.bf16.msra.mxu0 %v1467
    %1923 = vmatprep.subr.bf16.mxu0 0
    %1924 = vmatpush1.bf16.msra.mxu0 %v1468
    %1925 = vmatprep.subr.bf16.mxu0 0
    %1926 = vmatpush1.bf16.msra.mxu0 %v1469
    %1927 = vmatprep.subr.bf16.mxu0 0
    %1928 = vmatpush1.bf16.msra.mxu0 %v1470
    %1929 = vmatprep.subr.bf16.mxu0 0
    %1930 = vmatpush1.bf16.msra.mxu0 %v1471
    %1931 = vmatprep.subr.bf16.mxu0 0
    %1932 = vmatpush1.bf16.msra.mxu0 %v1472
    %1933 = vmatprep.subr.bf16.mxu0 0
    %1934 = vmatpush1.bf16.msra.mxu0 %v1473
    %1935 = vmatprep.subr.bf16.mxu0 0
    %1936 = vmatpush1.bf16.msra.mxu0 %v1474
    %1937 = vmatprep.subr.bf16.mxu0 0
    %1938 = vmatpush1.bf16.msra.mxu0 %v1475
    %1939 = vmatprep.subr.bf16.mxu0 0
    %1940 = vmatpush1.bf16.msra.mxu0 %v1476
    %1941 = vmatprep.mubr.bf16.mxu0 %v487
    %1942 = vmatmul.mubr.bf16.gmra.mrb[0].mxu0 %v473
    %v1943 = vpop.f32.mrb[0].mxu0
    %v1944 = vadd.f32 %v1904, %v1943
    %v1945 = vpop.f32.mrb[0].mxu0
    %v1946 = vpop.f32.mrb[0].mxu0
    %v1947 = vpop.f32.mrb[0].mxu0
    %1948 = vdwg.mxu0
    %1949 = vmatprep.subr.bf16.mxu0 0
    %1950 = vmatpush1.bf16.msra.mxu0 %v1477
    %1951 = vmatprep.subr.bf16.mxu0 0
    %1952 = vmatpush1.bf16.msra.mxu0 %v1478
    %1953 = vmatprep.subr.bf16.mxu0 0
    %1954 = vmatpush1.bf16.msra.mxu0 %v1479
    %1955 = vmatprep.subr.bf16.mxu0 0
    %1956 = vmatpush1.bf16.msra.mxu0 %v1480
    %1957 = vmatprep.subr.bf16.mxu0 0
    %1958 = vmatpush1.bf16.msra.mxu0 %v1481
    %1959 = vmatprep.subr.bf16.mxu0 0
    %1960 = vmatpush1.bf16.msra.mxu0 %v1482
    %1961 = vmatprep.subr.bf16.mxu0 0
    %1962 = vmatpush1.bf16.msra.mxu0 %v1483
    %1963 = vmatprep.subr.bf16.mxu0 0
    %1964 = vmatpush1.bf16.msra.mxu0 %v1484
    %1965 = vmatprep.subr.bf16.mxu0 0
    %1966 = vmatpush1.bf16.msra.mxu0 %v1485
    %1967 = vmatprep.subr.bf16.mxu0 0
    %1968 = vmatpush1.bf16.msra.mxu0 %v1486
    %1969 = vmatprep.subr.bf16.mxu0 0
    %1970 = vmatpush1.bf16.msra.mxu0 %v1487
    %1971 = vmatprep.subr.bf16.mxu0 0
    %1972 = vmatpush1.bf16.msra.mxu0 %v1488
    %1973 = vmatprep.subr.bf16.mxu0 0
    %1974 = vmatpush1.bf16.msra.mxu0 %v1489
    %1975 = vmatprep.subr.bf16.mxu0 0
    %1976 = vmatpush1.bf16.msra.mxu0 %v1490
    %1977 = vmatprep.subr.bf16.mxu0 0
    %1978 = vmatpush1.bf16.msra.mxu0 %v1491
    %1979 = vmatprep.subr.bf16.mxu0 0
    %1980 = vmatpush1.bf16.msra.mxu0 %v1492
    %1981 = vmatprep.mubr.bf16.mxu0 %v491
    %1982 = vmatmul.mubr.bf16.gmra.mrb[0].mxu0 %v489
    %v1983 = vpop.f32.mrb[0].mxu0
    %v1984 = vadd.f32 %v1944, %v1983
    %v1985 = vpop.f32.mrb[0].mxu0
    %v1986 = vpop.f32.mrb[0].mxu0
    %v1987 = vpop.f32.mrb[0].mxu0
    %1988 = vdwg.mxu0
    %1989 = vmatprep.subr.bf16.mxu0 0
    %1990 = vmatpush1.bf16.msra.mxu0 %v1493
    %1991 = vmatprep.subr.bf16.mxu0 0
    %1992 = vmatpush1.bf16.msra.mxu0 %v1494
    %1993 = vmatprep.subr.bf16.mxu0 0
    %1994 = vmatpush1.bf16.msra.mxu0 %v1495
    %1995 = vmatprep.subr.bf16.mxu0 0
    %1996 = vmatpush1.bf16.msra.mxu0 %v1496
    %1997 = vmatprep.subr.bf16.mxu0 0
    %1998 = vmatpush1.bf16.msra.mxu0 %v1497
    %1999 = vmatprep.subr.bf16.mxu0 0
    %2000 = vmatpush1.bf16.msra.mxu0 %v1498
    %2001 = vmatprep.subr.bf16.mxu0 0
    %2002 = vmatpush1.bf16.msra.mxu0 %v1499
    %2003 = vmatprep.subr.bf16.mxu0 0
    %2004 = vmatpush1.bf16.msra.mxu0 %v1500
    %2005 = vmatprep.subr.bf16.mxu0 0
    %2006 = vmatpush1.bf16.msra.mxu0 %v1501
    %2007 = vmatprep.subr.bf16.mxu0 0
    %2008 = vmatpush1.bf16.msra.mxu0 %v1502
    %2009 = vmatprep.subr.bf16.mxu0 0
    %2010 = vmatpush1.bf16.msra.mxu0 %v1503
    %2011 = vmatprep.subr.bf16.mxu0 0
    %2012 = vmatpush1.bf16.msra.mxu0 %v1504
    %2013 = vmatprep.subr.bf16.mxu0 0
    %2014 = vmatpush1.bf16.msra.mxu0 %v1505
    %2015 = vmatprep.subr.bf16.mxu0 0
    %2016 = vmatpush1.bf16.msra.mxu0 %v1506
    %2017 = vmatprep.subr.bf16.mxu0 0
    %2018 = vmatpush1.bf16.msra.mxu0 %v1507
    %2019 = vmatprep.subr.bf16.mxu0 0
    %2020 = vmatpush1.bf16.msra.mxu0 %v1508
    %2021 = vmatprep.mubr.bf16.mxu0 %v529
    %2022 = vmatmul.mubr.bf16.gmra.mrb[0].mxu0 %v515
    %v2023 = vpop.f32.mrb[0].mxu0
    %v2024 = vadd.f32 %v1984, %v2023
    %v2025 = vpop.f32.mrb[0].mxu0
    %v2026 = vpop.f32.mrb[0].mxu0
    %v2027 = vpop.f32.mrb[0].mxu0
    %2028 = vdwg.mxu0
    %2029 = vmatprep.subr.bf16.mxu0 0
    %2030 = vmatpush1.bf16.msra.mxu0 %v1509
    %2031 = vmatprep.subr.bf16.mxu0 0
    %2032 = vmatpush1.bf16.msra.mxu0 %v1510
    %2033 = vmatprep.subr.bf16.mxu0 0
    %2034 = vmatpush1.bf16.msra.mxu0 %v1511
    %2035 = vmatprep.subr.bf16.mxu0 0
    %2036 = vmatpush1.bf16.msra.mxu0 %v1512
    %2037 = vmatprep.subr.bf16.mxu0 0
    %2038 = vmatpush1.bf16.msra.mxu0 %v1513
    %2039 = vmatprep.subr.bf16.mxu0 0
    %2040 = vmatpush1.bf16.msra.mxu0 %v1514
    %2041 = vmatprep.subr.bf16.mxu0 0
    %2042 = vmatpush1.bf16.msra.mxu0 %v1515
    %2043 = vmatprep.subr.bf16.mxu0 0
    %2044 = vmatpush1.bf16.msra.mxu0 %v1516
    %2045 = vmatprep.subr.bf16.mxu0 0
    %2046 = vmatpush1.bf16.msra.mxu0 %v1517
    %2047 = vmatprep.subr.bf16.mxu0 0
    %2048 = vmatpush1.bf16.msra.mxu0 %v1518
    %2049 = vmatprep.subr.bf16.mxu0 0
    %2050 = vmatpush1.bf16.msra.mxu0 %v1519
    %2051 = vmatprep.subr.bf16.mxu0 0
    %2052 = vmatpush1.bf16.msra.mxu0 %v1520
    %2053 = vmatprep.subr.bf16.mxu0 0
    %2054 = vmatpush1.bf16.msra.mxu0 %v1521
    %2055 = vmatprep.subr.bf16.mxu0 0
    %2056 = vmatpush1.bf16.msra.mxu0 %v1522
    %2057 = vmatprep.subr.bf16.mxu0 0
    %2058 = vmatpush1.bf16.msra.mxu0 %v1523
    %2059 = vmatprep.subr.bf16.mxu0 0
    %2060 = vmatpush1.bf16.msra.mxu0 %v1524
    %2061 = vmatprep.mubr.bf16.mxu0 %v539
    %2062 = vmatmul.mubr.bf16.gmra.mrb[0].mxu0 %v537
    %v2063 = vpop.f32.mrb[0].mxu0
    %v2064 = vadd.f32 %v2024, %v2063
    %v2065 = vpop.f32.mrb[0].mxu0
    %v2066 = vpop.f32.mrb[0].mxu0
    %v2067 = vpop.f32.mrb[0].mxu0
    %2068 = vdwg.mxu0
    %2069 = vmatprep.subr.bf16.mxu0 0
    %2070 = vmatpush1.bf16.msra.mxu0 %v1525
    %2071 = vmatprep.subr.bf16.mxu0 0
    %2072 = vmatpush1.bf16.msra.mxu0 %v1526
    %2073 = vmatprep.subr.bf16.mxu0 0
    %2074 = vmatpush1.bf16.msra.mxu0 %v1527
    %2075 = vmatprep.subr.bf16.mxu0 0
    %2076 = vmatpush1.bf16.msra.mxu0 %v1528
    %2077 = vmatprep.subr.bf16.mxu0 0
    %2078 = vmatpush1.bf16.msra.mxu0 %v1529
    %2079 = vmatprep.subr.bf16.mxu0 0
    %2080 = vmatpush1.bf16.msra.mxu0 %v1530
    %2081 = vmatprep.subr.bf16.mxu0 0
    %2082 = vmatpush1.bf16.msra.mxu0 %v1531
    %2083 = vmatprep.subr.bf16.mxu0 0
    %2084 = vmatpush1.bf16.msra.mxu0 %v1532
    %2085 = vmatprep.subr.bf16.mxu0 0
    %2086 = vmatpush1.bf16.msra.mxu0 %v1533
    %2087 = vmatprep.subr.bf16.mxu0 0
    %2088 = vmatpush1.bf16.msra.mxu0 %v1534
    %2089 = vmatprep.subr.bf16.mxu0 0
    %2090 = vmatpush1.bf16.msra.mxu0 %v1535
    %2091 = vmatprep.subr.bf16.mxu0 0
    %2092 = vmatpush1.bf16.msra.mxu0 %v1536
    %2093 = vmatprep.subr.bf16.mxu0 0
    %2094 = vmatpush1.bf16.msra.mxu0 %v1537
    %2095 = vmatprep.subr.bf16.mxu0 0
    %2096 = vmatpush1.bf16.msra.mxu0 %v1538
    %2097 = vmatprep.subr.bf16.mxu0 0
    %2098 = vmatpush1.bf16.msra.mxu0 %v1539
    %2099 = vmatprep.subr.bf16.mxu0 0
    %2100 = vmatpush1.bf16.msra.mxu0 %v1540
    %2101 = vmatprep.mubr.bf16.mxu0 %v536
    %2102 = vmatmul.mubr.bf16.gmra.mrb[0].mxu0 %v522
    %v2103 = vpop.f32.mrb[0].mxu0
    %v2104 = vadd.f32 %v2064, %v2103
    %v2105 = vpop.f32.mrb[0].mxu0
    %v2106 = vpop.f32.mrb[0].mxu0
    %v2107 = vpop.f32.mrb[0].mxu0
    %2108 = vdwg.mxu0
    %2109 = vmatprep.subr.bf16.mxu0 0
    %2110 = vmatpush1.bf16.msra.mxu0 %v1541
    %2111 = vmatprep.subr.bf16.mxu0 0
    %2112 = vmatpush1.bf16.msra.mxu0 %v1542
    %2113 = vmatprep.subr.bf16.mxu0 0
    %2114 = vmatpush1.bf16.msra.mxu0 %v1543
    %2115 = vmatprep.subr.bf16.mxu0 0
    %2116 = vmatpush1.bf16.msra.mxu0 %v1544
    %2117 = vmatprep.subr.bf16.mxu0 0
    %2118 = vmatpush1.bf16.msra.mxu0 %v1545
    %2119 = vmatprep.subr.bf16.mxu0 0
    %2120 = vmatpush1.bf16.msra.mxu0 %v1546
    %2121 = vmatprep.subr.bf16.mxu0 0
    %2122 = vmatpush1.bf16.msra.mxu0 %v1547
    %2123 = vmatprep.subr.bf16.mxu0 0
    %2124 = vmatpush1.bf16.msra.mxu0 %v1548
    %2125 = vmatprep.subr.bf16.mxu0 0
    %2126 = vmatpush1.bf16.msra.mxu0 %v1549
    %2127 = vmatprep.subr.bf16.mxu0 0
    %2128 = vmatpush1.bf16.msra.mxu0 %v1550
    %2129 = vmatprep.subr.bf16.mxu0 0
    %2130 = vmatpush1.bf16.msra.mxu0 %v1551
    %2131 = vmatprep.subr.bf16.mxu0 0
    %2132 = vmatpush1.bf16.msra.mxu0 %v1552
    %2133 = vmatprep.subr.bf16.mxu0 0
    %2134 = vmatpush1.bf16.msra.mxu0 %v1553
    %2135 = vmatprep.subr.bf16.mxu0 0
    %2136 = vmatpush1.bf16.msra.mxu0 %v1554
    %2137 = vmatprep.subr.bf16.mxu0 0
    %2138 = vmatpush1.bf16.msra.mxu0 %v1555
    %2139 = vmatprep.subr.bf16.mxu0 0
    %2140 = vmatpush1.bf16.msra.mxu0 %v1556
    %2141 = vmatprep.mubr.bf16.mxu0 %v540
    %2142 = vmatmul.mubr.bf16.gmra.mrb[0].mxu0 %v538
    %v2143 = vpop.f32.mrb[0].mxu0
    %v2144 = vadd.f32 %v2104, %v2143
    %v2145 = vpop.f32.mrb[0].mxu0
    %v2146 = vpop.f32.mrb[0].mxu0
    %v2147 = vpop.f32.mrb[0].mxu0
    %2148 = vdwg.mxu0
    %2149 = vmatprep.subr.bf16.mxu0 0
    %2150 = vmatpush1.bf16.msra.mxu0 %v1557
    %2151 = vmatprep.subr.bf16.mxu0 0
    %2152 = vmatpush1.bf16.msra.mxu0 %v1558
    %2153 = vmatprep.subr.bf16.mxu0 0
    %2154 = vmatpush1.bf16.msra.mxu0 %v1559
    %2155 = vmatprep.subr.bf16.mxu0 0
    %2156 = vmatpush1.bf16.msra.mxu0 %v1560
    %2157 = vmatprep.subr.bf16.mxu0 0
    %2158 = vmatpush1.bf16.msra.mxu0 %v1561
    %2159 = vmatprep.subr.bf16.mxu0 0
    %2160 = vmatpush1.bf16.msra.mxu0 %v1562
    %2161 = vmatprep.subr.bf16.mxu0 0
    %2162 = vmatpush1.bf16.msra.mxu0 %v1563
    %2163 = vmatprep.subr.bf16.mxu0 0
    %2164 = vmatpush1.bf16.msra.mxu0 %v1564
    %2165 = vmatprep.subr.bf16.mxu0 0
    %2166 = vmatpush1.bf16.msra.mxu0 %v1565
    %2167 = vmatprep.subr.bf16.mxu0 0
    %2168 = vmatpush1.bf16.msra.mxu0 %v1566
    %2169 = vmatprep.subr.bf16.mxu0 0
    %2170 = vmatpush1.bf16.msra.mxu0 %v1567
    %2171 = vmatprep.subr.bf16.mxu0 0
    %2172 = vmatpush1.bf16.msra.mxu0 %v1568
    %2173 = vmatprep.subr.bf16.mxu0 0
    %2174 = vmatpush1.bf16.msra.mxu0 %v1569
    %2175 = vmatprep.subr.bf16.mxu0 0
    %2176 = vmatpush1.bf16.msra.mxu0 %v1570
    %2177 = vmatprep.subr.bf16.mxu0 0
    %2178 = vmatpush1.bf16.msra.mxu0 %v1571
    %2179 = vmatprep.subr.bf16.mxu0 0
    %2180 = vmatpush1.bf16.msra.mxu0 %v1572
    %2181 = vmatprep.mubr.bf16.mxu0 %v578
    %2182 = vmatmul.mubr.bf16.gmra.mrb[0].mxu0 %v564
    %v2183 = vpop.f32.mrb[0].mxu0
    %v2184 = vadd.f32 %v2144, %v2183
    %v2185 = vpop.f32.mrb[0].mxu0
    %v2186 = vpop.f32.mrb[0].mxu0
    %v2187 = vpop.f32.mrb[0].mxu0
    %2188 = vdwg.mxu0
    %2189 = vmatprep.subr.bf16.mxu0 0
    %2190 = vmatpush1.bf16.msra.mxu0 %v1573
    %2191 = vmatprep.subr.bf16.mxu0 0
    %2192 = vmatpush1.bf16.msra.mxu0 %v1574
    %2193 = vmatprep.subr.bf16.mxu0 0
    %2194 = vmatpush1.bf16.msra.mxu0 %v1575
    %2195 = vmatprep.subr.bf16.mxu0 0
    %2196 = vmatpush1.bf16.msra.mxu0 %v1576
    %2197 = vmatprep.subr.bf16.mxu0 0
    %2198 = vmatpush1.bf16.msra.mxu0 %v1577
    %2199 = vmatprep.subr.bf16.mxu0 0
    %2200 = vmatpush1.bf16.msra.mxu0 %v1578
    %2201 = vmatprep.subr.bf16.mxu0 0
    %2202 = vmatpush1.bf16.msra.mxu0 %v1579
    %2203 = vmatprep.subr.bf16.mxu0 0
    %2204 = vmatpush1.bf16.msra.mxu0 %v1580
    %2205 = vmatprep.subr.bf16.mxu0 0
    %2206 = vmatpush1.bf16.msra.mxu0 %v1581
    %2207 = vmatprep.subr.bf16.mxu0 0
    %2208 = vmatpush1.bf16.msra.mxu0 %v1582
    %2209 = vmatprep.subr.bf16.mxu0 0
    %2210 = vmatpush1.bf16.msra.mxu0 %v1583
    %2211 = vmatprep.subr.bf16.mxu0 0
    %2212 = vmatpush1.bf16.msra.mxu0 %v1584
    %2213 = vmatprep.subr.bf16.mxu0 0
    %2214 = vmatpush1.bf16.msra.mxu0 %v1585
    %2215 = vmatprep.subr.bf16.mxu0 0
    %2216 = vmatpush1.bf16.msra.mxu0 %v1586
    %2217 = vmatprep.subr.bf16.mxu0 0
    %2218 = vmatpush1.bf16.msra.mxu0 %v1587
    %2219 = vmatprep.subr.bf16.mxu0 0
    %2220 = vmatpush1.bf16.msra.mxu0 %v1588
    %2221 = vmatprep.mubr.bf16.mxu0 %v588
    %2222 = vmatmul.mubr.bf16.gmra.mrb[0].mxu0 %v586
    %v2223 = vpop.f32.mrb[0].mxu0
    %v2224 = vadd.f32 %v2184, %v2223
    %v2225 = vpop.f32.mrb[0].mxu0
    %v2226 = vpop.f32.mrb[0].mxu0
    %v2227 = vpop.f32.mrb[0].mxu0
    %2228 = vdwg.mxu0
    %2229 = vmatprep.subr.bf16.mxu0 0
    %2230 = vmatpush1.bf16.msra.mxu0 %v1589
    %2231 = vmatprep.subr.bf16.mxu0 0
    %2232 = vmatpush1.bf16.msra.mxu0 %v1590
    %2233 = vmatprep.subr.bf16.mxu0 0
    %2234 = vmatpush1.bf16.msra.mxu0 %v1591
    %2235 = vmatprep.subr.bf16.mxu0 0
    %2236 = vmatpush1.bf16.msra.mxu0 %v1592
    %2237 = vmatprep.subr.bf16.mxu0 0
    %2238 = vmatpush1.bf16.msra.mxu0 %v1593
    %2239 = vmatprep.subr.bf16.mxu0 0
    %2240 = vmatpush1.bf16.msra.mxu0 %v1594
    %2241 = vmatprep.subr.bf16.mxu0 0
    %2242 = vmatpush1.bf16.msra.mxu0 %v1595
    %2243 = vmatprep.subr.bf16.mxu0 0
    %2244 = vmatpush1.bf16.msra.mxu0 %v1596
    %2245 = vmatprep.subr.bf16.mxu0 0
    %2246 = vmatpush1.bf16.msra.mxu0 %v1597
    %2247 = vmatprep.subr.bf16.mxu0 0
    %2248 = vmatpush1.bf16.msra.mxu0 %v1598
    %2249 = vmatprep.subr.bf16.mxu0 0
    %2250 = vmatpush1.bf16.msra.mxu0 %v1599
    %2251 = vmatprep.subr.bf16.mxu0 0
    %2252 = vmatpush1.bf16.msra.mxu0 %v1600
    %2253 = vmatprep.subr.bf16.mxu0 0
    %2254 = vmatpush1.bf16.msra.mxu0 %v1601
    %2255 = vmatprep.subr.bf16.mxu0 0
    %2256 = vmatpush1.bf16.msra.mxu0 %v1602
    %2257 = vmatprep.subr.bf16.mxu0 0
    %2258 = vmatpush1.bf16.msra.mxu0 %v1603
    %2259 = vmatprep.subr.bf16.mxu0 0
    %2260 = vmatpush1.bf16.msra.mxu0 %v1604
    %2261 = vmatprep.mubr.bf16.mxu0 %v585
    %2262 = vmatmul.mubr.bf16.gmra.mrb[0].mxu0 %v571
    %v2263 = vpop.f32.mrb[0].mxu0
    %v2264 = vadd.f32 %v2224, %v2263
    %v2265 = vpop.f32.mrb[0].mxu0
    %v2266 = vpop.f32.mrb[0].mxu0
    %v2267 = vpop.f32.mrb[0].mxu0
    %2268 = vdwg.mxu0
    %2269 = vmatprep.subr.bf16.mxu0 0
    %2270 = vmatpush1.bf16.msra.mxu0 %v1605
    %2271 = vmatprep.subr.bf16.mxu0 0
    %2272 = vmatpush1.bf16.msra.mxu0 %v1606
    %2273 = vmatprep.subr.bf16.mxu0 0
    %2274 = vmatpush1.bf16.msra.mxu0 %v1607
    %2275 = vmatprep.subr.bf16.mxu0 0
    %2276 = vmatpush1.bf16.msra.mxu0 %v1608
    %2277 = vmatprep.subr.bf16.mxu0 0
    %2278 = vmatpush1.bf16.msra.mxu0 %v1609
    %2279 = vmatprep.subr.bf16.mxu0 0
    %2280 = vmatpush1.bf16.msra.mxu0 %v1610
    %2281 = vmatprep.subr.bf16.mxu0 0
    %2282 = vmatpush1.bf16.msra.mxu0 %v1611
    %2283 = vmatprep.subr.bf16.mxu0 0
    %2284 = vmatpush1.bf16.msra.mxu0 %v1612
    %2285 = vmatprep.subr.bf16.mxu0 0
    %2286 = vmatpush1.bf16.msra.mxu0 %v1613
    %2287 = vmatprep.subr.bf16.mxu0 0
    %2288 = vmatpush1.bf16.msra.mxu0 %v1614
    %2289 = vmatprep.subr.bf16.mxu0 0
    %2290 = vmatpush1.bf16.msra.mxu0 %v1615
    %2291 = vmatprep.subr.bf16.mxu0 0
    %2292 = vmatpush1.bf16.msra.mxu0 %v1616
    %2293 = vmatprep.subr.bf16.mxu0 0
    %2294 = vmatpush1.bf16.msra.mxu0 %v1617
    %2295 = vmatprep.subr.bf16.mxu0 0
    %2296 = vmatpush1.bf16.msra.mxu0 %v1618
    %2297 = vmatprep.subr.bf16.mxu0 0
    %2298 = vmatpush1.bf16.msra.mxu0 %v1619
    %2299 = vmatprep.subr.bf16.mxu0 0
    %2300 = vmatpush1.bf16.msra.mxu0 %v1620
    %2301 = vmatprep.mubr.bf16.mxu0 %v589
    %2302 = vmatmul.mubr.bf16.gmra.mrb[0].mxu0 %v587
    %v2303 = vpop.f32.mrb[0].mxu0
    %v2304 = vadd.f32 %v2264, %v2303
    %v2305 = vpop.f32.mrb[0].mxu0
    %v2306 = vpop.f32.mrb[0].mxu0
    %v2307 = vpop.f32.mrb[0].mxu0
    %2308 = vdwg.mxu0
    %2309 = vmatprep.subr.bf16.mxu0 0
    %2310 = vmatpush1.bf16.msra.mxu0 %v1621
    %2311 = vmatprep.subr.bf16.mxu0 0
    %2312 = vmatpush1.bf16.msra.mxu0 %v1622
    %2313 = vmatprep.subr.bf16.mxu0 0
    %2314 = vmatpush1.bf16.msra.mxu0 %v1623
    %2315 = vmatprep.subr.bf16.mxu0 0
    %2316 = vmatpush1.bf16.msra.mxu0 %v1624
    %2317 = vmatprep.subr.bf16.mxu0 0
    %2318 = vmatpush1.bf16.msra.mxu0 %v1625
    %2319 = vmatprep.subr.bf16.mxu0 0
    %2320 = vmatpush1.bf16.msra.mxu0 %v1626
    %2321 = vmatprep.subr.bf16.mxu0 0
    %2322 = vmatpush1.bf16.msra.mxu0 %v1627
    %2323 = vmatprep.subr.bf16.mxu0 0
    %2324 = vmatpush1.bf16.msra.mxu0 %v1628
    %2325 = vmatprep.subr.bf16.mxu0 0
    %2326 = vmatpush1.bf16.msra.mxu0 0
    %2327 = vmatprep.subr.bf16.mxu0 0
    %2328 = vmatpush1.bf16.msra.mxu0 0
    %2329 = vmatprep.subr.bf16.mxu0 0
    %2330 = vmatpush1.bf16.msra.mxu0 0
    %2331 = vmatprep.subr.bf16.mxu0 0
    %2332 = vmatpush1.bf16.msra.mxu0 0
    %2333 = vmatprep.subr.bf16.mxu0 0
    %2334 = vmatpush1.bf16.msra.mxu0 0
    %2335 = vmatprep.subr.bf16.mxu0 0
    %2336 = vmatpush1.bf16.msra.mxu0 0
    %2337 = vmatprep.subr.bf16.mxu0 0
    %2338 = vmatpush1.bf16.msra.mxu0 0
    %2339 = vmatprep.subr.bf16.mxu0 0
    %2340 = vmatpush1.bf16.msra.mxu0 0
    %2341 = vmatprep.mubr.bf16.mxu0 0
    %2342 = vmatmul.mubr.bf16.gmra.mrb[0].mxu0 %v603
    %v2343 = vpop.f32.mrb[0].mxu0
    %v2344 = vadd.f32 %v2304, %v2343
    %v2345 = vpop.f32.mrb[0].mxu0
    %v2346 = vpop.f32.mrb[0].mxu0
    %v2347 = vpop.f32.mrb[0].mxu0
    %2348 = vdwg.mxu0
    %v2349 = vmax.f32 %v2344, 0.0
    %v2350 = vpack.c.bf16 %v2349, %v2349
    %v2351 = vld [vmem:[%s3] sm:$0xf]
    %v2352 = vld [vmem:[%s3 + $0x4] sm:$0xf]
    %v2353 = vld [vmem:[%s3 + $0x8] sm:$0xf]
    %v2354 = vld [vmem:[%s3 + $0xc] sm:$0xf]
    %v2355 = vld [vmem:[%s3 + $0x10] sm:$0xf]
    %v2356 = vld [vmem:[%s3 + $0x14] sm:$0xf]
    %v2357 = vld [vmem:[%s3 + $0x18] sm:$0xf]
    %v2358 = vld [vmem:[%s3 + $0x1c] sm:$0xf]
    %v2359 = vld [vmem:[%s3 + $0x20] sm:$0xf]
    %v2360 = vld [vmem:[%s3 + $0x24] sm:$0xf]
    %v2361 = vld [vmem:[%s3 + $0x28] sm:$0xf]
    %v2362 = vld [vmem:[%s3 + $0x2c] sm:$0xf]
    %v2363 = vld [vmem:[%s3 + $0x30] sm:$0xf]
    %v2364 = vld [vmem:[%s3 + $0x34] sm:$0xf]
    %v2365 = vld [vmem:[%s3 + $0x38] sm:$0xf]
    %v2366 = vld [vmem:[%s3 + $0x3c] sm:$0xf]
    %v2367 = vld [vmem:[%s4] sm:$0x1]
    %v2369 = vlaneseq
    %v2370 = vshrl.u32 %v2369, 7
    %v2371 = vsub.s32 0, %v2370
    %v2372 = vrot.slane %v2367, %v2371
    %v2390 = vunpack.c.l.b16 %v2351
    %v2391 = vunpack.c.l.b16 %v2352
    %v2392 = vunpack.c.l.b16 %v2353
    %v2393 = vunpack.c.l.b16 %v2354
    %v2394 = vunpack.c.l.b16 %v2355
    %v2395 = vunpack.c.l.b16 %v2356
    %v2396 = vunpack.c.l.b16 %v2357
    %v2397 = vunpack.c.l.b16 %v2358
    %v2398 = vunpack.c.l.b16 %v2359
    %v2399 = vunpack.c.l.b16 %v2360
    %v2400 = vunpack.c.l.b16 %v2361
    %v2401 = vunpack.c.l.b16 %v2362
    %v2402 = vunpack.c.l.b16 %v2363
    %v2403 = vunpack.c.l.b16 %v2364
    %v2404 = vunpack.c.l.b16 %v2365
    %v2405 = vunpack.c.l.b16 %v2366
    %v2406 = vpack.c.b16 %v2391, %v2390
    %v2407 = vpack.c.b16 %v2393, %v2392
    %v2408 = vpack.c.b16 %v2395, %v2394
    %v2409 = vpack.c.b16 %v2397, %v2396
    %v2410 = vpack.c.b16 %v2399, %v2398
    %v2411 = vpack.c.b16 %v2401, %v2400
    %v2412 = vpack.c.b16 %v2403, %v2402
    %v2413 = vpack.c.b16 %v2405, %v2404
    %2422 = vmatprep.subr.bf16.mxu0 0
    %2423 = vmatpush1.bf16.msra.mxu0 %v2406
    %2424 = vmatprep.subr.bf16.mxu0 0
    %2425 = vmatpush1.bf16.msra.mxu0 %v2407
    %2426 = vmatprep.subr.bf16.mxu0 0
    %2427 = vmatpush1.bf16.msra.mxu0 %v2408
    %2428 = vmatprep.subr.bf16.mxu0 0
    %2429 = vmatpush1.bf16.msra.mxu0 %v2409
    %2430 = vmatprep.subr.bf16.mxu0 0
    %2431 = vmatpush1.bf16.msra.mxu0 %v2410
    %2432 = vmatprep.subr.bf16.mxu0 0
    %2433 = vmatpush1.bf16.msra.mxu0 %v2411
    %2434 = vmatprep.subr.bf16.mxu0 0
    %2435 = vmatpush1.bf16.msra.mxu0 %v2412
    %2436 = vmatprep.subr.bf16.mxu0 0
    %2437 = vmatpush1.bf16.msra.mxu0 %v2413
    %2438 = vmatprep.subr.bf16.mxu0 0
    %2439 = vmatpush1.bf16.msra.mxu0 0
    %2440 = vmatprep.subr.bf16.mxu0 0
    %2441 = vmatpush1.bf16.msra.mxu0 0
    %2442 = vmatprep.subr.bf16.mxu0 0
    %2443 = vmatpush1.bf16.msra.mxu0 0
    %2444 = vmatprep.subr.bf16.mxu0 0
    %2445 = vmatpush1.bf16.msra.mxu0 0
    %2446 = vmatprep.subr.bf16.mxu0 0
    %2447 = vmatpush1.bf16.msra.mxu0 0
    %2448 = vmatprep.subr.bf16.mxu0 0
    %2449 = vmatpush1.bf16.msra.mxu0 0
    %2450 = vmatprep.subr.bf16.mxu0 0
    %2451 = vmatpush1.bf16.msra.mxu0 0
    %2452 = vmatprep.subr.bf16.mxu0 0
    %2453 = vmatpush1.bf16.msra.mxu0 0
    %2454 = vmatprep.mubr.bf16.mxu0 0
    %2455 = vmatmul.mubr.bf16.gmra.mrb[0].mxu0 %v2350
    %v2456 = vpop.f32.mrb[0].mxu0
    %v2457 = vadd.f32 %v2372, %v2456
    %v2458 = vpop.f32.mrb[0].mxu0
    %v2459 = vpop.f32.mrb[0].mxu0
    %v2460 = vpop.f32.mrb[0].mxu0
    %2461 = vdwg.mxu0
    %v2462 = vmax.f32 %v2457, 0.0
    %v2463 = vpack.c.bf16 %v2462, %v2462
    %v2464 = vld [vmem:[%s5] sm:$0xf]
    %v2465 = vld [vmem:[%s5 + $0x4] sm:$0xf]
    %v2466 = vld [vmem:[%s5 + $0x8] sm:$0xf]
    %v2467 = vld [vmem:[%s5 + $0xc] sm:$0xf]
    %v2468 = vld [vmem:[%s5 + $0x10] sm:$0xf]
    %v2469 = vld [vmem:[%s5 + $0x14] sm:$0xf]
    %v2470 = vld [vmem:[%s5 + $0x18] sm:$0xf]
    %v2471 = vld [vmem:[%s5 + $0x1c] sm:$0xf]
    %v2472 = vld [vmem:[%s5 + $0x20] sm:$0xf]
    %v2473 = vld [vmem:[%s5 + $0x24] sm:$0xf]
    %v2474 = vld [vmem:[%s5 + $0x28] sm:$0xf]
    %v2475 = vld [vmem:[%s5 + $0x2c] sm:$0xf]
    %v2476 = vld [vmem:[%s5 + $0x30] sm:$0xf]
    %v2477 = vld [vmem:[%s5 + $0x34] sm:$0xf]
    %v2478 = vld [vmem:[%s5 + $0x38] sm:$0xf]
    %v2479 = vld [vmem:[%s5 + $0x3c] sm:$0xf]
    %v2480 = vld [vmem:[%s6] sm:$0x1]
    %v2482 = vlaneseq
    %v2483 = vshrl.u32 %v2482, 7
    %v2484 = vsub.s32 0, %v2483
    %v2485 = vrot.slane %v2480, %v2484
    %v2503 = vunpack.c.l.b16 %v2464
    %v2504 = vunpack.c.l.b16 %v2465
    %v2505 = vunpack.c.l.b16 %v2466
    %v2506 = vunpack.c.l.b16 %v2467
    %v2507 = vunpack.c.l.b16 %v2468
    %v2508 = vunpack.c.l.b16 %v2469
    %v2509 = vunpack.c.l.b16 %v2470
    %v2510 = vunpack.c.l.b16 %v2471
    %v2511 = vunpack.c.l.b16 %v2472
    %v2512 = vunpack.c.l.b16 %v2473
    %v2513 = vunpack.c.l.b16 %v2474
    %v2514 = vunpack.c.l.b16 %v2475
    %v2515 = vunpack.c.l.b16 %v2476
    %v2516 = vunpack.c.l.b16 %v2477
    %v2517 = vunpack.c.l.b16 %v2478
    %v2518 = vunpack.c.l.b16 %v2479
    %v2519 = vpack.c.b16 %v2504, %v2503
    %v2520 = vpack.c.b16 %v2506, %v2505
    %v2521 = vpack.c.b16 %v2508, %v2507
    %v2522 = vpack.c.b16 %v2510, %v2509
    %v2523 = vpack.c.b16 %v2512, %v2511
    %v2524 = vpack.c.b16 %v2514, %v2513
    %v2525 = vpack.c.b16 %v2516, %v2515
    %v2526 = vpack.c.b16 %v2518, %v2517
    %2535 = vmatprep.subr.bf16.mxu0 0
    %2536 = vmatpush1.bf16.msra.mxu0 %v2519
    %2537 = vmatprep.subr.bf16.mxu0 0
    %2538 = vmatpush1.bf16.msra.mxu0 %v2520
    %2539 = vmatprep.subr.bf16.mxu0 0
    %2540 = vmatpush1.bf16.msra.mxu0 %v2521
    %2541 = vmatprep.subr.bf16.mxu0 0
    %2542 = vmatpush1.bf16.msra.mxu0 %v2522
    %2543 = vmatprep.subr.bf16.mxu0 0
    %2544 = vmatpush1.bf16.msra.mxu0 %v2523
    %2545 = vmatprep.subr.bf16.mxu0 0
    %2546 = vmatpush1.bf16.msra.mxu0 %v2524
    %2547 = vmatprep.subr.bf16.mxu0 0
    %2548 = vmatpush1.bf16.msra.mxu0 %v2525
    %2549 = vmatprep.subr.bf16.mxu0 0
    %2550 = vmatpush1.bf16.msra.mxu0 %v2526
    %2551 = vmatprep.subr.bf16.mxu0 0
    %2552 = vmatpush1.bf16.msra.mxu0 0
    %2553 = vmatprep.subr.bf16.mxu0 0
    %2554 = vmatpush1.bf16.msra.mxu0 0
    %2555 = vmatprep.subr.bf16.mxu0 0
    %2556 = vmatpush1.bf16.msra.mxu0 0
    %2557 = vmatprep.subr.bf16.mxu0 0
    %2558 = vmatpush1.bf16.msra.mxu0 0
    %2559 = vmatprep.subr.bf16.mxu0 0
    %2560 = vmatpush1.bf16.msra.mxu0 0
    %2561 = vmatprep.subr.bf16.mxu0 0
    %2562 = vmatpush1.bf16.msra.mxu0 0
    %2563 = vmatprep.subr.bf16.mxu0 0
    %2564 = vmatpush1.bf16.msra.mxu0 0
    %2565 = vmatprep.subr.bf16.mxu0 0
    %2566 = vmatpush1.bf16.msra.mxu0 0
    %2567 = vmatprep.mubr.bf16.mxu0 0
    %2568 = vmatmul.mubr.bf16.gmra.mrb[0].mxu0 %v2463
    %v2569 = vpop.f32.mrb[0].mxu0
    %v2570 = vadd.f32 %v2485, %v2569
    %v2571 = vpop.f32.mrb[0].mxu0
    %v2572 = vpop.f32.mrb[0].mxu0
    %v2573 = vpop.f32.mrb[0].mxu0
    %2574 = vdwg.mxu0
    %2575 = vst [vmem:[#allocation2] sm:$0x3] %v2570
    // Predicated region
    $region30: #{_lenet_forward.5} parent=1 // pred_check
      _
    $region31: #{_lenet_forward.5} parent=1 // pred_check_branch
      %2577 = sbr.rel (0) target = $region33
    $region32: #{_lenet_forward.5} parent=1 // pred_region
      %s2579 = ssub.s32 32, 32
      %2580 = vsyncadd [#allocation3], %s2579
      %s2582 = sshll.u32 [#allocation2], 4
      %s2583 = int_to_ptr.vmem [resolvable:$true] %s2582
      %2585 = dma.vmem_to_hbm [thread:$0]  %s2583, 32, %s7, [#allocation3]
    $region33: #{_lenet_forward.5} parent=1 // pred_fallthru
      _
    // Predicated region
    $region34: #{_lenet_forward.5} parent=1 // pred_check
      _
    $region35: #{_lenet_forward.5} parent=1 // pred_check_branch
      %2587 = sbr.rel (0) target = $region37
    $region36: #{_lenet_forward.5} parent=1 // pred_region
      %2588 = dma.done [#allocation3], 32
    $region37: #{_lenet_forward.5} parent=1 // pred_fallthru
      _
    %2589 = vsyncpa [#allocation3], 1

</llo_original>
